<compile_context>
chip_gen: v7x
topology: tpu7x:2x2x1
jax: 0.10.0
libtpu: 0.0.40
codegen_flags: <defaults>
</compile_context>

<pallas_src>
import functools

import numpy as np

import jax
import jax.numpy as jnp
from jax.experimental import pallas as pl
from jax.experimental.pallas import tpu as pltpu


# ----------------------------------------------------------------------------
# Fused whole-network Pallas kernel (one grid step == one image)
# ----------------------------------------------------------------------------
def _make_disc_kernel(layer_cfg):
    """layer_cfg: tuple of (kh, lrelu_slope_or_None) per layer (static)."""
    n_layers = len(layer_cfg)

    def kernel(x_ref, *refs):
        out_ref = refs[3 * n_layers]
        a = x_ref[0]                                    # (H0, W0*C0) bf16
        for l, (kh, slope) in enumerate(layer_cfg):
            s_ref = refs[3 * l + 0]                     # (kh, OH, Hin)          bf16 0/1
            w_ref = refs[3 * l + 1]                     # (kh, Win*Cin, OW*Cout) bf16
            b_ref = refs[3 * l + 2]                     # (1, OW*Cout)           f32
            acc = None
            for i in range(kh):
                # Row selection (stride + H zero-pad folded into S) -> exact.
                rows = jnp.dot(s_ref[i], a, preferred_element_type=jnp.float32)
                rows = rows.astype(jnp.bfloat16)        # exact (values already bf16)
                # Banded weight matmul (W zero-pad + kw taps folded into B).
                part = jnp.dot(rows, w_ref[i], preferred_element_type=jnp.float32)
                acc = part if acc is None else acc + part
            acc = acc + b_ref[...]                      # f32 epilogue
            if slope is not None:
                acc = jnp.where(acc >= 0.0, acc, slope * acc)
            a = acc.astype(jnp.bfloat16) if l + 1 < n_layers else acc
        out_ref[0] = a.astype(out_ref.dtype)

    return kernel


# ----------------------------------------------------------------------------
# Host-side preparation: fold conv weights into banded matrices, build the
# fused pallas_call, return a jitted forward function.
# ----------------------------------------------------------------------------
def build_discriminator_forward(params, in_shape):
    N, C0, H0, W0 = in_shape
    H, W, C = H0, W0, C0
    flat_inputs, in_specs, layer_cfg = [], [], []
    flops = 0

    for (w, b, stride, pad, slope) in params:
        Cout, Cin, KH, KW = w.shape
        assert Cin == C
        OH = (H + 2 * pad - KH) // stride + 1
        OW = (W + 2 * pad - KW) // stride + 1

        # S[i] @ A selects (with zero rows for padding) the input rows that
        # feed kernel tap-row i:  row oh picks input row stride*oh + i - pad.
        S = np.zeros((KH, OH, H), np.float32)
        for i in range(KH):
            h = stride * np.arange(OH) + i - pad
            ok = (h >= 0) & (h < H)
            S[i, np.arange(OH)[ok], h[ok]] = 1.0

        # Placement of tap-column j of the weights into the banded matrix
        # (also folds the zero padding along W).
        P = np.zeros((KW, W, OW), np.float32)
        for j in range(KW):
            wi = stride * np.arange(OW) + j - pad
            ok = (wi >= 0) & (wi < W)
            P[j, wi[ok], np.arange(OW)[ok]] = 1.0

        w_t = jnp.transpose(w, (2, 3, 1, 0))            # (KH, KW, Cin, Cout)
        B = jnp.einsum('jwo,ijcd->iwcod', jnp.asarray(P), w_t)
        B = B.reshape(KH, W * C, OW * Cout)             # rows: w*Cin+ci, cols: ow*Cout+co
        brow = jnp.tile(b, OW).reshape(1, OW * Cout).astype(jnp.float32)

        flat_inputs += [jnp.asarray(S, jnp.bfloat16),
                        B.astype(jnp.bfloat16),
                        brow]
        in_specs += [
            pl.BlockSpec((KH, OH, H), lambda n: (0, 0, 0)),
            pl.BlockSpec((KH, W * C, OW * Cout), lambda n: (0, 0, 0)),
            pl.BlockSpec((1, OW * Cout), lambda n: (0, 0)),
        ]
        layer_cfg.append((KH, slope))
        flops += 2 * KH * (OH * H * W * C + OH * W * C * OW * Cout)
        H, W, C = OH, OW, Cout

    OHf, OWf, Coutf = H, W, C
    kernel = _make_disc_kernel(tuple(layer_cfg))

    in_bytes = N * H0 * W0 * C0 * 2 + sum(
        int(np.prod(t.shape)) * t.dtype.itemsize for t in flat_inputs)
    out_bytes = N * OHf * OWf * Coutf * 4

    pallas_fn = pl.pallas_call(
        kernel,
        out_shape=jax.ShapeDtypeStruct((N, OHf, OWf * Coutf), jnp.float32),
        grid=(N,),
        in_specs=[pl.BlockSpec((1, H0, W0 * C0), lambda n: (n, 0, 0))] + in_specs,
        out_specs=pl.BlockSpec((1, OHf, OWf * Coutf), lambda n: (n, 0, 0)),
        compiler_params=pltpu.CompilerParams(
            dimension_semantics=("parallel",)),
        cost_estimate=pl.CostEstimate(
            flops=int(N * flops), transcendentals=0,
            bytes_accessed=int(in_bytes + out_bytes)),
    )

    def forward(x_nchw):
        # NCHW -> per-image (H, W*C) lane-dense layout, bf16 MXU operands.
        x_img = jnp.transpose(x_nchw, (0, 2, 3, 1)).reshape(N, H0, W0 * C0)
        out = pallas_fn(x_img.astype(jnp.bfloat16), *flat_inputs)
        out = out.reshape(N, OHf, OWf, Coutf)
        return jnp.transpose(out, (0, 3, 1, 2))          # back to NCHW

    return jax.jit(forward)


# ----------------------------------------------------------------------------
# Parameter init (spectral-norm'd conv weights), matching the module config:
#   opt.out_channels=3, opt.start_channels=8, pad='zero', activ='lrelu',
#   norm='none' (so Conv2dLayer reduces to conv + lrelu).
# ----------------------------------------------------------------------------
def spectral_norm(w_oihw, n_iter=3):
    """Eval-time spectral normalization (power iteration, deterministic u0)."""
    # TODO(synk): PyTorch spectral_norm keeps a persistent randomly-initialized
    # `u` updated once per forward; this deterministic eval-time approximation
    # will not bit-match a real PyTorch checkpoint.
    cout = w_oihw.shape[0]
    w_mat = w_oihw.reshape(cout, -1)
    u = jnp.ones((cout,), jnp.float32) / jnp.sqrt(float(cout))
    v = None
    for _ in range(n_iter):
        v = w_mat.T @ u
        v = v / (jnp.linalg.norm(v) + 1e-12)
        u = w_mat @ v
        u = u / (jnp.linalg.norm(u) + 1e-12)
    sigma = u @ (w_mat @ v)
    return w_oihw / sigma


def init_discriminator_params(key, in_channels=3, start_channels=8):
    C = start_channels
    # (cout, cin, k, stride, pad, lrelu_slope or None)
    cfg = [
        (C,      in_channels, 3, 1, 1, 0.2),   # initial
        (C,      C,           3, 2, 1, 0.2),   # block1
        (2 * C,  C,           3, 2, 1, 0.2),   # block2
        (4 * C,  2 * C,       3, 2, 1, 0.2),   # block3
        (8 * C,  4 * C,       4, 1, 1, 0.2),   # final1
        (1,      8 * C,       4, 1, 1, None),  # final2 (activation='none')
    ]
    params = []
    for (cout, cin, k, s, p, slope) in cfg:
        key, kw_, kb_ = jax.random.split(key, 3)
        fan_in = cin * k * k
        w = jax.random.normal(kw_, (cout, cin, k, k), jnp.float32) * (
            1.0 / jnp.sqrt(float(fan_in)))
        b = jax.random.normal(kb_, (cout,), jnp.float32) * 0.01
        w = spectral_norm(w)  # sn=True on every layer
        params.append((w, b, s, p, slope))
    return params


# ----------------------------------------------------------------------------
# References: full-f32 (semantics) and bf16-matched (kernel precision)
# ----------------------------------------------------------------------------
def discriminator_reference(x_nchw, params):
    x = x_nchw
    for (w, b, stride, pad, slope) in params:
        x = jax.lax.conv_general_dilated(
            x, w, window_strides=(stride, stride),
            padding=[(pad, pad), (pad, pad)],
            dimension_numbers=("NCHW", "OIHW", "NCHW"))
        x = x + b.reshape(1, -1, 1, 1)
        if slope is not None:
            x = jnp.where(x >= 0.0, x, slope * x)
    return x


def discriminator_reference_bf16(x_nchw, params):
    """Same math as the kernel: bf16 operands, f32 accumulate + epilogue."""
    n = len(params)
    x = x_nchw.astype(jnp.bfloat16)
    for l, (w, b, stride, pad, slope) in enumerate(params):
        y = jax.lax.conv_general_dilated(
            x, w.astype(jnp.bfloat16),
            window_strides=(stride, stride),
            padding=[(pad, pad), (pad, pad)],
            dimension_numbers=("NCHW", "OIHW", "NCHW"),
            preferred_element_type=jnp.float32)
        y = y + b.reshape(1, -1, 1, 1)
        if slope is not None:
            y = jnp.where(y >= 0.0, y, slope * y)
        x = y.astype(jnp.bfloat16) if l + 1 < n else y
    return x


if __name__ == "__main__":
    key = jax.random.PRNGKey(0)
    key, kx = jax.random.split(key)

    # Input: batch=2, opt.out_channels=3, 32x32 spatial (smallest that keeps
    # the two k=4,p=1 final convs valid: 32->32->16->8->4->3->2).
    x = jax.random.normal(kx, (2, 3, 32, 32), jnp.float32)

    params = init_discriminator_params(key, in_channels=3, start_channels=8)

    fwd = build_discriminator_forward(params, x.shape)
    out = jax.block_until_ready(fwd(x))
    assert out.shape == (2, 1, 2, 2), out.shape

    # Tight check against a precision-matched (bf16 operand / f32 accumulate)
    # reference, loose sanity check against the pure-f32 reference.
    ref_m = jax.block_until_ready(discriminator_reference_bf16(x, params))
    err_m = float(jnp.max(jnp.abs(out - ref_m)))
    assert jnp.allclose(out, ref_m, atol=1e-2, rtol=1e-2), err_m

    ref_f = jax.block_until_ready(discriminator_reference(x, params))
    err_f = float(jnp.max(jnp.abs(out - ref_f)))
    assert jnp.allclose(out, ref_f, atol=1e-1, rtol=1e-1), err_f

    print("KERNEL_OK")
</pallas_src>

<mosaic_0001>
module attributes {stable_mosaic.version = 11 : i64} {
  func.func @kernel(%arg0: i32, %arg1: memref<1x32x96xbf16, #tpu.memory_space<vmem>>, %arg2: memref<3x32x32xbf16, #tpu.memory_space<vmem>>, %arg3: memref<3x96x256xbf16, #tpu.memory_space<vmem>>, %arg4: memref<1x256xf32, #tpu.memory_space<vmem>>, %arg5: memref<3x16x32xbf16, #tpu.memory_space<vmem>>, %arg6: memref<3x256x128xbf16, #tpu.memory_space<vmem>>, %arg7: memref<1x128xf32, #tpu.memory_space<vmem>>, %arg8: memref<3x8x16xbf16, #tpu.memory_space<vmem>>, %arg9: memref<3x128x128xbf16, #tpu.memory_space<vmem>>, %arg10: memref<1x128xf32, #tpu.memory_space<vmem>>, %arg11: memref<3x4x8xbf16, #tpu.memory_space<vmem>>, %arg12: memref<3x128x128xbf16, #tpu.memory_space<vmem>>, %arg13: memref<1x128xf32, #tpu.memory_space<vmem>>, %arg14: memref<4x3x4xbf16, #tpu.memory_space<vmem>>, %arg15: memref<4x128x192xbf16, #tpu.memory_space<vmem>>, %arg16: memref<1x192xf32, #tpu.memory_space<vmem>>, %arg17: memref<4x2x3xbf16, #tpu.memory_space<vmem>>, %arg18: memref<4x192x2xbf16, #tpu.memory_space<vmem>>, %arg19: memref<1x2xf32, #tpu.memory_space<vmem>>, %arg20: memref<1x2x2xf32, #tpu.memory_space<vmem>>) attributes {dimension_semantics = [#tpu.dimension_semantics<parallel>], iteration_bounds = array<i64: 2>, scalar_prefetch = 0 : i64, scratch_operands = 0 : i64, tpu.core_type = #tpu.core_type<tc>, window_params = [{transform_indices = @transform_0, window_bounds = array<i64: 1, 32, 96>}, {pipeline_mode = #tpu.pipeline_mode<synchronous>, transform_indices = @transform_1, window_bounds = array<i64: 3, 32, 32>}, {pipeline_mode = #tpu.pipeline_mode<synchronous>, transform_indices = @transform_2, window_bounds = array<i64: 3, 96, 256>}, {pipeline_mode = #tpu.pipeline_mode<synchronous>, transform_indices = @transform_3, window_bounds = array<i64: 1, 256>}, {pipeline_mode = #tpu.pipeline_mode<synchronous>, transform_indices = @transform_4, window_bounds = array<i64: 3, 16, 32>}, {pipeline_mode = #tpu.pipeline_mode<synchronous>, transform_indices = @transform_5, window_bounds = array<i64: 3, 256, 128>}, {pipeline_mode = #tpu.pipeline_mode<synchronous>, transform_indices = @transform_6, window_bounds = array<i64: 1, 128>}, {pipeline_mode = #tpu.pipeline_mode<synchronous>, transform_indices = @transform_7, window_bounds = array<i64: 3, 8, 16>}, {pipeline_mode = #tpu.pipeline_mode<synchronous>, transform_indices = @transform_8, window_bounds = array<i64: 3, 128, 128>}, {pipeline_mode = #tpu.pipeline_mode<synchronous>, transform_indices = @transform_9, window_bounds = array<i64: 1, 128>}, {pipeline_mode = #tpu.pipeline_mode<synchronous>, transform_indices = @transform_10, window_bounds = array<i64: 3, 4, 8>}, {pipeline_mode = #tpu.pipeline_mode<synchronous>, transform_indices = @transform_11, window_bounds = array<i64: 3, 128, 128>}, {pipeline_mode = #tpu.pipeline_mode<synchronous>, transform_indices = @transform_12, window_bounds = array<i64: 1, 128>}, {pipeline_mode = #tpu.pipeline_mode<synchronous>, transform_indices = @transform_13, window_bounds = array<i64: 4, 3, 4>}, {pipeline_mode = #tpu.pipeline_mode<synchronous>, transform_indices = @transform_14, window_bounds = array<i64: 4, 128, 192>}, {pipeline_mode = #tpu.pipeline_mode<synchronous>, transform_indices = @transform_15, window_bounds = array<i64: 1, 192>}, {pipeline_mode = #tpu.pipeline_mode<synchronous>, transform_indices = @transform_16, window_bounds = array<i64: 4, 2, 3>}, {pipeline_mode = #tpu.pipeline_mode<synchronous>, transform_indices = @transform_17, window_bounds = array<i64: 4, 192, 2>}, {pipeline_mode = #tpu.pipeline_mode<synchronous>, transform_indices = @transform_18, window_bounds = array<i64: 1, 2>}, {transform_indices = @transform_19, window_bounds = array<i64: 1, 2, 2>}]} {
    %c0 = arith.constant 0 : index
    %c0_0 = arith.constant 0 : index
    %c0_1 = arith.constant 0 : index
    %0 = vector.load %arg1[%c0, %c0_0, %c0_1] : memref<1x32x96xbf16, #tpu.memory_space<vmem>>, vector<1x32x96xbf16>
    %1 = vector.shape_cast %0 : vector<1x32x96xbf16> to vector<32x96xbf16>
    %c0_2 = arith.constant 0 : index
    %c0_3 = arith.constant 0 : index
    %c0_4 = arith.constant 0 : index
    %2 = vector.load %arg2[%c0_2, %c0_3, %c0_4] : memref<3x32x32xbf16, #tpu.memory_space<vmem>>, vector<1x32x32xbf16>
    %3 = vector.shape_cast %2 : vector<1x32x32xbf16> to vector<32x32xbf16>
    %cst = arith.constant dense<0.000000e+00> : vector<32x96xf32>
    %4 = tpu.matmul %3, %1, %cst {dimension_numbers = #tpu.dot_dimension_numbers<[1], [0], [0], [1], [0, 0, 1, 1], [], []>} : vector<32x32xbf16>, vector<32x96xbf16>, vector<32x96xf32> -> vector<32x96xf32>
    %5 = arith.truncf %4 : vector<32x96xf32> to vector<32x96xbf16>
    %c0_5 = arith.constant 0 : index
    %c0_6 = arith.constant 0 : index
    %c0_7 = arith.constant 0 : index
    %6 = vector.load %arg3[%c0_5, %c0_6, %c0_7] : memref<3x96x256xbf16, #tpu.memory_space<vmem>>, vector<1x96x256xbf16>
    %7 = vector.shape_cast %6 : vector<1x96x256xbf16> to vector<96x256xbf16>
    %cst_8 = arith.constant dense<0.000000e+00> : vector<32x256xf32>
    %8 = tpu.matmul %5, %7, %cst_8 {dimension_numbers = #tpu.dot_dimension_numbers<[1], [0], [0], [1], [0, 0, 1, 1], [], []>} : vector<32x96xbf16>, vector<96x256xbf16>, vector<32x256xf32> -> vector<32x256xf32>
    %c1 = arith.constant 1 : index
    %c0_9 = arith.constant 0 : index
    %c0_10 = arith.constant 0 : index
    %9 = vector.load %arg2[%c1, %c0_9, %c0_10] : memref<3x32x32xbf16, #tpu.memory_space<vmem>>, vector<1x32x32xbf16>
    %10 = vector.shape_cast %9 : vector<1x32x32xbf16> to vector<32x32xbf16>
    %cst_11 = arith.constant dense<0.000000e+00> : vector<32x96xf32>
    %11 = tpu.matmul %10, %1, %cst_11 {dimension_numbers = #tpu.dot_dimension_numbers<[1], [0], [0], [1], [0, 0, 1, 1], [], []>} : vector<32x32xbf16>, vector<32x96xbf16>, vector<32x96xf32> -> vector<32x96xf32>
    %12 = arith.truncf %11 : vector<32x96xf32> to vector<32x96xbf16>
    %c1_12 = arith.constant 1 : index
    %c0_13 = arith.constant 0 : index
    %c0_14 = arith.constant 0 : index
    %13 = vector.load %arg3[%c1_12, %c0_13, %c0_14] : memref<3x96x256xbf16, #tpu.memory_space<vmem>>, vector<1x96x256xbf16>
    %14 = vector.shape_cast %13 : vector<1x96x256xbf16> to vector<96x256xbf16>
    %cst_15 = arith.constant dense<0.000000e+00> : vector<32x256xf32>
    %15 = tpu.matmul %12, %14, %cst_15 {dimension_numbers = #tpu.dot_dimension_numbers<[1], [0], [0], [1], [0, 0, 1, 1], [], []>} : vector<32x96xbf16>, vector<96x256xbf16>, vector<32x256xf32> -> vector<32x256xf32>
    %16 = arith.addf %8, %15 : vector<32x256xf32>
    %c2 = arith.constant 2 : index
    %c0_16 = arith.constant 0 : index
    %c0_17 = arith.constant 0 : index
    %17 = vector.load %arg2[%c2, %c0_16, %c0_17] : memref<3x32x32xbf16, #tpu.memory_space<vmem>>, vector<1x32x32xbf16>
    %18 = vector.shape_cast %17 : vector<1x32x32xbf16> to vector<32x32xbf16>
    %cst_18 = arith.constant dense<0.000000e+00> : vector<32x96xf32>
    %19 = tpu.matmul %18, %1, %cst_18 {dimension_numbers = #tpu.dot_dimension_numbers<[1], [0], [0], [1], [0, 0, 1, 1], [], []>} : vector<32x32xbf16>, vector<32x96xbf16>, vector<32x96xf32> -> vector<32x96xf32>
    %20 = arith.truncf %19 : vector<32x96xf32> to vector<32x96xbf16>
    %c2_19 = arith.constant 2 : index
    %c0_20 = arith.constant 0 : index
    %c0_21 = arith.constant 0 : index
    %21 = vector.load %arg3[%c2_19, %c0_20, %c0_21] : memref<3x96x256xbf16, #tpu.memory_space<vmem>>, vector<1x96x256xbf16>
    %22 = vector.shape_cast %21 : vector<1x96x256xbf16> to vector<96x256xbf16>
    %cst_22 = arith.constant dense<0.000000e+00> : vector<32x256xf32>
    %23 = tpu.matmul %20, %22, %cst_22 {dimension_numbers = #tpu.dot_dimension_numbers<[1], [0], [0], [1], [0, 0, 1, 1], [], []>} : vector<32x96xbf16>, vector<96x256xbf16>, vector<32x256xf32> -> vector<32x256xf32>
    %24 = arith.addf %16, %23 : vector<32x256xf32>
    %c0_23 = arith.constant 0 : index
    %c0_24 = arith.constant 0 : index
    %25 = vector.load %arg4[%c0_23, %c0_24] : memref<1x256xf32, #tpu.memory_space<vmem>>, vector<1x256xf32>
    %26 = vector.broadcast %25 : vector<1x256xf32> to vector<32x256xf32>
    %27 = arith.addf %24, %26 : vector<32x256xf32>
    %cst_25 = arith.constant 0.000000e+00 : f32
    %28 = vector.broadcast %cst_25 : f32 to vector<32x256xf32>
    %29 = arith.cmpf oge, %27, %28 : vector<32x256xf32>
    %cst_26 = arith.constant 2.000000e-01 : f32
    %30 = vector.broadcast %cst_26 : f32 to vector<32x256xf32>
    %31 = arith.mulf %30, %27 : vector<32x256xf32>
    %32 = arith.select %29, %27, %31 : vector<32x256xi1>, vector<32x256xf32>
    %33 = arith.truncf %32 : vector<32x256xf32> to vector<32x256xbf16>
    %c0_27 = arith.constant 0 : index
    %c0_28 = arith.constant 0 : index
    %c0_29 = arith.constant 0 : index
    %34 = vector.load %arg5[%c0_27, %c0_28, %c0_29] : memref<3x16x32xbf16, #tpu.memory_space<vmem>>, vector<1x16x32xbf16>
    %35 = vector.shape_cast %34 : vector<1x16x32xbf16> to vector<16x32xbf16>
    %cst_30 = arith.constant dense<0.000000e+00> : vector<16x256xf32>
    %36 = tpu.matmul %35, %33, %cst_30 {dimension_numbers = #tpu.dot_dimension_numbers<[1], [0], [0], [1], [0, 0, 1, 1], [], []>} : vector<16x32xbf16>, vector<32x256xbf16>, vector<16x256xf32> -> vector<16x256xf32>
    %37 = arith.truncf %36 : vector<16x256xf32> to vector<16x256xbf16>
    %c0_31 = arith.constant 0 : index
    %c0_32 = arith.constant 0 : index
    %c0_33 = arith.constant 0 : index
    %38 = vector.load %arg6[%c0_31, %c0_32, %c0_33] : memref<3x256x128xbf16, #tpu.memory_space<vmem>>, vector<1x256x128xbf16>
    %39 = vector.shape_cast %38 : vector<1x256x128xbf16> to vector<256x128xbf16>
    %cst_34 = arith.constant dense<0.000000e+00> : vector<16x128xf32>
    %40 = tpu.matmul %37, %39, %cst_34 {dimension_numbers = #tpu.dot_dimension_numbers<[1], [0], [0], [1], [0, 0, 1, 1], [], []>} : vector<16x256xbf16>, vector<256x128xbf16>, vector<16x128xf32> -> vector<16x128xf32>
    %c1_35 = arith.constant 1 : index
    %c0_36 = arith.constant 0 : index
    %c0_37 = arith.constant 0 : index
    %41 = vector.load %arg5[%c1_35, %c0_36, %c0_37] : memref<3x16x32xbf16, #tpu.memory_space<vmem>>, vector<1x16x32xbf16>
    %42 = vector.shape_cast %41 : vector<1x16x32xbf16> to vector<16x32xbf16>
    %cst_38 = arith.constant dense<0.000000e+00> : vector<16x256xf32>
    %43 = tpu.matmul %42, %33, %cst_38 {dimension_numbers = #tpu.dot_dimension_numbers<[1], [0], [0], [1], [0, 0, 1, 1], [], []>} : vector<16x32xbf16>, vector<32x256xbf16>, vector<16x256xf32> -> vector<16x256xf32>
    %44 = arith.truncf %43 : vector<16x256xf32> to vector<16x256xbf16>
    %c1_39 = arith.constant 1 : index
    %c0_40 = arith.constant 0 : index
    %c0_41 = arith.constant 0 : index
    %45 = vector.load %arg6[%c1_39, %c0_40, %c0_41] : memref<3x256x128xbf16, #tpu.memory_space<vmem>>, vector<1x256x128xbf16>
    %46 = vector.shape_cast %45 : vector<1x256x128xbf16> to vector<256x128xbf16>
    %cst_42 = arith.constant dense<0.000000e+00> : vector<16x128xf32>
    %47 = tpu.matmul %44, %46, %cst_42 {dimension_numbers = #tpu.dot_dimension_numbers<[1], [0], [0], [1], [0, 0, 1, 1], [], []>} : vector<16x256xbf16>, vector<256x128xbf16>, vector<16x128xf32> -> vector<16x128xf32>
    %48 = arith.addf %40, %47 : vector<16x128xf32>
    %c2_43 = arith.constant 2 : index
    %c0_44 = arith.constant 0 : index
    %c0_45 = arith.constant 0 : index
    %49 = vector.load %arg5[%c2_43, %c0_44, %c0_45] : memref<3x16x32xbf16, #tpu.memory_space<vmem>>, vector<1x16x32xbf16>
    %50 = vector.shape_cast %49 : vector<1x16x32xbf16> to vector<16x32xbf16>
    %cst_46 = arith.constant dense<0.000000e+00> : vector<16x256xf32>
    %51 = tpu.matmul %50, %33, %cst_46 {dimension_numbers = #tpu.dot_dimension_numbers<[1], [0], [0], [1], [0, 0, 1, 1], [], []>} : vector<16x32xbf16>, vector<32x256xbf16>, vector<16x256xf32> -> vector<16x256xf32>
    %52 = arith.truncf %51 : vector<16x256xf32> to vector<16x256xbf16>
    %c2_47 = arith.constant 2 : index
    %c0_48 = arith.constant 0 : index
    %c0_49 = arith.constant 0 : index
    %53 = vector.load %arg6[%c2_47, %c0_48, %c0_49] : memref<3x256x128xbf16, #tpu.memory_space<vmem>>, vector<1x256x128xbf16>
    %54 = vector.shape_cast %53 : vector<1x256x128xbf16> to vector<256x128xbf16>
    %cst_50 = arith.constant dense<0.000000e+00> : vector<16x128xf32>
    %55 = tpu.matmul %52, %54, %cst_50 {dimension_numbers = #tpu.dot_dimension_numbers<[1], [0], [0], [1], [0, 0, 1, 1], [], []>} : vector<16x256xbf16>, vector<256x128xbf16>, vector<16x128xf32> -> vector<16x128xf32>
    %56 = arith.addf %48, %55 : vector<16x128xf32>
    %c0_51 = arith.constant 0 : index
    %c0_52 = arith.constant 0 : index
    %57 = vector.load %arg7[%c0_51, %c0_52] : memref<1x128xf32, #tpu.memory_space<vmem>>, vector<1x128xf32>
    %58 = vector.broadcast %57 : vector<1x128xf32> to vector<16x128xf32>
    %59 = arith.addf %56, %58 : vector<16x128xf32>
    %cst_53 = arith.constant 0.000000e+00 : f32
    %60 = vector.broadcast %cst_53 : f32 to vector<16x128xf32>
    %61 = arith.cmpf oge, %59, %60 : vector<16x128xf32>
    %cst_54 = arith.constant 2.000000e-01 : f32
    %62 = vector.broadcast %cst_54 : f32 to vector<16x128xf32>
    %63 = arith.mulf %62, %59 : vector<16x128xf32>
    %64 = arith.select %61, %59, %63 : vector<16x128xi1>, vector<16x128xf32>
    %65 = arith.truncf %64 : vector<16x128xf32> to vector<16x128xbf16>
    %c0_55 = arith.constant 0 : index
    %c0_56 = arith.constant 0 : index
    %c0_57 = arith.constant 0 : index
    %66 = vector.load %arg8[%c0_55, %c0_56, %c0_57] : memref<3x8x16xbf16, #tpu.memory_space<vmem>>, vector<1x8x16xbf16>
    %67 = vector.shape_cast %66 : vector<1x8x16xbf16> to vector<8x16xbf16>
    %cst_58 = arith.constant dense<0.000000e+00> : vector<8x128xf32>
    %68 = tpu.matmul %67, %65, %cst_58 {dimension_numbers = #tpu.dot_dimension_numbers<[1], [0], [0], [1], [0, 0, 1, 1], [], []>} : vector<8x16xbf16>, vector<16x128xbf16>, vector<8x128xf32> -> vector<8x128xf32>
    %69 = arith.truncf %68 : vector<8x128xf32> to vector<8x128xbf16>
    %c0_59 = arith.constant 0 : index
    %c0_60 = arith.constant 0 : index
    %c0_61 = arith.constant 0 : index
    %70 = vector.load %arg9[%c0_59, %c0_60, %c0_61] : memref<3x128x128xbf16, #tpu.memory_space<vmem>>, vector<1x128x128xbf16>
    %71 = vector.shape_cast %70 : vector<1x128x128xbf16> to vector<128x128xbf16>
    %cst_62 = arith.constant dense<0.000000e+00> : vector<8x128xf32>
    %72 = tpu.matmul %69, %71, %cst_62 {dimension_numbers = #tpu.dot_dimension_numbers<[1], [0], [0], [1], [0, 0, 1, 1], [], []>} : vector<8x128xbf16>, vector<128x128xbf16>, vector<8x128xf32> -> vector<8x128xf32>
    %c1_63 = arith.constant 1 : index
    %c0_64 = arith.constant 0 : index
    %c0_65 = arith.constant 0 : index
    %73 = vector.load %arg8[%c1_63, %c0_64, %c0_65] : memref<3x8x16xbf16, #tpu.memory_space<vmem>>, vector<1x8x16xbf16>
    %74 = vector.shape_cast %73 : vector<1x8x16xbf16> to vector<8x16xbf16>
    %cst_66 = arith.constant dense<0.000000e+00> : vector<8x128xf32>
    %75 = tpu.matmul %74, %65, %cst_66 {dimension_numbers = #tpu.dot_dimension_numbers<[1], [0], [0], [1], [0, 0, 1, 1], [], []>} : vector<8x16xbf16>, vector<16x128xbf16>, vector<8x128xf32> -> vector<8x128xf32>
    %76 = arith.truncf %75 : vector<8x128xf32> to vector<8x128xbf16>
    %c1_67 = arith.constant 1 : index
    %c0_68 = arith.constant 0 : index
    %c0_69 = arith.constant 0 : index
    %77 = vector.load %arg9[%c1_67, %c0_68, %c0_69] : memref<3x128x128xbf16, #tpu.memory_space<vmem>>, vector<1x128x128xbf16>
    %78 = vector.shape_cast %77 : vector<1x128x128xbf16> to vector<128x128xbf16>
    %cst_70 = arith.constant dense<0.000000e+00> : vector<8x128xf32>
    %79 = tpu.matmul %76, %78, %cst_70 {dimension_numbers = #tpu.dot_dimension_numbers<[1], [0], [0], [1], [0, 0, 1, 1], [], []>} : vector<8x128xbf16>, vector<128x128xbf16>, vector<8x128xf32> -> vector<8x128xf32>
    %80 = arith.addf %72, %79 : vector<8x128xf32>
    %c2_71 = arith.constant 2 : index
    %c0_72 = arith.constant 0 : index
    %c0_73 = arith.constant 0 : index
    %81 = vector.load %arg8[%c2_71, %c0_72, %c0_73] : memref<3x8x16xbf16, #tpu.memory_space<vmem>>, vector<1x8x16xbf16>
    %82 = vector.shape_cast %81 : vector<1x8x16xbf16> to vector<8x16xbf16>
    %cst_74 = arith.constant dense<0.000000e+00> : vector<8x128xf32>
    %83 = tpu.matmul %82, %65, %cst_74 {dimension_numbers = #tpu.dot_dimension_numbers<[1], [0], [0], [1], [0, 0, 1, 1], [], []>} : vector<8x16xbf16>, vector<16x128xbf16>, vector<8x128xf32> -> vector<8x128xf32>
    %84 = arith.truncf %83 : vector<8x128xf32> to vector<8x128xbf16>
    %c2_75 = arith.constant 2 : index
    %c0_76 = arith.constant 0 : index
    %c0_77 = arith.constant 0 : index
    %85 = vector.load %arg9[%c2_75, %c0_76, %c0_77] : memref<3x128x128xbf16, #tpu.memory_space<vmem>>, vector<1x128x128xbf16>
    %86 = vector.shape_cast %85 : vector<1x128x128xbf16> to vector<128x128xbf16>
    %cst_78 = arith.constant dense<0.000000e+00> : vector<8x128xf32>
    %87 = tpu.matmul %84, %86, %cst_78 {dimension_numbers = #tpu.dot_dimension_numbers<[1], [0], [0], [1], [0, 0, 1, 1], [], []>} : vector<8x128xbf16>, vector<128x128xbf16>, vector<8x128xf32> -> vector<8x128xf32>
    %88 = arith.addf %80, %87 : vector<8x128xf32>
    %c0_79 = arith.constant 0 : index
    %c0_80 = arith.constant 0 : index
    %89 = vector.load %arg10[%c0_79, %c0_80] : memref<1x128xf32, #tpu.memory_space<vmem>>, vector<1x128xf32>
    %90 = vector.broadcast %89 : vector<1x128xf32> to vector<8x128xf32>
    %91 = arith.addf %88, %90 : vector<8x128xf32>
    %cst_81 = arith.constant 0.000000e+00 : f32
    %92 = vector.broadcast %cst_81 : f32 to vector<8x128xf32>
    %93 = arith.cmpf oge, %91, %92 : vector<8x128xf32>
    %cst_82 = arith.constant 2.000000e-01 : f32
    %94 = vector.broadcast %cst_82 : f32 to vector<8x128xf32>
    %95 = arith.mulf %94, %91 : vector<8x128xf32>
    %96 = arith.select %93, %91, %95 : vector<8x128xi1>, vector<8x128xf32>
    %97 = arith.truncf %96 : vector<8x128xf32> to vector<8x128xbf16>
    %c0_83 = arith.constant 0 : index
    %c0_84 = arith.constant 0 : index
    %c0_85 = arith.constant 0 : index
    %98 = vector.load %arg11[%c0_83, %c0_84, %c0_85] : memref<3x4x8xbf16, #tpu.memory_space<vmem>>, vector<1x4x8xbf16>
    %99 = vector.shape_cast %98 : vector<1x4x8xbf16> to vector<4x8xbf16>
    %cst_86 = arith.constant dense<0.000000e+00> : vector<4x128xf32>
    %100 = tpu.matmul %99, %97, %cst_86 {dimension_numbers = #tpu.dot_dimension_numbers<[1], [0], [0], [1], [0, 0, 1, 1], [], []>} : vector<4x8xbf16>, vector<8x128xbf16>, vector<4x128xf32> -> vector<4x128xf32>
    %101 = arith.truncf %100 : vector<4x128xf32> to vector<4x128xbf16>
    %c0_87 = arith.constant 0 : index
    %c0_88 = arith.constant 0 : index
    %c0_89 = arith.constant 0 : index
    %102 = vector.load %arg12[%c0_87, %c0_88, %c0_89] : memref<3x128x128xbf16, #tpu.memory_space<vmem>>, vector<1x128x128xbf16>
    %103 = vector.shape_cast %102 : vector<1x128x128xbf16> to vector<128x128xbf16>
    %cst_90 = arith.constant dense<0.000000e+00> : vector<4x128xf32>
    %104 = tpu.matmul %101, %103, %cst_90 {dimension_numbers = #tpu.dot_dimension_numbers<[1], [0], [0], [1], [0, 0, 1, 1], [], []>} : vector<4x128xbf16>, vector<128x128xbf16>, vector<4x128xf32> -> vector<4x128xf32>
    %c1_91 = arith.constant 1 : index
    %c0_92 = arith.constant 0 : index
    %c0_93 = arith.constant 0 : index
    %105 = vector.load %arg11[%c1_91, %c0_92, %c0_93] : memref<3x4x8xbf16, #tpu.memory_space<vmem>>, vector<1x4x8xbf16>
    %106 = vector.shape_cast %105 : vector<1x4x8xbf16> to vector<4x8xbf16>
    %cst_94 = arith.constant dense<0.000000e+00> : vector<4x128xf32>
    %107 = tpu.matmul %106, %97, %cst_94 {dimension_numbers = #tpu.dot_dimension_numbers<[1], [0], [0], [1], [0, 0, 1, 1], [], []>} : vector<4x8xbf16>, vector<8x128xbf16>, vector<4x128xf32> -> vector<4x128xf32>
    %108 = arith.truncf %107 : vector<4x128xf32> to vector<4x128xbf16>
    %c1_95 = arith.constant 1 : index
    %c0_96 = arith.constant 0 : index
    %c0_97 = arith.constant 0 : index
    %109 = vector.load %arg12[%c1_95, %c0_96, %c0_97] : memref<3x128x128xbf16, #tpu.memory_space<vmem>>, vector<1x128x128xbf16>
    %110 = vector.shape_cast %109 : vector<1x128x128xbf16> to vector<128x128xbf16>
    %cst_98 = arith.constant dense<0.000000e+00> : vector<4x128xf32>
    %111 = tpu.matmul %108, %110, %cst_98 {dimension_numbers = #tpu.dot_dimension_numbers<[1], [0], [0], [1], [0, 0, 1, 1], [], []>} : vector<4x128xbf16>, vector<128x128xbf16>, vector<4x128xf32> -> vector<4x128xf32>
    %112 = arith.addf %104, %111 : vector<4x128xf32>
    %c2_99 = arith.constant 2 : index
    %c0_100 = arith.constant 0 : index
    %c0_101 = arith.constant 0 : index
    %113 = vector.load %arg11[%c2_99, %c0_100, %c0_101] : memref<3x4x8xbf16, #tpu.memory_space<vmem>>, vector<1x4x8xbf16>
    %114 = vector.shape_cast %113 : vector<1x4x8xbf16> to vector<4x8xbf16>
    %cst_102 = arith.constant dense<0.000000e+00> : vector<4x128xf32>
    %115 = tpu.matmul %114, %97, %cst_102 {dimension_numbers = #tpu.dot_dimension_numbers<[1], [0], [0], [1], [0, 0, 1, 1], [], []>} : vector<4x8xbf16>, vector<8x128xbf16>, vector<4x128xf32> -> vector<4x128xf32>
    %116 = arith.truncf %115 : vector<4x128xf32> to vector<4x128xbf16>
    %c2_103 = arith.constant 2 : index
    %c0_104 = arith.constant 0 : index
    %c0_105 = arith.constant 0 : index
    %117 = vector.load %arg12[%c2_103, %c0_104, %c0_105] : memref<3x128x128xbf16, #tpu.memory_space<vmem>>, vector<1x128x128xbf16>
    %118 = vector.shape_cast %117 : vector<1x128x128xbf16> to vector<128x128xbf16>
    %cst_106 = arith.constant dense<0.000000e+00> : vector<4x128xf32>
    %119 = tpu.matmul %116, %118, %cst_106 {dimension_numbers = #tpu.dot_dimension_numbers<[1], [0], [0], [1], [0, 0, 1, 1], [], []>} : vector<4x128xbf16>, vector<128x128xbf16>, vector<4x128xf32> -> vector<4x128xf32>
    %120 = arith.addf %112, %119 : vector<4x128xf32>
    %c0_107 = arith.constant 0 : index
    %c0_108 = arith.constant 0 : index
    %121 = vector.load %arg13[%c0_107, %c0_108] : memref<1x128xf32, #tpu.memory_space<vmem>>, vector<1x128xf32>
    %122 = vector.broadcast %121 : vector<1x128xf32> to vector<4x128xf32>
    %123 = arith.addf %120, %122 : vector<4x128xf32>
    %cst_109 = arith.constant 0.000000e+00 : f32
    %124 = vector.broadcast %cst_109 : f32 to vector<4x128xf32>
    %125 = arith.cmpf oge, %123, %124 : vector<4x128xf32>
    %cst_110 = arith.constant 2.000000e-01 : f32
    %126 = vector.broadcast %cst_110 : f32 to vector<4x128xf32>
    %127 = arith.mulf %126, %123 : vector<4x128xf32>
    %128 = arith.select %125, %123, %127 : vector<4x128xi1>, vector<4x128xf32>
    %129 = arith.truncf %128 : vector<4x128xf32> to vector<4x128xbf16>
    %c0_111 = arith.constant 0 : index
    %c0_112 = arith.constant 0 : index
    %c0_113 = arith.constant 0 : index
    %130 = vector.load %arg14[%c0_111, %c0_112, %c0_113] : memref<4x3x4xbf16, #tpu.memory_space<vmem>>, vector<1x3x4xbf16>
    %131 = vector.shape_cast %130 : vector<1x3x4xbf16> to vector<3x4xbf16>
    %cst_114 = arith.constant dense<0.000000e+00> : vector<3x128xf32>
    %132 = tpu.matmul %131, %129, %cst_114 {dimension_numbers = #tpu.dot_dimension_numbers<[1], [0], [0], [1], [0, 0, 1, 1], [], []>} : vector<3x4xbf16>, vector<4x128xbf16>, vector<3x128xf32> -> vector<3x128xf32>
    %133 = arith.truncf %132 : vector<3x128xf32> to vector<3x128xbf16>
    %c0_115 = arith.constant 0 : index
    %c0_116 = arith.constant 0 : index
    %c0_117 = arith.constant 0 : index
    %134 = vector.load %arg15[%c0_115, %c0_116, %c0_117] : memref<4x128x192xbf16, #tpu.memory_space<vmem>>, vector<1x128x192xbf16>
    %135 = vector.shape_cast %134 : vector<1x128x192xbf16> to vector<128x192xbf16>
    %cst_118 = arith.constant dense<0.000000e+00> : vector<3x192xf32>
    %136 = tpu.matmul %133, %135, %cst_118 {dimension_numbers = #tpu.dot_dimension_numbers<[1], [0], [0], [1], [0, 0, 1, 1], [], []>} : vector<3x128xbf16>, vector<128x192xbf16>, vector<3x192xf32> -> vector<3x192xf32>
    %c1_119 = arith.constant 1 : index
    %c0_120 = arith.constant 0 : index
    %c0_121 = arith.constant 0 : index
    %137 = vector.load %arg14[%c1_119, %c0_120, %c0_121] : memref<4x3x4xbf16, #tpu.memory_space<vmem>>, vector<1x3x4xbf16>
    %138 = vector.shape_cast %137 : vector<1x3x4xbf16> to vector<3x4xbf16>
    %cst_122 = arith.constant dense<0.000000e+00> : vector<3x128xf32>
    %139 = tpu.matmul %138, %129, %cst_122 {dimension_numbers = #tpu.dot_dimension_numbers<[1], [0], [0], [1], [0, 0, 1, 1], [], []>} : vector<3x4xbf16>, vector<4x128xbf16>, vector<3x128xf32> -> vector<3x128xf32>
    %140 = arith.truncf %139 : vector<3x128xf32> to vector<3x128xbf16>
    %c1_123 = arith.constant 1 : index
    %c0_124 = arith.constant 0 : index
    %c0_125 = arith.constant 0 : index
    %141 = vector.load %arg15[%c1_123, %c0_124, %c0_125] : memref<4x128x192xbf16, #tpu.memory_space<vmem>>, vector<1x128x192xbf16>
    %142 = vector.shape_cast %141 : vector<1x128x192xbf16> to vector<128x192xbf16>
    %cst_126 = arith.constant dense<0.000000e+00> : vector<3x192xf32>
    %143 = tpu.matmul %140, %142, %cst_126 {dimension_numbers = #tpu.dot_dimension_numbers<[1], [0], [0], [1], [0, 0, 1, 1], [], []>} : vector<3x128xbf16>, vector<128x192xbf16>, vector<3x192xf32> -> vector<3x192xf32>
    %144 = arith.addf %136, %143 : vector<3x192xf32>
    %c2_127 = arith.constant 2 : index
    %c0_128 = arith.constant 0 : index
    %c0_129 = arith.constant 0 : index
    %145 = vector.load %arg14[%c2_127, %c0_128, %c0_129] : memref<4x3x4xbf16, #tpu.memory_space<vmem>>, vector<1x3x4xbf16>
    %146 = vector.shape_cast %145 : vector<1x3x4xbf16> to vector<3x4xbf16>
    %cst_130 = arith.constant dense<0.000000e+00> : vector<3x128xf32>
    %147 = tpu.matmul %146, %129, %cst_130 {dimension_numbers = #tpu.dot_dimension_numbers<[1], [0], [0], [1], [0, 0, 1, 1], [], []>} : vector<3x4xbf16>, vector<4x128xbf16>, vector<3x128xf32> -> vector<3x128xf32>
    %148 = arith.truncf %147 : vector<3x128xf32> to vector<3x128xbf16>
    %c2_131 = arith.constant 2 : index
    %c0_132 = arith.constant 0 : index
    %c0_133 = arith.constant 0 : index
    %149 = vector.load %arg15[%c2_131, %c0_132, %c0_133] : memref<4x128x192xbf16, #tpu.memory_space<vmem>>, vector<1x128x192xbf16>
    %150 = vector.shape_cast %149 : vector<1x128x192xbf16> to vector<128x192xbf16>
    %cst_134 = arith.constant dense<0.000000e+00> : vector<3x192xf32>
    %151 = tpu.matmul %148, %150, %cst_134 {dimension_numbers = #tpu.dot_dimension_numbers<[1], [0], [0], [1], [0, 0, 1, 1], [], []>} : vector<3x128xbf16>, vector<128x192xbf16>, vector<3x192xf32> -> vector<3x192xf32>
    %152 = arith.addf %144, %151 : vector<3x192xf32>
    %c3 = arith.constant 3 : index
    %c0_135 = arith.constant 0 : index
    %c0_136 = arith.constant 0 : index
    %153 = vector.load %arg14[%c3, %c0_135, %c0_136] : memref<4x3x4xbf16, #tpu.memory_space<vmem>>, vector<1x3x4xbf16>
    %154 = vector.shape_cast %153 : vector<1x3x4xbf16> to vector<3x4xbf16>
    %cst_137 = arith.constant dense<0.000000e+00> : vector<3x128xf32>
    %155 = tpu.matmul %154, %129, %cst_137 {dimension_numbers = #tpu.dot_dimension_numbers<[1], [0], [0], [1], [0, 0, 1, 1], [], []>} : vector<3x4xbf16>, vector<4x128xbf16>, vector<3x128xf32> -> vector<3x128xf32>
    %156 = arith.truncf %155 : vector<3x128xf32> to vector<3x128xbf16>
    %c3_138 = arith.constant 3 : index
    %c0_139 = arith.constant 0 : index
    %c0_140 = arith.constant 0 : index
    %157 = vector.load %arg15[%c3_138, %c0_139, %c0_140] : memref<4x128x192xbf16, #tpu.memory_space<vmem>>, vector<1x128x192xbf16>
    %158 = vector.shape_cast %157 : vector<1x128x192xbf16> to vector<128x192xbf16>
    %cst_141 = arith.constant dense<0.000000e+00> : vector<3x192xf32>
    %159 = tpu.matmul %156, %158, %cst_141 {dimension_numbers = #tpu.dot_dimension_numbers<[1], [0], [0], [1], [0, 0, 1, 1], [], []>} : vector<3x128xbf16>, vector<128x192xbf16>, vector<3x192xf32> -> vector<3x192xf32>
    %160 = arith.addf %152, %159 : vector<3x192xf32>
    %c0_142 = arith.constant 0 : index
    %c0_143 = arith.constant 0 : index
    %161 = vector.load %arg16[%c0_142, %c0_143] : memref<1x192xf32, #tpu.memory_space<vmem>>, vector<1x192xf32>
    %162 = vector.broadcast %161 : vector<1x192xf32> to vector<3x192xf32>
    %163 = arith.addf %160, %162 : vector<3x192xf32>
    %cst_144 = arith.constant 0.000000e+00 : f32
    %164 = vector.broadcast %cst_144 : f32 to vector<3x192xf32>
    %165 = arith.cmpf oge, %163, %164 : vector<3x192xf32>
    %cst_145 = arith.constant 2.000000e-01 : f32
    %166 = vector.broadcast %cst_145 : f32 to vector<3x192xf32>
    %167 = arith.mulf %166, %163 : vector<3x192xf32>
    %168 = arith.select %165, %163, %167 : vector<3x192xi1>, vector<3x192xf32>
    %169 = arith.truncf %168 : vector<3x192xf32> to vector<3x192xbf16>
    %c0_146 = arith.constant 0 : index
    %c0_147 = arith.constant 0 : index
    %c0_148 = arith.constant 0 : index
    %170 = vector.load %arg17[%c0_146, %c0_147, %c0_148] : memref<4x2x3xbf16, #tpu.memory_space<vmem>>, vector<1x2x3xbf16>
    %171 = vector.shape_cast %170 : vector<1x2x3xbf16> to vector<2x3xbf16>
    %cst_149 = arith.constant dense<0.000000e+00> : vector<2x192xf32>
    %172 = tpu.matmul %171, %169, %cst_149 {dimension_numbers = #tpu.dot_dimension_numbers<[1], [0], [0], [1], [0, 0, 1, 1], [], []>} : vector<2x3xbf16>, vector<3x192xbf16>, vector<2x192xf32> -> vector<2x192xf32>
    %173 = arith.truncf %172 : vector<2x192xf32> to vector<2x192xbf16>
    %c0_150 = arith.constant 0 : index
    %c0_151 = arith.constant 0 : index
    %c0_152 = arith.constant 0 : index
    %174 = vector.load %arg18[%c0_150, %c0_151, %c0_152] : memref<4x192x2xbf16, #tpu.memory_space<vmem>>, vector<1x192x2xbf16>
    %175 = vector.shape_cast %174 : vector<1x192x2xbf16> to vector<192x2xbf16>
    %cst_153 = arith.constant dense<0.000000e+00> : vector<2x2xf32>
    %176 = tpu.matmul %173, %175, %cst_153 {dimension_numbers = #tpu.dot_dimension_numbers<[1], [0], [0], [1], [0, 0, 1, 1], [], []>} : vector<2x192xbf16>, vector<192x2xbf16>, vector<2x2xf32> -> vector<2x2xf32>
    %c1_154 = arith.constant 1 : index
    %c0_155 = arith.constant 0 : index
    %c0_156 = arith.constant 0 : index
    %177 = vector.load %arg17[%c1_154, %c0_155, %c0_156] : memref<4x2x3xbf16, #tpu.memory_space<vmem>>, vector<1x2x3xbf16>
    %178 = vector.shape_cast %177 : vector<1x2x3xbf16> to vector<2x3xbf16>
    %cst_157 = arith.constant dense<0.000000e+00> : vector<2x192xf32>
    %179 = tpu.matmul %178, %169, %cst_157 {dimension_numbers = #tpu.dot_dimension_numbers<[1], [0], [0], [1], [0, 0, 1, 1], [], []>} : vector<2x3xbf16>, vector<3x192xbf16>, vector<2x192xf32> -> vector<2x192xf32>
    %180 = arith.truncf %179 : vector<2x192xf32> to vector<2x192xbf16>
    %c1_158 = arith.constant 1 : index
    %c0_159 = arith.constant 0 : index
    %c0_160 = arith.constant 0 : index
    %181 = vector.load %arg18[%c1_158, %c0_159, %c0_160] : memref<4x192x2xbf16, #tpu.memory_space<vmem>>, vector<1x192x2xbf16>
    %182 = vector.shape_cast %181 : vector<1x192x2xbf16> to vector<192x2xbf16>
    %cst_161 = arith.constant dense<0.000000e+00> : vector<2x2xf32>
    %183 = tpu.matmul %180, %182, %cst_161 {dimension_numbers = #tpu.dot_dimension_numbers<[1], [0], [0], [1], [0, 0, 1, 1], [], []>} : vector<2x192xbf16>, vector<192x2xbf16>, vector<2x2xf32> -> vector<2x2xf32>
    %184 = arith.addf %176, %183 : vector<2x2xf32>
    %c2_162 = arith.constant 2 : index
    %c0_163 = arith.constant 0 : index
    %c0_164 = arith.constant 0 : index
    %185 = vector.load %arg17[%c2_162, %c0_163, %c0_164] : memref<4x2x3xbf16, #tpu.memory_space<vmem>>, vector<1x2x3xbf16>
    %186 = vector.shape_cast %185 : vector<1x2x3xbf16> to vector<2x3xbf16>
    %cst_165 = arith.constant dense<0.000000e+00> : vector<2x192xf32>
    %187 = tpu.matmul %186, %169, %cst_165 {dimension_numbers = #tpu.dot_dimension_numbers<[1], [0], [0], [1], [0, 0, 1, 1], [], []>} : vector<2x3xbf16>, vector<3x192xbf16>, vector<2x192xf32> -> vector<2x192xf32>
    %188 = arith.truncf %187 : vector<2x192xf32> to vector<2x192xbf16>
    %c2_166 = arith.constant 2 : index
    %c0_167 = arith.constant 0 : index
    %c0_168 = arith.constant 0 : index
    %189 = vector.load %arg18[%c2_166, %c0_167, %c0_168] : memref<4x192x2xbf16, #tpu.memory_space<vmem>>, vector<1x192x2xbf16>
    %190 = vector.shape_cast %189 : vector<1x192x2xbf16> to vector<192x2xbf16>
    %cst_169 = arith.constant dense<0.000000e+00> : vector<2x2xf32>
    %191 = tpu.matmul %188, %190, %cst_169 {dimension_numbers = #tpu.dot_dimension_numbers<[1], [0], [0], [1], [0, 0, 1, 1], [], []>} : vector<2x192xbf16>, vector<192x2xbf16>, vector<2x2xf32> -> vector<2x2xf32>
    %192 = arith.addf %184, %191 : vector<2x2xf32>
    %c3_170 = arith.constant 3 : index
    %c0_171 = arith.constant 0 : index
    %c0_172 = arith.constant 0 : index
    %193 = vector.load %arg17[%c3_170, %c0_171, %c0_172] : memref<4x2x3xbf16, #tpu.memory_space<vmem>>, vector<1x2x3xbf16>
    %194 = vector.shape_cast %193 : vector<1x2x3xbf16> to vector<2x3xbf16>
    %cst_173 = arith.constant dense<0.000000e+00> : vector<2x192xf32>
    %195 = tpu.matmul %194, %169, %cst_173 {dimension_numbers = #tpu.dot_dimension_numbers<[1], [0], [0], [1], [0, 0, 1, 1], [], []>} : vector<2x3xbf16>, vector<3x192xbf16>, vector<2x192xf32> -> vector<2x192xf32>
    %196 = arith.truncf %195 : vector<2x192xf32> to vector<2x192xbf16>
    %c3_174 = arith.constant 3 : index
    %c0_175 = arith.constant 0 : index
    %c0_176 = arith.constant 0 : index
    %197 = vector.load %arg18[%c3_174, %c0_175, %c0_176] : memref<4x192x2xbf16, #tpu.memory_space<vmem>>, vector<1x192x2xbf16>
    %198 = vector.shape_cast %197 : vector<1x192x2xbf16> to vector<192x2xbf16>
    %cst_177 = arith.constant dense<0.000000e+00> : vector<2x2xf32>
    %199 = tpu.matmul %196, %198, %cst_177 {dimension_numbers = #tpu.dot_dimension_numbers<[1], [0], [0], [1], [0, 0, 1, 1], [], []>} : vector<2x192xbf16>, vector<192x2xbf16>, vector<2x2xf32> -> vector<2x2xf32>
    %200 = arith.addf %192, %199 : vector<2x2xf32>
    %c0_178 = arith.constant 0 : index
    %c0_179 = arith.constant 0 : index
    %201 = vector.load %arg19[%c0_178, %c0_179] : memref<1x2xf32, #tpu.memory_space<vmem>>, vector<1x2xf32>
    %202 = vector.broadcast %201 : vector<1x2xf32> to vector<2x2xf32>
    %203 = arith.addf %200, %202 : vector<2x2xf32>
    %c0_180 = arith.constant 0 : index
    %c0_181 = arith.constant 0 : index
    %c0_182 = arith.constant 0 : index
    %204 = vector.load %arg20[%c0_180, %c0_181, %c0_182] : memref<1x2x2xf32, #tpu.memory_space<vmem>>, vector<1x2x2xf32>
    %205 = vector.shape_cast %204 : vector<1x2x2xf32> to vector<2x2xf32>
    %206 = vector.shape_cast %203 : vector<2x2xf32> to vector<1x2x2xf32>
    tpu.vector_store %arg20[%c0_180, %c0_181, %c0_182], %206 {strides = array<i32>} : memref<1x2x2xf32, #tpu.memory_space<vmem>>, vector<1x2x2xf32>,
    return
  }
  func.func @transform_0(%arg0: i32) -> (i32, i32, i32) {
    %c0_i32 = arith.constant 0 : i32
    %c0_i32_0 = arith.constant 0 : i32
    %c0_i32_1 = arith.constant 0 : i32
    return %arg0, %c0_i32, %c0_i32_0 : i32, i32, i32
  }
  func.func @transform_1(%arg0: i32) -> (i32, i32, i32) {
    %c0_i32 = arith.constant 0 : i32
    %c0_i32_0 = arith.constant 0 : i32
    %c0_i32_1 = arith.constant 0 : i32
    %c0_i32_2 = arith.constant 0 : i32
    return %c0_i32, %c0_i32_0, %c0_i32_1 : i32, i32, i32
  }
  func.func @transform_2(%arg0: i32) -> (i32, i32, i32) {
    %c0_i32 = arith.constant 0 : i32
    %c0_i32_0 = arith.constant 0 : i32
    %c0_i32_1 = arith.constant 0 : i32
    %c0_i32_2 = arith.constant 0 : i32
    return %c0_i32, %c0_i32_0, %c0_i32_1 : i32, i32, i32
  }
  func.func @transform_3(%arg0: i32) -> (i32, i32) {
    %c0_i32 = arith.constant 0 : i32
    %c0_i32_0 = arith.constant 0 : i32
    %c0_i32_1 = arith.constant 0 : i32
    return %c0_i32, %c0_i32_0 : i32, i32
  }
  func.func @transform_4(%arg0: i32) -> (i32, i32, i32) {
    %c0_i32 = arith.constant 0 : i32
    %c0_i32_0 = arith.constant 0 : i32
    %c0_i32_1 = arith.constant 0 : i32
    %c0_i32_2 = arith.constant 0 : i32
    return %c0_i32, %c0_i32_0, %c0_i32_1 : i32, i32, i32
  }
  func.func @transform_5(%arg0: i32) -> (i32, i32, i32) {
    %c0_i32 = arith.constant 0 : i32
    %c0_i32_0 = arith.constant 0 : i32
    %c0_i32_1 = arith.constant 0 : i32
    %c0_i32_2 = arith.constant 0 : i32
    return %c0_i32, %c0_i32_0, %c0_i32_1 : i32, i32, i32
  }
  func.func @transform_6(%arg0: i32) -> (i32, i32) {
    %c0_i32 = arith.constant 0 : i32
    %c0_i32_0 = arith.constant 0 : i32
    %c0_i32_1 = arith.constant 0 : i32
    return %c0_i32, %c0_i32_0 : i32, i32
  }
  func.func @transform_7(%arg0: i32) -> (i32, i32, i32) {
    %c0_i32 = arith.constant 0 : i32
    %c0_i32_0 = arith.constant 0 : i32
    %c0_i32_1 = arith.constant 0 : i32
    %c0_i32_2 = arith.constant 0 : i32
    return %c0_i32, %c0_i32_0, %c0_i32_1 : i32, i32, i32
  }
  func.func @transform_8(%arg0: i32) -> (i32, i32, i32) {
    %c0_i32 = arith.constant 0 : i32
    %c0_i32_0 = arith.constant 0 : i32
    %c0_i32_1 = arith.constant 0 : i32
    %c0_i32_2 = arith.constant 0 : i32
    return %c0_i32, %c0_i32_0, %c0_i32_1 : i32, i32, i32
  }
  func.func @transform_9(%arg0: i32) -> (i32, i32) {
    %c0_i32 = arith.constant 0 : i32
    %c0_i32_0 = arith.constant 0 : i32
    %c0_i32_1 = arith.constant 0 : i32
    return %c0_i32, %c0_i32_0 : i32, i32
  }
  func.func @transform_10(%arg0: i32) -> (i32, i32, i32) {
    %c0_i32 = arith.constant 0 : i32
    %c0_i32_0 = arith.constant 0 : i32
    %c0_i32_1 = arith.constant 0 : i32
    %c0_i32_2 = arith.constant 0 : i32
    return %c0_i32, %c0_i32_0, %c0_i32_1 : i32, i32, i32
  }
  func.func @transform_11(%arg0: i32) -> (i32, i32, i32) {
    %c0_i32 = arith.constant 0 : i32
    %c0_i32_0 = arith.constant 0 : i32
    %c0_i32_1 = arith.constant 0 : i32
    %c0_i32_2 = arith.constant 0 : i32
    return %c0_i32, %c0_i32_0, %c0_i32_1 : i32, i32, i32
  }
  func.func @transform_12(%arg0: i32) -> (i32, i32) {
    %c0_i32 = arith.constant 0 : i32
    %c0_i32_0 = arith.constant 0 : i32
    %c0_i32_1 = arith.constant 0 : i32
    return %c0_i32, %c0_i32_0 : i32, i32
  }
  func.func @transform_13(%arg0: i32) -> (i32, i32, i32) {
    %c0_i32 = arith.constant 0 : i32
    %c0_i32_0 = arith.constant 0 : i32
    %c0_i32_1 = arith.constant 0 : i32
    %c0_i32_2 = arith.constant 0 : i32
    return %c0_i32, %c0_i32_0, %c0_i32_1 : i32, i32, i32
  }
  func.func @transform_14(%arg0: i32) -> (i32, i32, i32) {
    %c0_i32 = arith.constant 0 : i32
    %c0_i32_0 = arith.constant 0 : i32
    %c0_i32_1 = arith.constant 0 : i32
    %c0_i32_2 = arith.constant 0 : i32
    return %c0_i32, %c0_i32_0, %c0_i32_1 : i32, i32, i32
  }
  func.func @transform_15(%arg0: i32) -> (i32, i32) {
    %c0_i32 = arith.constant 0 : i32
    %c0_i32_0 = arith.constant 0 : i32
    %c0_i32_1 = arith.constant 0 : i32
    return %c0_i32, %c0_i32_0 : i32, i32
  }
  func.func @transform_16(%arg0: i32) -> (i32, i32, i32) {
    %c0_i32 = arith.constant 0 : i32
    %c0_i32_0 = arith.constant 0 : i32
    %c0_i32_1 = arith.constant 0 : i32
    %c0_i32_2 = arith.constant 0 : i32
    return %c0_i32, %c0_i32_0, %c0_i32_1 : i32, i32, i32
  }
  func.func @transform_17(%arg0: i32) -> (i32, i32, i32) {
    %c0_i32 = arith.constant 0 : i32
    %c0_i32_0 = arith.constant 0 : i32
    %c0_i32_1 = arith.constant 0 : i32
    %c0_i32_2 = arith.constant 0 : i32
    return %c0_i32, %c0_i32_0, %c0_i32_1 : i32, i32, i32
  }
  func.func @transform_18(%arg0: i32) -> (i32, i32) {
    %c0_i32 = arith.constant 0 : i32
    %c0_i32_0 = arith.constant 0 : i32
    %c0_i32_1 = arith.constant 0 : i32
    return %c0_i32, %c0_i32_0 : i32, i32
  }
  func.func @transform_19(%arg0: i32) -> (i32, i32, i32) {
    %c0_i32 = arith.constant 0 : i32
    %c0_i32_0 = arith.constant 0 : i32
    %c0_i32_1 = arith.constant 0 : i32
    return %arg0, %c0_i32, %c0_i32_0 : i32, i32, i32
  }
}

</mosaic_0001>

<llo_original>
// kernel: forward.1
$region0: #{forward.1}
  #allocation0 [shape = 'u32[]', space=smem, size = 0x4, offset = 0x4, fixed_abs, tag = 'smem constant byte address 0x4 - core index']
  #allocation1 [shape = 'u32[144,128]{1,0:T(1,128)}', space=vmem, size = 0x12000, scoped, tag = 'internal scratch']
  %s0 = inlined_call_operand.vmem [shape: bf16[2,32,96], index: 0, kind: input, shape index: {}]
  %s1 = inlined_call_operand.vmem [shape: bf16[3,32,32], index: 1, kind: input, shape index: {}]
  %s2 = inlined_call_operand.vmem [shape: bf16[3,96,256], index: 2, kind: input, shape index: {}]
  %s3 = inlined_call_operand.vmem [shape: f32[1,256], index: 3, kind: input, shape index: {}]
  %s4 = inlined_call_operand.vmem [shape: bf16[3,16,32], index: 4, kind: input, shape index: {}]
  %s5 = inlined_call_operand.vmem [shape: bf16[3,256,128], index: 5, kind: input, shape index: {}]
  %s6 = inlined_call_operand.vmem [shape: f32[1,128], index: 6, kind: input, shape index: {}]
  %s7 = inlined_call_operand.vmem [shape: bf16[3,8,16], index: 7, kind: input, shape index: {}]
  %s8 = inlined_call_operand.vmem [shape: bf16[3,128,128], index: 8, kind: input, shape index: {}]
  %s9 = inlined_call_operand.vmem [shape: f32[1,128], index: 9, kind: input, shape index: {}]
  %s10 = inlined_call_operand.vmem [shape: bf16[3,4,8], index: 10, kind: input, shape index: {}]
  %s11 = inlined_call_operand.vmem [shape: bf16[3,128,128], index: 11, kind: input, shape index: {}]
  %s12 = inlined_call_operand.vmem [shape: f32[1,128], index: 12, kind: input, shape index: {}]
  %s13 = inlined_call_operand.vmem [shape: bf16[4,3,4], index: 13, kind: input, shape index: {}]
  %s14 = inlined_call_operand.vmem [shape: bf16[4,128,192], index: 14, kind: input, shape index: {}]
  %s15 = inlined_call_operand.vmem [shape: f32[1,192], index: 15, kind: input, shape index: {}]
  %s16 = inlined_call_operand.vmem [shape: bf16[4,2,3], index: 16, kind: input, shape index: {}]
  %s17 = inlined_call_operand.vmem [shape: bf16[4,192,2], index: 17, kind: input, shape index: {}]
  %s18 = inlined_call_operand.vmem [shape: f32[1,2], index: 18, kind: input, shape index: {}]
  %s19 = inlined_call_operand.hbm [shape: f32[2,2,2], index: 19, kind: output, shape index: {}]
  %s20 = sld [smem:[#allocation0]]
  $region109: #{forward.1} parent=0
    _
  %s22 = ssub.s32 1, %s20
  %s23 = scalar_select 0, %s22, %s20
  $region1: #{forward.1} parent=0
    #allocation2 [shape = 'u8[2048]{0}', space=vmem, size = 0x800, scoped, tag = 'output window, operand 0']
    #allocation3 [shape = 's32[2]{0}', space=sflag, size = 0x8, scoped, tag = 'scoped memory for forward.1']
    %24 = vsyncpa [#allocation3], 0
    %s25 = scalar_lea.sflag [#allocation3], 1
    %26 = vsyncpa %s25, 0
    loop: start=0, step=1, limit=4
    $region2: #{forward.1} parent=1 // loop_pre_header
      _
    $region3: #{forward.1} parent=1 // loop_header
      %s28 = sphi 0, %s32
      %p29 = scmp.ge.s32.totalorder %s28, 4
      %s38 = sphi 0, %s40
      %s41 = sphi 0, %s38
      %s42 = sphi 0, %s41
      %s58 = sphi 0, %s42
      %s62 = sphi 0, %s62
      %s64 = sphi 0, %s62
      %s65 = sphi 0, %s64
      %s79 = sphi 0, %s65
      %s83 = sphi 0, %s83
      %s85 = sphi 0, %s83
      %s86 = sphi 0, %s85
      %s100 = sphi 0, %s86
      %s104 = sphi 0, %s104
      %s106 = sphi 0, %s104
      %s107 = sphi 0, %s106
      %s121 = sphi 0, %s107
      %s125 = sphi 0, %s125
      %s127 = sphi 0, %s125
      %s128 = sphi 0, %s127
      %s142 = sphi 0, %s128
      %s146 = sphi 0, %s146
      %s148 = sphi 0, %s146
      %s149 = sphi 0, %s148
      %s163 = sphi 0, %s149
      %s167 = sphi 0, %s167
      %s169 = sphi 0, %s167
      %s170 = sphi 0, %s169
      %s184 = sphi 0, %s170
      %s188 = sphi 0, %s188
      %s190 = sphi 0, %s188
      %s191 = sphi 0, %s190
      %s205 = sphi 0, %s191
      %s209 = sphi 0, %s209
      %s211 = sphi 0, %s209
      %s212 = sphi 0, %s211
      %s226 = sphi 0, %s212
      %s230 = sphi 0, %s230
      %s232 = sphi 0, %s230
      %s233 = sphi 0, %s232
      %s247 = sphi 0, %s233
      %s251 = sphi 0, %s251
      %s253 = sphi 0, %s251
      %s254 = sphi 0, %s253
      %s268 = sphi 0, %s254
      %s272 = sphi 0, %s272
      %s274 = sphi 0, %s272
      %s275 = sphi 0, %s274
      %s289 = sphi 0, %s275
      %s293 = sphi 0, %s293
      %s295 = sphi 0, %s293
      %s296 = sphi 0, %s295
      %s310 = sphi 0, %s296
      %s314 = sphi 0, %s314
      %s316 = sphi 0, %s314
      %s317 = sphi 0, %s316
      %s331 = sphi 0, %s317
      %s335 = sphi 0, %s335
      %s337 = sphi 0, %s335
      %s338 = sphi 0, %s337
      %s352 = sphi 0, %s338
      %s356 = sphi 0, %s356
      %s358 = sphi 0, %s356
      %s359 = sphi 0, %s358
      %s373 = sphi 0, %s359
      %s377 = sphi 0, %s377
      %s379 = sphi 0, %s377
      %s380 = sphi 0, %s379
      %s394 = sphi 0, %s380
      %s398 = sphi 0, %s398
      %s400 = sphi 0, %s398
      %s401 = sphi 0, %s400
      %s415 = sphi 0, %s401
      %s419 = sphi 0, %s419
      %s421 = sphi 0, %s419
      %s422 = sphi 0, %s421
      %s436 = sphi 0, %s422
      %s442 = sphi 0, %s444
      %s445 = sphi 0, %s442
      %s446 = sphi 0, %s445
      %s462 = sphi 0, %s446
    $region4: #{forward.1} parent=1 // loop_header_branch
      %31 = sbr.rel (%p29) target = $region8
    $region5: #{forward.1} parent=1 // loop_body
      %s33 = ssub.s32 %s28, 1
      %s34 = ssub.s32 %s28, 2
      %s35 = sadd.s32 %s28, 1
      %s36 = ssub.s32 %s28, %s35
      %p37 = scmp.eq.s32.totalorder %s36, 0
      %s39 = sadd.s32 %s38, 1
      %s40 = scalar_select %p37, %s38, %s39
      %p43 = pneg %p37
      %p44 = scmp.eq.s32.totalorder %s28, 1
      %p45 = por %p43, %p44
      %p46 = scmp.ne.s32.totalorder %s38, %s41
      %p47 = scmp.eq.s32.totalorder %s28, 0
      %p48 = por %p46, %p47
      %p49 = scmp.ne.s32.totalorder %s38, %s41
      %p50 = scmp.eq.s32.totalorder %s33, 1
      %p51 = por %p49, %p50
      %p52 = scmp.ne.s32.totalorder %s41, %s42
      %p53 = scmp.eq.s32.totalorder %s33, 0
      %p54 = por %p52, %p53
      %p55 = scmp.ne.s32.totalorder %s41, %s42
      %p56 = scmp.eq.s32.totalorder %s34, 1
      %p57 = por %p55, %p56
      %p59 = scmp.ne.s32.totalorder %s42, %s58
      %p60 = scmp.eq.s32.totalorder %s34, 0
      %p61 = por %p59, %p60
      %s63 = sadd.s32 %s62, 1
      %p66 = scmp.eq.s32.totalorder %s28, 1
      %p67 = scmp.ne.s32.totalorder %s62, %s64
      %p68 = scmp.eq.s32.totalorder %s28, 0
      %p69 = por %p67, %p68
      %p70 = scmp.ne.s32.totalorder %s62, %s64
      %p71 = scmp.eq.s32.totalorder %s33, 1
      %p72 = por %p70, %p71
      %p73 = scmp.ne.s32.totalorder %s64, %s65
      %p74 = scmp.eq.s32.totalorder %s33, 0
      %p75 = por %p73, %p74
      %p76 = scmp.ne.s32.totalorder %s64, %s65
      %p77 = scmp.eq.s32.totalorder %s34, 1
      %p78 = por %p76, %p77
      %p80 = scmp.ne.s32.totalorder %s65, %s79
      %p81 = scmp.eq.s32.totalorder %s34, 0
      %p82 = por %p80, %p81
      %s84 = sadd.s32 %s83, 1
      %p87 = scmp.eq.s32.totalorder %s28, 1
      %p88 = scmp.ne.s32.totalorder %s83, %s85
      %p89 = scmp.eq.s32.totalorder %s28, 0
      %p90 = por %p88, %p89
      %p91 = scmp.ne.s32.totalorder %s83, %s85
      %p92 = scmp.eq.s32.totalorder %s33, 1
      %p93 = por %p91, %p92
      %p94 = scmp.ne.s32.totalorder %s85, %s86
      %p95 = scmp.eq.s32.totalorder %s33, 0
      %p96 = por %p94, %p95
      %p97 = scmp.ne.s32.totalorder %s85, %s86
      %p98 = scmp.eq.s32.totalorder %s34, 1
      %p99 = por %p97, %p98
      %p101 = scmp.ne.s32.totalorder %s86, %s100
      %p102 = scmp.eq.s32.totalorder %s34, 0
      %p103 = por %p101, %p102
      %s105 = sadd.s32 %s104, 1
      %p108 = scmp.eq.s32.totalorder %s28, 1
      %p109 = scmp.ne.s32.totalorder %s104, %s106
      %p110 = scmp.eq.s32.totalorder %s28, 0
      %p111 = por %p109, %p110
      %p112 = scmp.ne.s32.totalorder %s104, %s106
      %p113 = scmp.eq.s32.totalorder %s33, 1
      %p114 = por %p112, %p113
      %p115 = scmp.ne.s32.totalorder %s106, %s107
      %p116 = scmp.eq.s32.totalorder %s33, 0
      %p117 = por %p115, %p116
      %p118 = scmp.ne.s32.totalorder %s106, %s107
      %p119 = scmp.eq.s32.totalorder %s34, 1
      %p120 = por %p118, %p119
      %p122 = scmp.ne.s32.totalorder %s107, %s121
      %p123 = scmp.eq.s32.totalorder %s34, 0
      %p124 = por %p122, %p123
      %s126 = sadd.s32 %s125, 1
      %p129 = scmp.eq.s32.totalorder %s28, 1
      %p130 = scmp.ne.s32.totalorder %s125, %s127
      %p131 = scmp.eq.s32.totalorder %s28, 0
      %p132 = por %p130, %p131
      %p133 = scmp.ne.s32.totalorder %s125, %s127
      %p134 = scmp.eq.s32.totalorder %s33, 1
      %p135 = por %p133, %p134
      %p136 = scmp.ne.s32.totalorder %s127, %s128
      %p137 = scmp.eq.s32.totalorder %s33, 0
      %p138 = por %p136, %p137
      %p139 = scmp.ne.s32.totalorder %s127, %s128
      %p140 = scmp.eq.s32.totalorder %s34, 1
      %p141 = por %p139, %p140
      %p143 = scmp.ne.s32.totalorder %s128, %s142
      %p144 = scmp.eq.s32.totalorder %s34, 0
      %p145 = por %p143, %p144
      %s147 = sadd.s32 %s146, 1
      %p150 = scmp.eq.s32.totalorder %s28, 1
      %p151 = scmp.ne.s32.totalorder %s146, %s148
      %p152 = scmp.eq.s32.totalorder %s28, 0
      %p153 = por %p151, %p152
      %p154 = scmp.ne.s32.totalorder %s146, %s148
      %p155 = scmp.eq.s32.totalorder %s33, 1
      %p156 = por %p154, %p155
      %p157 = scmp.ne.s32.totalorder %s148, %s149
      %p158 = scmp.eq.s32.totalorder %s33, 0
      %p159 = por %p157, %p158
      %p160 = scmp.ne.s32.totalorder %s148, %s149
      %p161 = scmp.eq.s32.totalorder %s34, 1
      %p162 = por %p160, %p161
      %p164 = scmp.ne.s32.totalorder %s149, %s163
      %p165 = scmp.eq.s32.totalorder %s34, 0
      %p166 = por %p164, %p165
      %s168 = sadd.s32 %s167, 1
      %p171 = scmp.eq.s32.totalorder %s28, 1
      %p172 = scmp.ne.s32.totalorder %s167, %s169
      %p173 = scmp.eq.s32.totalorder %s28, 0
      %p174 = por %p172, %p173
      %p175 = scmp.ne.s32.totalorder %s167, %s169
      %p176 = scmp.eq.s32.totalorder %s33, 1
      %p177 = por %p175, %p176
      %p178 = scmp.ne.s32.totalorder %s169, %s170
      %p179 = scmp.eq.s32.totalorder %s33, 0
      %p180 = por %p178, %p179
      %p181 = scmp.ne.s32.totalorder %s169, %s170
      %p182 = scmp.eq.s32.totalorder %s34, 1
      %p183 = por %p181, %p182
      %p185 = scmp.ne.s32.totalorder %s170, %s184
      %p186 = scmp.eq.s32.totalorder %s34, 0
      %p187 = por %p185, %p186
      %s189 = sadd.s32 %s188, 1
      %p192 = scmp.eq.s32.totalorder %s28, 1
      %p193 = scmp.ne.s32.totalorder %s188, %s190
      %p194 = scmp.eq.s32.totalorder %s28, 0
      %p195 = por %p193, %p194
      %p196 = scmp.ne.s32.totalorder %s188, %s190
      %p197 = scmp.eq.s32.totalorder %s33, 1
      %p198 = por %p196, %p197
      %p199 = scmp.ne.s32.totalorder %s190, %s191
      %p200 = scmp.eq.s32.totalorder %s33, 0
      %p201 = por %p199, %p200
      %p202 = scmp.ne.s32.totalorder %s190, %s191
      %p203 = scmp.eq.s32.totalorder %s34, 1
      %p204 = por %p202, %p203
      %p206 = scmp.ne.s32.totalorder %s191, %s205
      %p207 = scmp.eq.s32.totalorder %s34, 0
      %p208 = por %p206, %p207
      %s210 = sadd.s32 %s209, 1
      %p213 = scmp.eq.s32.totalorder %s28, 1
      %p214 = scmp.ne.s32.totalorder %s209, %s211
      %p215 = scmp.eq.s32.totalorder %s28, 0
      %p216 = por %p214, %p215
      %p217 = scmp.ne.s32.totalorder %s209, %s211
      %p218 = scmp.eq.s32.totalorder %s33, 1
      %p219 = por %p217, %p218
      %p220 = scmp.ne.s32.totalorder %s211, %s212
      %p221 = scmp.eq.s32.totalorder %s33, 0
      %p222 = por %p220, %p221
      %p223 = scmp.ne.s32.totalorder %s211, %s212
      %p224 = scmp.eq.s32.totalorder %s34, 1
      %p225 = por %p223, %p224
      %p227 = scmp.ne.s32.totalorder %s212, %s226
      %p228 = scmp.eq.s32.totalorder %s34, 0
      %p229 = por %p227, %p228
      %s231 = sadd.s32 %s230, 1
      %p234 = scmp.eq.s32.totalorder %s28, 1
      %p235 = scmp.ne.s32.totalorder %s230, %s232
      %p236 = scmp.eq.s32.totalorder %s28, 0
      %p237 = por %p235, %p236
      %p238 = scmp.ne.s32.totalorder %s230, %s232
      %p239 = scmp.eq.s32.totalorder %s33, 1
      %p240 = por %p238, %p239
      %p241 = scmp.ne.s32.totalorder %s232, %s233
      %p242 = scmp.eq.s32.totalorder %s33, 0
      %p243 = por %p241, %p242
      %p244 = scmp.ne.s32.totalorder %s232, %s233
      %p245 = scmp.eq.s32.totalorder %s34, 1
      %p246 = por %p244, %p245
      %p248 = scmp.ne.s32.totalorder %s233, %s247
      %p249 = scmp.eq.s32.totalorder %s34, 0
      %p250 = por %p248, %p249
      %s252 = sadd.s32 %s251, 1
      %p255 = scmp.eq.s32.totalorder %s28, 1
      %p256 = scmp.ne.s32.totalorder %s251, %s253
      %p257 = scmp.eq.s32.totalorder %s28, 0
      %p258 = por %p256, %p257
      %p259 = scmp.ne.s32.totalorder %s251, %s253
      %p260 = scmp.eq.s32.totalorder %s33, 1
      %p261 = por %p259, %p260
      %p262 = scmp.ne.s32.totalorder %s253, %s254
      %p263 = scmp.eq.s32.totalorder %s33, 0
      %p264 = por %p262, %p263
      %p265 = scmp.ne.s32.totalorder %s253, %s254
      %p266 = scmp.eq.s32.totalorder %s34, 1
      %p267 = por %p265, %p266
      %p269 = scmp.ne.s32.totalorder %s254, %s268
      %p270 = scmp.eq.s32.totalorder %s34, 0
      %p271 = por %p269, %p270
      %s273 = sadd.s32 %s272, 1
      %p276 = scmp.eq.s32.totalorder %s28, 1
      %p277 = scmp.ne.s32.totalorder %s272, %s274
      %p278 = scmp.eq.s32.totalorder %s28, 0
      %p279 = por %p277, %p278
      %p280 = scmp.ne.s32.totalorder %s272, %s274
      %p281 = scmp.eq.s32.totalorder %s33, 1
      %p282 = por %p280, %p281
      %p283 = scmp.ne.s32.totalorder %s274, %s275
      %p284 = scmp.eq.s32.totalorder %s33, 0
      %p285 = por %p283, %p284
      %p286 = scmp.ne.s32.totalorder %s274, %s275
      %p287 = scmp.eq.s32.totalorder %s34, 1
      %p288 = por %p286, %p287
      %p290 = scmp.ne.s32.totalorder %s275, %s289
      %p291 = scmp.eq.s32.totalorder %s34, 0
      %p292 = por %p290, %p291
      %s294 = sadd.s32 %s293, 1
      %p297 = scmp.eq.s32.totalorder %s28, 1
      %p298 = scmp.ne.s32.totalorder %s293, %s295
      %p299 = scmp.eq.s32.totalorder %s28, 0
      %p300 = por %p298, %p299
      %p301 = scmp.ne.s32.totalorder %s293, %s295
      %p302 = scmp.eq.s32.totalorder %s33, 1
      %p303 = por %p301, %p302
      %p304 = scmp.ne.s32.totalorder %s295, %s296
      %p305 = scmp.eq.s32.totalorder %s33, 0
      %p306 = por %p304, %p305
      %p307 = scmp.ne.s32.totalorder %s295, %s296
      %p308 = scmp.eq.s32.totalorder %s34, 1
      %p309 = por %p307, %p308
      %p311 = scmp.ne.s32.totalorder %s296, %s310
      %p312 = scmp.eq.s32.totalorder %s34, 0
      %p313 = por %p311, %p312
      %s315 = sadd.s32 %s314, 1
      %p318 = scmp.eq.s32.totalorder %s28, 1
      %p319 = scmp.ne.s32.totalorder %s314, %s316
      %p320 = scmp.eq.s32.totalorder %s28, 0
      %p321 = por %p319, %p320
      %p322 = scmp.ne.s32.totalorder %s314, %s316
      %p323 = scmp.eq.s32.totalorder %s33, 1
      %p324 = por %p322, %p323
      %p325 = scmp.ne.s32.totalorder %s316, %s317
      %p326 = scmp.eq.s32.totalorder %s33, 0
      %p327 = por %p325, %p326
      %p328 = scmp.ne.s32.totalorder %s316, %s317
      %p329 = scmp.eq.s32.totalorder %s34, 1
      %p330 = por %p328, %p329
      %p332 = scmp.ne.s32.totalorder %s317, %s331
      %p333 = scmp.eq.s32.totalorder %s34, 0
      %p334 = por %p332, %p333
      %s336 = sadd.s32 %s335, 1
      %p339 = scmp.eq.s32.totalorder %s28, 1
      %p340 = scmp.ne.s32.totalorder %s335, %s337
      %p341 = scmp.eq.s32.totalorder %s28, 0
      %p342 = por %p340, %p341
      %p343 = scmp.ne.s32.totalorder %s335, %s337
      %p344 = scmp.eq.s32.totalorder %s33, 1
      %p345 = por %p343, %p344
      %p346 = scmp.ne.s32.totalorder %s337, %s338
      %p347 = scmp.eq.s32.totalorder %s33, 0
      %p348 = por %p346, %p347
      %p349 = scmp.ne.s32.totalorder %s337, %s338
      %p350 = scmp.eq.s32.totalorder %s34, 1
      %p351 = por %p349, %p350
      %p353 = scmp.ne.s32.totalorder %s338, %s352
      %p354 = scmp.eq.s32.totalorder %s34, 0
      %p355 = por %p353, %p354
      %s357 = sadd.s32 %s356, 1
      %p360 = scmp.eq.s32.totalorder %s28, 1
      %p361 = scmp.ne.s32.totalorder %s356, %s358
      %p362 = scmp.eq.s32.totalorder %s28, 0
      %p363 = por %p361, %p362
      %p364 = scmp.ne.s32.totalorder %s356, %s358
      %p365 = scmp.eq.s32.totalorder %s33, 1
      %p366 = por %p364, %p365
      %p367 = scmp.ne.s32.totalorder %s358, %s359
      %p368 = scmp.eq.s32.totalorder %s33, 0
      %p369 = por %p367, %p368
      %p370 = scmp.ne.s32.totalorder %s358, %s359
      %p371 = scmp.eq.s32.totalorder %s34, 1
      %p372 = por %p370, %p371
      %p374 = scmp.ne.s32.totalorder %s359, %s373
      %p375 = scmp.eq.s32.totalorder %s34, 0
      %p376 = por %p374, %p375
      %s378 = sadd.s32 %s377, 1
      %p381 = scmp.eq.s32.totalorder %s28, 1
      %p382 = scmp.ne.s32.totalorder %s377, %s379
      %p383 = scmp.eq.s32.totalorder %s28, 0
      %p384 = por %p382, %p383
      %p385 = scmp.ne.s32.totalorder %s377, %s379
      %p386 = scmp.eq.s32.totalorder %s33, 1
      %p387 = por %p385, %p386
      %p388 = scmp.ne.s32.totalorder %s379, %s380
      %p389 = scmp.eq.s32.totalorder %s33, 0
      %p390 = por %p388, %p389
      %p391 = scmp.ne.s32.totalorder %s379, %s380
      %p392 = scmp.eq.s32.totalorder %s34, 1
      %p393 = por %p391, %p392
      %p395 = scmp.ne.s32.totalorder %s380, %s394
      %p396 = scmp.eq.s32.totalorder %s34, 0
      %p397 = por %p395, %p396
      %s399 = sadd.s32 %s398, 1
      %p402 = scmp.eq.s32.totalorder %s28, 1
      %p403 = scmp.ne.s32.totalorder %s398, %s400
      %p404 = scmp.eq.s32.totalorder %s28, 0
      %p405 = por %p403, %p404
      %p406 = scmp.ne.s32.totalorder %s398, %s400
      %p407 = scmp.eq.s32.totalorder %s33, 1
      %p408 = por %p406, %p407
      %p409 = scmp.ne.s32.totalorder %s400, %s401
      %p410 = scmp.eq.s32.totalorder %s33, 0
      %p411 = por %p409, %p410
      %p412 = scmp.ne.s32.totalorder %s400, %s401
      %p413 = scmp.eq.s32.totalorder %s34, 1
      %p414 = por %p412, %p413
      %p416 = scmp.ne.s32.totalorder %s401, %s415
      %p417 = scmp.eq.s32.totalorder %s34, 0
      %p418 = por %p416, %p417
      %s420 = sadd.s32 %s419, 1
      %p423 = scmp.eq.s32.totalorder %s28, 1
      %p424 = scmp.ne.s32.totalorder %s419, %s421
      %p425 = scmp.eq.s32.totalorder %s28, 0
      %p426 = por %p424, %p425
      %p427 = scmp.ne.s32.totalorder %s419, %s421
      %p428 = scmp.eq.s32.totalorder %s33, 1
      %p429 = por %p427, %p428
      %p430 = scmp.ne.s32.totalorder %s421, %s422
      %p431 = scmp.eq.s32.totalorder %s33, 0
      %p432 = por %p430, %p431
      %p433 = scmp.ne.s32.totalorder %s421, %s422
      %p434 = scmp.eq.s32.totalorder %s34, 1
      %p435 = por %p433, %p434
      %p437 = scmp.ne.s32.totalorder %s422, %s436
      %p438 = scmp.eq.s32.totalorder %s34, 0
      %p439 = por %p437, %p438
      %s440 = ssub.s32 %s28, %s35
      %p441 = scmp.eq.s32.totalorder %s440, 0
      %s443 = sadd.s32 %s442, 1
      %s444 = scalar_select %p441, %s442, %s443
      %p447 = pneg %p441
      %p448 = scmp.eq.s32.totalorder %s28, 1
      %p449 = por %p447, %p448
      %p450 = scmp.ne.s32.totalorder %s442, %s445
      %p451 = scmp.eq.s32.totalorder %s28, 0
      %p452 = por %p450, %p451
      %p453 = scmp.ne.s32.totalorder %s442, %s445
      %p454 = scmp.eq.s32.totalorder %s33, 1
      %p455 = por %p453, %p454
      %p456 = scmp.ne.s32.totalorder %s445, %s446
      %p457 = scmp.eq.s32.totalorder %s33, 0
      %p458 = por %p456, %p457
      %p459 = scmp.ne.s32.totalorder %s445, %s446
      %p460 = scmp.eq.s32.totalorder %s34, 1
      %p461 = por %p459, %p460
      %p463 = scmp.ne.s32.totalorder %s446, %s462
      %p464 = scmp.eq.s32.totalorder %s34, 0
      %p465 = por %p463, %p464
      %p466 = scmp.le.s32.totalorder 1, %s28
      %p467 = scmp.lt.s32.totalorder %s28, 3
      %p468 = pnand %p466, %p467
      %p469 = pneg %p468
      // Predicated region
      $region9: #{forward.1} parent=5 // pred_check
        _
      $region10: #{forward.1} parent=5 // pred_check_branch
        %471 = sbr.rel (%p468) target = $region12
      $region11: #{forward.1} parent=5 // pred_region
        %s472 = ssub.s32 %s28, 1
        // Predicated region
        $region13: #{forward.1} parent=11 // pred_check
          %p473 = pneg %p75
        $region14: #{forward.1} parent=11 // pred_check_branch
          %475 = sbr.rel (%p473) target = $region16
        $region15: #{forward.1} parent=11 // pred_region
          _
        $region16: #{forward.1} parent=11 // pred_fallthru
          _
        // Predicated region
        $region17: #{forward.1} parent=11 // pred_check
          %p476 = pneg %p96
        $region18: #{forward.1} parent=11 // pred_check_branch
          %478 = sbr.rel (%p476) target = $region20
        $region19: #{forward.1} parent=11 // pred_region
          _
        $region20: #{forward.1} parent=11 // pred_fallthru
          _
        // Predicated region
        $region21: #{forward.1} parent=11 // pred_check
          %p479 = pneg %p117
        $region22: #{forward.1} parent=11 // pred_check_branch
          %481 = sbr.rel (%p479) target = $region24
        $region23: #{forward.1} parent=11 // pred_region
          _
        $region24: #{forward.1} parent=11 // pred_fallthru
          _
        // Predicated region
        $region25: #{forward.1} parent=11 // pred_check
          %p482 = pneg %p138
        $region26: #{forward.1} parent=11 // pred_check_branch
          %484 = sbr.rel (%p482) target = $region28
        $region27: #{forward.1} parent=11 // pred_region
          _
        $region28: #{forward.1} parent=11 // pred_fallthru
          _
        // Predicated region
        $region29: #{forward.1} parent=11 // pred_check
          %p485 = pneg %p159
        $region30: #{forward.1} parent=11 // pred_check_branch
          %487 = sbr.rel (%p485) target = $region32
        $region31: #{forward.1} parent=11 // pred_region
          _
        $region32: #{forward.1} parent=11 // pred_fallthru
          _
        // Predicated region
        $region33: #{forward.1} parent=11 // pred_check
          %p488 = pneg %p180
        $region34: #{forward.1} parent=11 // pred_check_branch
          %490 = sbr.rel (%p488) target = $region36
        $region35: #{forward.1} parent=11 // pred_region
          _
        $region36: #{forward.1} parent=11 // pred_fallthru
          _
        // Predicated region
        $region37: #{forward.1} parent=11 // pred_check
          %p491 = pneg %p201
        $region38: #{forward.1} parent=11 // pred_check_branch
          %493 = sbr.rel (%p491) target = $region40
        $region39: #{forward.1} parent=11 // pred_region
          _
        $region40: #{forward.1} parent=11 // pred_fallthru
          _
        // Predicated region
        $region41: #{forward.1} parent=11 // pred_check
          %p494 = pneg %p222
        $region42: #{forward.1} parent=11 // pred_check_branch
          %496 = sbr.rel (%p494) target = $region44
        $region43: #{forward.1} parent=11 // pred_region
          _
        $region44: #{forward.1} parent=11 // pred_fallthru
          _
        // Predicated region
        $region45: #{forward.1} parent=11 // pred_check
          %p497 = pneg %p243
        $region46: #{forward.1} parent=11 // pred_check_branch
          %499 = sbr.rel (%p497) target = $region48
        $region47: #{forward.1} parent=11 // pred_region
          _
        $region48: #{forward.1} parent=11 // pred_fallthru
          _
        // Predicated region
        $region49: #{forward.1} parent=11 // pred_check
          %p500 = pneg %p264
        $region50: #{forward.1} parent=11 // pred_check_branch
          %502 = sbr.rel (%p500) target = $region52
        $region51: #{forward.1} parent=11 // pred_region
          _
        $region52: #{forward.1} parent=11 // pred_fallthru
          _
        // Predicated region
        $region53: #{forward.1} parent=11 // pred_check
          %p503 = pneg %p285
        $region54: #{forward.1} parent=11 // pred_check_branch
          %505 = sbr.rel (%p503) target = $region56
        $region55: #{forward.1} parent=11 // pred_region
          _
        $region56: #{forward.1} parent=11 // pred_fallthru
          _
        // Predicated region
        $region57: #{forward.1} parent=11 // pred_check
          %p506 = pneg %p306
        $region58: #{forward.1} parent=11 // pred_check_branch
          %508 = sbr.rel (%p506) target = $region60
        $region59: #{forward.1} parent=11 // pred_region
          _
        $region60: #{forward.1} parent=11 // pred_fallthru
          _
        // Predicated region
        $region61: #{forward.1} parent=11 // pred_check
          %p509 = pneg %p327
        $region62: #{forward.1} parent=11 // pred_check_branch
          %511 = sbr.rel (%p509) target = $region64
        $region63: #{forward.1} parent=11 // pred_region
          _
        $region64: #{forward.1} parent=11 // pred_fallthru
          _
        // Predicated region
        $region65: #{forward.1} parent=11 // pred_check
          %p512 = pneg %p348
        $region66: #{forward.1} parent=11 // pred_check_branch
          %514 = sbr.rel (%p512) target = $region68
        $region67: #{forward.1} parent=11 // pred_region
          _
        $region68: #{forward.1} parent=11 // pred_fallthru
          _
        // Predicated region
        $region69: #{forward.1} parent=11 // pred_check
          %p515 = pneg %p369
        $region70: #{forward.1} parent=11 // pred_check_branch
          %517 = sbr.rel (%p515) target = $region72
        $region71: #{forward.1} parent=11 // pred_region
          _
        $region72: #{forward.1} parent=11 // pred_fallthru
          _
        // Predicated region
        $region73: #{forward.1} parent=11 // pred_check
          %p518 = pneg %p390
        $region74: #{forward.1} parent=11 // pred_check_branch
          %520 = sbr.rel (%p518) target = $region76
        $region75: #{forward.1} parent=11 // pred_region
          _
        $region76: #{forward.1} parent=11 // pred_fallthru
          _
        // Predicated region
        $region77: #{forward.1} parent=11 // pred_check
          %p521 = pneg %p411
        $region78: #{forward.1} parent=11 // pred_check_branch
          %523 = sbr.rel (%p521) target = $region80
        $region79: #{forward.1} parent=11 // pred_region
          _
        $region80: #{forward.1} parent=11 // pred_fallthru
          _
        // Predicated region
        $region81: #{forward.1} parent=11 // pred_check
          %p524 = pneg %p432
        $region82: #{forward.1} parent=11 // pred_check_branch
          %526 = sbr.rel (%p524) target = $region84
        $region83: #{forward.1} parent=11 // pred_region
          _
        $region84: #{forward.1} parent=11 // pred_fallthru
          _
      $region12: #{forward.1} parent=5 // pred_fallthru
        _
      %p527 = scmp.lt.s32.totalorder %s28, 2
      // Predicated region
      $region85: #{forward.1} parent=5 // pred_check
        %p528 = pneg %p527
      $region86: #{forward.1} parent=5 // pred_check_branch
        %530 = sbr.rel (%p528) target = $region88
      $region87: #{forward.1} parent=5 // pred_region
        // Predicated region
        $region89: #{forward.1} parent=87 // pred_check
          %p531 = pneg %p48
        $region90: #{forward.1} parent=87 // pred_check_branch
          %533 = sbr.rel (%p531) target = $region92
        $region91: #{forward.1} parent=87 // pred_region
          %p534 = scmp.lt.s32.totalorder %s28, 1
          %s535 = scalar_select %p534, %s28, 1
          %s536 = smul.addr %s535, 4
          %s537 = smul.addr %s536, 4
          %s538 = scalar_lea.vmem %s0, %s537
        $region92: #{forward.1} parent=87 // pred_fallthru
          _
      $region88: #{forward.1} parent=5 // pred_fallthru
        _
      %p539 = scmp.le.s32.totalorder 1, %s28
      %p540 = scmp.lt.s32.totalorder %s28, 3
      %p541 = pnand %p539, %p540
      %p542 = pneg %p541
      // Predicated region
      $region93: #{forward.1} parent=5 // pred_check
        _
      $region94: #{forward.1} parent=5 // pred_check_branch
        %544 = sbr.rel (%p541) target = $region96
      $region95: #{forward.1} parent=5 // pred_region
        %s545 = ssub.s32 %s28, 1
        %p546 = scmp.lt.s32.totalorder %s33, 1
        %s547 = scalar_select %p546, %s33, 1
        %s548 = smul.addr %s547, 4
        %s549 = smul.addr %s548, 4
        %s550 = scalar_lea.vmem %s0, %s549
        %p551 = pneg %p54
        %p552 = pneg %p51
        %p553 = pneg %p75
        %p554 = pneg %p72
        %p555 = pneg %p96
        %p556 = pneg %p93
        %p557 = pneg %p117
        %p558 = pneg %p114
        %p559 = pneg %p138
        %p560 = pneg %p135
        %p561 = pneg %p159
        %p562 = pneg %p156
        %p563 = pneg %p180
        %p564 = pneg %p177
        %p565 = pneg %p201
        %p566 = pneg %p198
        %p567 = pneg %p222
        %p568 = pneg %p219
        %p569 = pneg %p243
        %p570 = pneg %p240
        %p571 = pneg %p264
        %p572 = pneg %p261
        %p573 = pneg %p285
        %p574 = pneg %p282
        %p575 = pneg %p306
        %p576 = pneg %p303
        %p577 = pneg %p327
        %p578 = pneg %p324
        %p579 = pneg %p348
        %p580 = pneg %p345
        %p581 = pneg %p369
        %p582 = pneg %p366
        %p583 = pneg %p390
        %p584 = pneg %p387
        %p585 = pneg %p411
        %p586 = pneg %p408
        %p587 = pneg %p432
        %p588 = pneg %p429
        %p589 = pneg %p458
        %p590 = pneg %p455
        %s591 = sand.u32 %s445, 1
        %s592 = scalar_lea.sflag [#allocation3], %s591
        %s593 = sand.u32 %s445, 1
        %s594 = smul.addr %s593, 2
        %s595 = scalar_lea.vmem [#allocation2], %s594
        %p596 = scmp.lt.s32.totalorder %s33, 1
        %s597 = scalar_select %p596, %s33, 1
        %s598 = smul.addr %s597, 4
        %s599 = smul.addr %s598, 4
        %s600 = scalar_lea.vmem %s0, %s599
        %v602 = vld [vmem:[%s600] sm:$0xf]
        %v603 = vld [vmem:[%s600 + $0x4] sm:$0xf]
        %v604 = vld [vmem:[%s600 + $0x8] sm:$0xf]
        %v605 = vld [vmem:[%s600 + $0xc] sm:$0xf]
        %v606 = vld [vmem:[%s1] sm:$0xf]
        %v607 = vld [vmem:[%s1 + $0x4] sm:$0xf]
        %v608 = vld [vmem:[%s1 + $0x8] sm:$0xf]
        %v609 = vld [vmem:[%s1 + $0xc] sm:$0xf]
        %v614 = vunpack.c.l.b16 %v606
        %v615 = vunpack.c.l.b16 %v607
        %v616 = vunpack.c.l.b16 %v608
        %v617 = vunpack.c.l.b16 %v609
        %v618 = vpack.c.b16 %v615, %v614
        %v619 = vpack.c.b16 %v617, %v616
        %v624 = vunpack.c.l.b16 %v602
        %v625 = vunpack.c.l.b16 %v603
        %v626 = vunpack.c.l.b16 %v604
        %v627 = vunpack.c.l.b16 %v605
        %v628 = vpack.c.b16 %v625, %v624
        %v629 = vpack.c.b16 %v627, %v626
        %vm632 = vcmask 261120
        %v634 = vsel %vm632, %v618, 0
        %v637 = vsel %vm632, %v619, 0
        %639 = vmatprep.subr.bf16.mxu0 0
        %640 = vmatpush1.bf16.msra.mxu0 %v628
        %641 = vmatprep.subr.bf16.mxu0 0
        %642 = vmatpush1.bf16.msra.mxu0 %v629
        %643 = vmatprep.subr.bf16.mxu0 0
        %644 = vmatpush1.bf16.msra.mxu0 0
        %645 = vmatprep.subr.bf16.mxu0 0
        %646 = vmatpush1.bf16.msra.mxu0 0
        %647 = vmatprep.subr.bf16.mxu0 0
        %648 = vmatpush1.bf16.msra.mxu0 0
        %649 = vmatprep.subr.bf16.mxu0 0
        %650 = vmatpush1.bf16.msra.mxu0 0
        %651 = vmatprep.subr.bf16.mxu0 0
        %652 = vmatpush1.bf16.msra.mxu0 0
        %653 = vmatprep.subr.bf16.mxu0 0
        %654 = vmatpush1.bf16.msra.mxu0 0
        %655 = vmatprep.subr.bf16.mxu0 0
        %656 = vmatpush1.bf16.msra.mxu0 0
        %657 = vmatprep.subr.bf16.mxu0 0
        %658 = vmatpush1.bf16.msra.mxu0 0
        %659 = vmatprep.subr.bf16.mxu0 0
        %660 = vmatpush1.bf16.msra.mxu0 0
        %661 = vmatprep.subr.bf16.mxu0 0
        %662 = vmatpush1.bf16.msra.mxu0 0
        %663 = vmatprep.subr.bf16.mxu0 0
        %664 = vmatpush1.bf16.msra.mxu0 0
        %665 = vmatprep.subr.bf16.mxu0 0
        %666 = vmatpush1.bf16.msra.mxu0 0
        %667 = vmatprep.subr.bf16.mxu0 0
        %668 = vmatpush1.bf16.msra.mxu0 0
        %669 = vmatprep.subr.bf16.mxu0 0
        %670 = vmatpush1.bf16.msra.mxu0 0
        %671 = vmatprep.mubr.bf16.mxu0 0
        %672 = vmatmul.mubr.bf16.gmra.mrb[0].mxu0 %v634
        %v673 = vpop.f32.mrb[0].mxu0
        %v674 = vadd.f32 0.0, %v673
        %v675 = vpop.f32.mrb[0].mxu0
        %v676 = vpop.f32.mrb[0].mxu0
        %v677 = vadd.f32 0.0, %v676
        %v678 = vpop.f32.mrb[0].mxu0
        %679 = vmatprep.mubr.bf16.mxu0 0
        %680 = vmatmul.mubr.bf16.gmra.mrb[0].mxu0 %v637
        %v681 = vpop.f32.mrb[0].mxu0
        %v682 = vadd.f32 0.0, %v681
        %v683 = vpop.f32.mrb[0].mxu0
        %v684 = vpop.f32.mrb[0].mxu0
        %v685 = vadd.f32 0.0, %v684
        %v686 = vpop.f32.mrb[0].mxu0
        %687 = vdwg.mxu0
        %v688 = vpack.c.bf16 %v677, %v674
        %v689 = vpack.c.bf16 %v685, %v682
        %v690 = vld [vmem:[%s2] sm:$0xff]
        %v691 = vld [vmem:[%s2 + $0x8] sm:$0xff]
        %v692 = vld [vmem:[%s2 + $0x10] sm:$0xff]
        %v693 = vld [vmem:[%s2 + $0x18] sm:$0xff]
        %v694 = vld [vmem:[%s2 + $0x20] sm:$0xff]
        %v695 = vld [vmem:[%s2 + $0x28] sm:$0xff]
        %v696 = vld [vmem:[%s2 + $0x30] sm:$0xff]
        %v697 = vld [vmem:[%s2 + $0x38] sm:$0xff]
        %v698 = vld [vmem:[%s2 + $0x40] sm:$0xff]
        %v699 = vld [vmem:[%s2 + $0x48] sm:$0xff]
        %v700 = vld [vmem:[%s2 + $0x50] sm:$0xff]
        %v701 = vld [vmem:[%s2 + $0x58] sm:$0xff]
        %s702 = scalar_lea.vmem %s1, 16
        %v703 = vld [vmem:[%s702] sm:$0xf]
        %v704 = vld [vmem:[%s702 + $0x4] sm:$0xf]
        %v705 = vld [vmem:[%s702 + $0x8] sm:$0xf]
        %v706 = vld [vmem:[%s702 + $0xc] sm:$0xf]
        %v711 = vunpack.c.l.b16 %v703
        %v712 = vunpack.c.l.b16 %v704
        %v713 = vunpack.c.l.b16 %v705
        %v714 = vunpack.c.l.b16 %v706
        %v715 = vpack.c.b16 %v712, %v711
        %v716 = vpack.c.b16 %v714, %v713
        %v718 = vsel %vm632, %v715, 0
        %v721 = vsel %vm632, %v716, 0
        %723 = vmatprep.subr.bf16.mxu0 0
        %724 = vmatpush1.bf16.msra.mxu0 %v628
        %725 = vmatprep.subr.bf16.mxu0 0
        %726 = vmatpush1.bf16.msra.mxu0 %v629
        %727 = vmatprep.subr.bf16.mxu0 0
        %728 = vmatpush1.bf16.msra.mxu0 0
        %729 = vmatprep.subr.bf16.mxu0 0
        %730 = vmatpush1.bf16.msra.mxu0 0
        %731 = vmatprep.subr.bf16.mxu0 0
        %732 = vmatpush1.bf16.msra.mxu0 0
        %733 = vmatprep.subr.bf16.mxu0 0
        %734 = vmatpush1.bf16.msra.mxu0 0
        %735 = vmatprep.subr.bf16.mxu0 0
        %736 = vmatpush1.bf16.msra.mxu0 0
        %737 = vmatprep.subr.bf16.mxu0 0
        %738 = vmatpush1.bf16.msra.mxu0 0
        %739 = vmatprep.subr.bf16.mxu0 0
        %740 = vmatpush1.bf16.msra.mxu0 0
        %741 = vmatprep.subr.bf16.mxu0 0
        %742 = vmatpush1.bf16.msra.mxu0 0
        %743 = vmatprep.subr.bf16.mxu0 0
        %744 = vmatpush1.bf16.msra.mxu0 0
        %745 = vmatprep.subr.bf16.mxu0 0
        %746 = vmatpush1.bf16.msra.mxu0 0
        %747 = vmatprep.subr.bf16.mxu0 0
        %748 = vmatpush1.bf16.msra.mxu0 0
        %749 = vmatprep.subr.bf16.mxu0 0
        %750 = vmatpush1.bf16.msra.mxu0 0
        %751 = vmatprep.subr.bf16.mxu0 0
        %752 = vmatpush1.bf16.msra.mxu0 0
        %753 = vmatprep.subr.bf16.mxu0 0
        %754 = vmatpush1.bf16.msra.mxu0 0
        %755 = vmatprep.mubr.bf16.mxu0 0
        %756 = vmatmul.mubr.bf16.gmra.mrb[0].mxu0 %v718
        %v757 = vpop.f32.mrb[0].mxu0
        %v758 = vadd.f32 0.0, %v757
        %v759 = vpop.f32.mrb[0].mxu0
        %v760 = vpop.f32.mrb[0].mxu0
        %v761 = vadd.f32 0.0, %v760
        %v762 = vpop.f32.mrb[0].mxu0
        %763 = vmatprep.mubr.bf16.mxu0 0
        %764 = vmatmul.mubr.bf16.gmra.mrb[0].mxu0 %v721
        %v765 = vpop.f32.mrb[0].mxu0
        %v766 = vadd.f32 0.0, %v765
        %v767 = vpop.f32.mrb[0].mxu0
        %v768 = vpop.f32.mrb[0].mxu0
        %v769 = vadd.f32 0.0, %v768
        %v770 = vpop.f32.mrb[0].mxu0
        %771 = vdwg.mxu0
        %v772 = vpack.c.bf16 %v761, %v758
        %v773 = vpack.c.bf16 %v769, %v766
        %s774 = scalar_lea.vmem %s2, 96
        %v775 = vld [vmem:[%s774] sm:$0xff]
        %v776 = vld [vmem:[%s774 + $0x8] sm:$0xff]
        %v777 = vld [vmem:[%s774 + $0x10] sm:$0xff]
        %v778 = vld [vmem:[%s774 + $0x18] sm:$0xff]
        %v779 = vld [vmem:[%s774 + $0x20] sm:$0xff]
        %v780 = vld [vmem:[%s774 + $0x28] sm:$0xff]
        %v781 = vld [vmem:[%s774 + $0x30] sm:$0xff]
        %v782 = vld [vmem:[%s774 + $0x38] sm:$0xff]
        %v783 = vld [vmem:[%s774 + $0x40] sm:$0xff]
        %v784 = vld [vmem:[%s774 + $0x48] sm:$0xff]
        %v785 = vld [vmem:[%s774 + $0x50] sm:$0xff]
        %v786 = vld [vmem:[%s774 + $0x58] sm:$0xff]
        %v799 = vunpack.c.l.b16 %v775
        %v800 = vunpack.c.h.b16 %v775
        %v801 = vunpack.c.l.b16 %v776
        %v802 = vunpack.c.h.b16 %v776
        %v803 = vunpack.c.l.b16 %v777
        %v804 = vunpack.c.h.b16 %v777
        %v805 = vunpack.c.l.b16 %v778
        %v806 = vunpack.c.h.b16 %v778
        %v807 = vunpack.c.l.b16 %v779
        %v808 = vunpack.c.h.b16 %v779
        %v809 = vunpack.c.l.b16 %v780
        %v810 = vunpack.c.h.b16 %v780
        %v811 = vunpack.c.l.b16 %v781
        %v812 = vunpack.c.h.b16 %v781
        %v813 = vunpack.c.l.b16 %v782
        %v814 = vunpack.c.h.b16 %v782
        %v815 = vunpack.c.l.b16 %v783
        %v816 = vunpack.c.h.b16 %v783
        %v817 = vunpack.c.l.b16 %v784
        %v818 = vunpack.c.h.b16 %v784
        %v819 = vunpack.c.l.b16 %v785
        %v820 = vunpack.c.h.b16 %v785
        %v821 = vunpack.c.l.b16 %v786
        %v822 = vunpack.c.h.b16 %v786
        %v823 = vpack.c.b16 %v801, %v799
        %v824 = vpack.c.b16 %v802, %v800
        %v825 = vpack.c.b16 %v805, %v803
        %v826 = vpack.c.b16 %v806, %v804
        %v827 = vpack.c.b16 %v809, %v807
        %v828 = vpack.c.b16 %v810, %v808
        %v829 = vpack.c.b16 %v813, %v811
        %v830 = vpack.c.b16 %v814, %v812
        %v831 = vpack.c.b16 %v817, %v815
        %v832 = vpack.c.b16 %v818, %v816
        %v833 = vpack.c.b16 %v821, %v819
        %v834 = vpack.c.b16 %v822, %v820
        %vm847 = vcmask 785408
        %v849 = vsel %vm847, %v772, 0
        %v852 = vsel %vm847, %v773, 0
        %854 = vmatprep.subr.bf16.mxu0 %v824
        %855 = vmatpush1.bf16.msra.mxu0 %v823
        %856 = vmatprep.subr.bf16.mxu0 %v826
        %857 = vmatpush1.bf16.msra.mxu0 %v825
        %858 = vmatprep.subr.bf16.mxu0 %v828
        %859 = vmatpush1.bf16.msra.mxu0 %v827
        %860 = vmatprep.subr.bf16.mxu0 %v830
        %861 = vmatpush1.bf16.msra.mxu0 %v829
        %862 = vmatprep.subr.bf16.mxu0 %v832
        %863 = vmatpush1.bf16.msra.mxu0 %v831
        %864 = vmatprep.subr.bf16.mxu0 %v834
        %865 = vmatpush1.bf16.msra.mxu0 %v833
        %866 = vmatprep.subr.bf16.mxu0 0
        %867 = vmatpush1.bf16.msra.mxu0 0
        %868 = vmatprep.subr.bf16.mxu0 0
        %869 = vmatpush1.bf16.msra.mxu0 0
        %870 = vmatprep.subr.bf16.mxu0 0
        %871 = vmatpush1.bf16.msra.mxu0 0
        %872 = vmatprep.subr.bf16.mxu0 0
        %873 = vmatpush1.bf16.msra.mxu0 0
        %874 = vmatprep.subr.bf16.mxu0 0
        %875 = vmatpush1.bf16.msra.mxu0 0
        %876 = vmatprep.subr.bf16.mxu0 0
        %877 = vmatpush1.bf16.msra.mxu0 0
        %878 = vmatprep.subr.bf16.mxu0 0
        %879 = vmatpush1.bf16.msra.mxu0 0
        %880 = vmatprep.subr.bf16.mxu0 0
        %881 = vmatpush1.bf16.msra.mxu0 0
        %882 = vmatprep.subr.bf16.mxu0 0
        %883 = vmatpush1.bf16.msra.mxu0 0
        %884 = vmatprep.subr.bf16.mxu0 0
        %885 = vmatpush1.bf16.msra.mxu0 0
        %886 = vmatprep.mubr.bf16.mxu0 0
        %887 = vmatmul.mubr.bf16.gmra.mrb[0].mxu0 %v849
        %v888 = vpop.f32.mrb[0].mxu0
        %v889 = vadd.f32 0.0, %v888
        %v890 = vpop.f32.mrb[0].mxu0
        %v891 = vadd.f32 0.0, %v890
        %v892 = vpop.f32.mrb[0].mxu0
        %v893 = vadd.f32 0.0, %v892
        %v894 = vpop.f32.mrb[0].mxu0
        %v895 = vadd.f32 0.0, %v894
        %896 = vmatprep.mubr.bf16.mxu0 0
        %897 = vmatmul.mubr.bf16.gmra.mrb[0].mxu0 %v852
        %v898 = vpop.f32.mrb[0].mxu0
        %v899 = vadd.f32 0.0, %v898
        %v900 = vpop.f32.mrb[0].mxu0
        %v901 = vadd.f32 0.0, %v900
        %v902 = vpop.f32.mrb[0].mxu0
        %v903 = vadd.f32 0.0, %v902
        %v904 = vpop.f32.mrb[0].mxu0
        %v905 = vadd.f32 0.0, %v904
        %906 = vdwg.mxu0
        %v919 = vunpack.c.l.b16 %v690
        %v920 = vunpack.c.h.b16 %v690
        %v921 = vunpack.c.l.b16 %v691
        %v922 = vunpack.c.h.b16 %v691
        %v923 = vunpack.c.l.b16 %v692
        %v924 = vunpack.c.h.b16 %v692
        %v925 = vunpack.c.l.b16 %v693
        %v926 = vunpack.c.h.b16 %v693
        %v927 = vunpack.c.l.b16 %v694
        %v928 = vunpack.c.h.b16 %v694
        %v929 = vunpack.c.l.b16 %v695
        %v930 = vunpack.c.h.b16 %v695
        %v931 = vunpack.c.l.b16 %v696
        %v932 = vunpack.c.h.b16 %v696
        %v933 = vunpack.c.l.b16 %v697
        %v934 = vunpack.c.h.b16 %v697
        %v935 = vunpack.c.l.b16 %v698
        %v936 = vunpack.c.h.b16 %v698
        %v937 = vunpack.c.l.b16 %v699
        %v938 = vunpack.c.h.b16 %v699
        %v939 = vunpack.c.l.b16 %v700
        %v940 = vunpack.c.h.b16 %v700
        %v941 = vunpack.c.l.b16 %v701
        %v942 = vunpack.c.h.b16 %v701
        %v943 = vpack.c.b16 %v921, %v919
        %v944 = vpack.c.b16 %v922, %v920
        %v945 = vpack.c.b16 %v925, %v923
        %v946 = vpack.c.b16 %v926, %v924
        %v947 = vpack.c.b16 %v929, %v927
        %v948 = vpack.c.b16 %v930, %v928
        %v949 = vpack.c.b16 %v933, %v931
        %v950 = vpack.c.b16 %v934, %v932
        %v951 = vpack.c.b16 %v937, %v935
        %v952 = vpack.c.b16 %v938, %v936
        %v953 = vpack.c.b16 %v941, %v939
        %v954 = vpack.c.b16 %v942, %v940
        %v968 = vsel %vm847, %v688, 0
        %v971 = vsel %vm847, %v689, 0
        %973 = vmatprep.subr.bf16.mxu0 %v944
        %974 = vmatpush1.bf16.msra.mxu0 %v943
        %975 = vmatprep.subr.bf16.mxu0 %v946
        %976 = vmatpush1.bf16.msra.mxu0 %v945
        %977 = vmatprep.subr.bf16.mxu0 %v948
        %978 = vmatpush1.bf16.msra.mxu0 %v947
        %979 = vmatprep.subr.bf16.mxu0 %v950
        %980 = vmatpush1.bf16.msra.mxu0 %v949
        %981 = vmatprep.subr.bf16.mxu0 %v952
        %982 = vmatpush1.bf16.msra.mxu0 %v951
        %983 = vmatprep.subr.bf16.mxu0 %v954
        %984 = vmatpush1.bf16.msra.mxu0 %v953
        %985 = vmatprep.subr.bf16.mxu0 0
        %986 = vmatpush1.bf16.msra.mxu0 0
        %987 = vmatprep.subr.bf16.mxu0 0
        %988 = vmatpush1.bf16.msra.mxu0 0
        %989 = vmatprep.subr.bf16.mxu0 0
        %990 = vmatpush1.bf16.msra.mxu0 0
        %991 = vmatprep.subr.bf16.mxu0 0
        %992 = vmatpush1.bf16.msra.mxu0 0
        %993 = vmatprep.subr.bf16.mxu0 0
        %994 = vmatpush1.bf16.msra.mxu0 0
        %995 = vmatprep.subr.bf16.mxu0 0
        %996 = vmatpush1.bf16.msra.mxu0 0
        %997 = vmatprep.subr.bf16.mxu0 0
        %998 = vmatpush1.bf16.msra.mxu0 0
        %999 = vmatprep.subr.bf16.mxu0 0
        %1000 = vmatpush1.bf16.msra.mxu0 0
        %1001 = vmatprep.subr.bf16.mxu0 0
        %1002 = vmatpush1.bf16.msra.mxu0 0
        %1003 = vmatprep.subr.bf16.mxu0 0
        %1004 = vmatpush1.bf16.msra.mxu0 0
        %1005 = vmatprep.mubr.bf16.mxu0 0
        %1006 = vmatmul.mubr.bf16.gmra.mrb[0].mxu0 %v968
        %v1007 = vpop.f32.mrb[0].mxu0
        %v1008 = vadd.f32 %v889, %v1007
        %v1009 = vpop.f32.mrb[0].mxu0
        %v1010 = vadd.f32 %v891, %v1009
        %v1011 = vpop.f32.mrb[0].mxu0
        %v1012 = vadd.f32 %v893, %v1011
        %v1013 = vpop.f32.mrb[0].mxu0
        %v1014 = vadd.f32 %v895, %v1013
        %1015 = vmatprep.mubr.bf16.mxu0 0
        %1016 = vmatmul.mubr.bf16.gmra.mrb[0].mxu0 %v971
        %v1017 = vpop.f32.mrb[0].mxu0
        %v1018 = vadd.f32 %v899, %v1017
        %v1019 = vpop.f32.mrb[0].mxu0
        %v1020 = vadd.f32 %v901, %v1019
        %v1021 = vpop.f32.mrb[0].mxu0
        %v1022 = vadd.f32 %v903, %v1021
        %v1023 = vpop.f32.mrb[0].mxu0
        %v1024 = vadd.f32 %v905, %v1023
        %1025 = vdwg.mxu0
        %s1026 = scalar_lea.vmem %s1, 32
        %v1027 = vld [vmem:[%s1026] sm:$0xf]
        %v1028 = vld [vmem:[%s1026 + $0x4] sm:$0xf]
        %v1029 = vld [vmem:[%s1026 + $0x8] sm:$0xf]
        %v1030 = vld [vmem:[%s1026 + $0xc] sm:$0xf]
        %v1035 = vunpack.c.l.b16 %v1027
        %v1036 = vunpack.c.l.b16 %v1028
        %v1037 = vunpack.c.l.b16 %v1029
        %v1038 = vunpack.c.l.b16 %v1030
        %v1039 = vpack.c.b16 %v1036, %v1035
        %v1040 = vpack.c.b16 %v1038, %v1037
        %v1042 = vsel %vm632, %v1039, 0
        %v1045 = vsel %vm632, %v1040, 0
        %1047 = vmatprep.subr.bf16.mxu0 0
        %1048 = vmatpush1.bf16.msra.mxu0 %v628
        %1049 = vmatprep.subr.bf16.mxu0 0
        %1050 = vmatpush1.bf16.msra.mxu0 %v629
        %1051 = vmatprep.subr.bf16.mxu0 0
        %1052 = vmatpush1.bf16.msra.mxu0 0
        %1053 = vmatprep.subr.bf16.mxu0 0
        %1054 = vmatpush1.bf16.msra.mxu0 0
        %1055 = vmatprep.subr.bf16.mxu0 0
        %1056 = vmatpush1.bf16.msra.mxu0 0
        %1057 = vmatprep.subr.bf16.mxu0 0
        %1058 = vmatpush1.bf16.msra.mxu0 0
        %1059 = vmatprep.subr.bf16.mxu0 0
        %1060 = vmatpush1.bf16.msra.mxu0 0
        %1061 = vmatprep.subr.bf16.mxu0 0
        %1062 = vmatpush1.bf16.msra.mxu0 0
        %1063 = vmatprep.subr.bf16.mxu0 0
        %1064 = vmatpush1.bf16.msra.mxu0 0
        %1065 = vmatprep.subr.bf16.mxu0 0
        %1066 = vmatpush1.bf16.msra.mxu0 0
        %1067 = vmatprep.subr.bf16.mxu0 0
        %1068 = vmatpush1.bf16.msra.mxu0 0
        %1069 = vmatprep.subr.bf16.mxu0 0
        %1070 = vmatpush1.bf16.msra.mxu0 0
        %1071 = vmatprep.subr.bf16.mxu0 0
        %1072 = vmatpush1.bf16.msra.mxu0 0
        %1073 = vmatprep.subr.bf16.mxu0 0
        %1074 = vmatpush1.bf16.msra.mxu0 0
        %1075 = vmatprep.subr.bf16.mxu0 0
        %1076 = vmatpush1.bf16.msra.mxu0 0
        %1077 = vmatprep.subr.bf16.mxu0 0
        %1078 = vmatpush1.bf16.msra.mxu0 0
        %1079 = vmatprep.mubr.bf16.mxu0 0
        %1080 = vmatmul.mubr.bf16.gmra.mrb[0].mxu0 %v1042
        %v1081 = vpop.f32.mrb[0].mxu0
        %v1082 = vadd.f32 0.0, %v1081
        %v1083 = vpop.f32.mrb[0].mxu0
        %v1084 = vpop.f32.mrb[0].mxu0
        %v1085 = vadd.f32 0.0, %v1084
        %v1086 = vpop.f32.mrb[0].mxu0
        %1087 = vmatprep.mubr.bf16.mxu0 0
        %1088 = vmatmul.mubr.bf16.gmra.mrb[0].mxu0 %v1045
        %v1089 = vpop.f32.mrb[0].mxu0
        %v1090 = vadd.f32 0.0, %v1089
        %v1091 = vpop.f32.mrb[0].mxu0
        %v1092 = vpop.f32.mrb[0].mxu0
        %v1093 = vadd.f32 0.0, %v1092
        %v1094 = vpop.f32.mrb[0].mxu0
        %1095 = vdwg.mxu0
        %v1096 = vpack.c.bf16 %v1085, %v1082
        %v1097 = vpack.c.bf16 %v1093, %v1090
        %s1098 = scalar_lea.vmem %s2, 192
        %v1099 = vld [vmem:[%s1098] sm:$0xff]
        %v1100 = vld [vmem:[%s1098 + $0x8] sm:$0xff]
        %v1101 = vld [vmem:[%s1098 + $0x10] sm:$0xff]
        %v1102 = vld [vmem:[%s1098 + $0x18] sm:$0xff]
        %v1103 = vld [vmem:[%s1098 + $0x20] sm:$0xff]
        %v1104 = vld [vmem:[%s1098 + $0x28] sm:$0xff]
        %v1105 = vld [vmem:[%s1098 + $0x30] sm:$0xff]
        %v1106 = vld [vmem:[%s1098 + $0x38] sm:$0xff]
        %v1107 = vld [vmem:[%s1098 + $0x40] sm:$0xff]
        %v1108 = vld [vmem:[%s1098 + $0x48] sm:$0xff]
        %v1109 = vld [vmem:[%s1098 + $0x50] sm:$0xff]
        %v1110 = vld [vmem:[%s1098 + $0x58] sm:$0xff]
        %v1123 = vunpack.c.l.b16 %v1099
        %v1124 = vunpack.c.h.b16 %v1099
        %v1125 = vunpack.c.l.b16 %v1100
        %v1126 = vunpack.c.h.b16 %v1100
        %v1127 = vunpack.c.l.b16 %v1101
        %v1128 = vunpack.c.h.b16 %v1101
        %v1129 = vunpack.c.l.b16 %v1102
        %v1130 = vunpack.c.h.b16 %v1102
        %v1131 = vunpack.c.l.b16 %v1103
        %v1132 = vunpack.c.h.b16 %v1103
        %v1133 = vunpack.c.l.b16 %v1104
        %v1134 = vunpack.c.h.b16 %v1104
        %v1135 = vunpack.c.l.b16 %v1105
        %v1136 = vunpack.c.h.b16 %v1105
        %v1137 = vunpack.c.l.b16 %v1106
        %v1138 = vunpack.c.h.b16 %v1106
        %v1139 = vunpack.c.l.b16 %v1107
        %v1140 = vunpack.c.h.b16 %v1107
        %v1141 = vunpack.c.l.b16 %v1108
        %v1142 = vunpack.c.h.b16 %v1108
        %v1143 = vunpack.c.l.b16 %v1109
        %v1144 = vunpack.c.h.b16 %v1109
        %v1145 = vunpack.c.l.b16 %v1110
        %v1146 = vunpack.c.h.b16 %v1110
        %v1147 = vpack.c.b16 %v1125, %v1123
        %v1148 = vpack.c.b16 %v1126, %v1124
        %v1149 = vpack.c.b16 %v1129, %v1127
        %v1150 = vpack.c.b16 %v1130, %v1128
        %v1151 = vpack.c.b16 %v1133, %v1131
        %v1152 = vpack.c.b16 %v1134, %v1132
        %v1153 = vpack.c.b16 %v1137, %v1135
        %v1154 = vpack.c.b16 %v1138, %v1136
        %v1155 = vpack.c.b16 %v1141, %v1139
        %v1156 = vpack.c.b16 %v1142, %v1140
        %v1157 = vpack.c.b16 %v1145, %v1143
        %v1158 = vpack.c.b16 %v1146, %v1144
        %v1172 = vsel %vm847, %v1096, 0
        %v1175 = vsel %vm847, %v1097, 0
        %1177 = vmatprep.subr.bf16.mxu0 %v1148
        %1178 = vmatpush1.bf16.msra.mxu0 %v1147
        %1179 = vmatprep.subr.bf16.mxu0 %v1150
        %1180 = vmatpush1.bf16.msra.mxu0 %v1149
        %1181 = vmatprep.subr.bf16.mxu0 %v1152
        %1182 = vmatpush1.bf16.msra.mxu0 %v1151
        %1183 = vmatprep.subr.bf16.mxu0 %v1154
        %1184 = vmatpush1.bf16.msra.mxu0 %v1153
        %1185 = vmatprep.subr.bf16.mxu0 %v1156
        %1186 = vmatpush1.bf16.msra.mxu0 %v1155
        %1187 = vmatprep.subr.bf16.mxu0 %v1158
        %1188 = vmatpush1.bf16.msra.mxu0 %v1157
        %1189 = vmatprep.subr.bf16.mxu0 0
        %1190 = vmatpush1.bf16.msra.mxu0 0
        %1191 = vmatprep.subr.bf16.mxu0 0
        %1192 = vmatpush1.bf16.msra.mxu0 0
        %1193 = vmatprep.subr.bf16.mxu0 0
        %1194 = vmatpush1.bf16.msra.mxu0 0
        %1195 = vmatprep.subr.bf16.mxu0 0
        %1196 = vmatpush1.bf16.msra.mxu0 0
        %1197 = vmatprep.subr.bf16.mxu0 0
        %1198 = vmatpush1.bf16.msra.mxu0 0
        %1199 = vmatprep.subr.bf16.mxu0 0
        %1200 = vmatpush1.bf16.msra.mxu0 0
        %1201 = vmatprep.subr.bf16.mxu0 0
        %1202 = vmatpush1.bf16.msra.mxu0 0
        %1203 = vmatprep.subr.bf16.mxu0 0
        %1204 = vmatpush1.bf16.msra.mxu0 0
        %1205 = vmatprep.subr.bf16.mxu0 0
        %1206 = vmatpush1.bf16.msra.mxu0 0
        %1207 = vmatprep.subr.bf16.mxu0 0
        %1208 = vmatpush1.bf16.msra.mxu0 0
        %1209 = vmatprep.mubr.bf16.mxu0 0
        %1210 = vmatmul.mubr.bf16.gmra.mrb[0].mxu0 %v1172
        %v1211 = vpop.f32.mrb[0].mxu0
        %v1212 = vadd.f32 0.0, %v1211
        %v1213 = vpop.f32.mrb[0].mxu0
        %v1214 = vadd.f32 0.0, %v1213
        %v1215 = vpop.f32.mrb[0].mxu0
        %v1216 = vadd.f32 0.0, %v1215
        %v1217 = vpop.f32.mrb[0].mxu0
        %v1218 = vadd.f32 0.0, %v1217
        %1219 = vmatprep.mubr.bf16.mxu0 0
        %1220 = vmatmul.mubr.bf16.gmra.mrb[0].mxu0 %v1175
        %v1221 = vpop.f32.mrb[0].mxu0
        %v1222 = vadd.f32 0.0, %v1221
        %v1223 = vpop.f32.mrb[0].mxu0
        %v1224 = vadd.f32 0.0, %v1223
        %v1225 = vpop.f32.mrb[0].mxu0
        %v1226 = vadd.f32 0.0, %v1225
        %v1227 = vpop.f32.mrb[0].mxu0
        %v1228 = vadd.f32 0.0, %v1227
        %1229 = vdwg.mxu0
        %v1230 = vadd.f32 %v1008, %v1212
        %v1231 = vadd.f32 %v1010, %v1214
        %v1232 = vadd.f32 %v1012, %v1216
        %v1233 = vadd.f32 %v1014, %v1218
        %v1234 = vadd.f32 %v1018, %v1222
        %v1235 = vadd.f32 %v1020, %v1224
        %v1236 = vadd.f32 %v1022, %v1226
        %v1237 = vadd.f32 %v1024, %v1228
        %v1238 = vld [vmem:[%s3] sm:$0x3]
        %v1240 = vlaneseq
        %v1241 = vshrl.u32 %v1240, 7
        %v1242 = vsub.s32 0, %v1241
        %v1243 = vrot.slane %v1238, %v1242
        %v1244 = vlaneseq
        %v1245 = vshrl.u32 %v1244, 7
        %v1246 = vsub.s32 1, %v1245
        %v1247 = vrot.slane %v1238, %v1246
        %v1250 = vadd.f32 %v1230, %v1243
        %v1251 = vadd.f32 %v1231, %v1247
        %v1252 = vadd.f32 %v1232, %v1243
        %v1253 = vadd.f32 %v1233, %v1247
        %v1254 = vadd.f32 %v1234, %v1243
        %v1255 = vadd.f32 %v1235, %v1247
        %v1256 = vadd.f32 %v1236, %v1243
        %v1257 = vadd.f32 %v1237, %v1247
        %vm1258 = vcmp.ge.f32.partialorder %v1250, 0.0
        %vm1259 = vcmp.ge.f32.partialorder %v1251, 0.0
        %vm1260 = vcmp.ge.f32.partialorder %v1252, 0.0
        %vm1261 = vcmp.ge.f32.partialorder %v1253, 0.0
        %vm1262 = vcmp.ge.f32.partialorder %v1254, 0.0
        %vm1263 = vcmp.ge.f32.partialorder %v1255, 0.0
        %vm1264 = vcmp.ge.f32.partialorder %v1256, 0.0
        %vm1265 = vcmp.ge.f32.partialorder %v1257, 0.0
        %v1266 = vmul.f32 %v1250, 0.2
        %v1267 = vmul.f32 %v1251, 0.2
        %v1268 = vmul.f32 %v1252, 0.2
        %v1269 = vmul.f32 %v1253, 0.2
        %v1270 = vmul.f32 %v1254, 0.2
        %v1271 = vmul.f32 %v1255, 0.2
        %v1272 = vmul.f32 %v1256, 0.2
        %v1273 = vmul.f32 %v1257, 0.2
        %v1274 = vsel %vm1258, %v1250, %v1266
        %v1275 = vsel %vm1259, %v1251, %v1267
        %v1276 = vsel %vm1260, %v1252, %v1268
        %v1277 = vsel %vm1261, %v1253, %v1269
        %v1278 = vsel %vm1262, %v1254, %v1270
        %v1279 = vsel %vm1263, %v1255, %v1271
        %v1280 = vsel %vm1264, %v1256, %v1272
        %v1281 = vsel %vm1265, %v1257, %v1273
        %v1282 = vpack.c.bf16 %v1276, %v1274
        %v1283 = vpack.c.bf16 %v1277, %v1275
        %v1284 = vpack.c.bf16 %v1280, %v1278
        %v1285 = vpack.c.bf16 %v1281, %v1279
        %v1286 = vld [vmem:[%s4] sm:$0xf]
        %v1287 = vld [vmem:[%s4 + $0x4] sm:$0xf]
        %v1290 = vunpack.c.l.b16 %v1286
        %v1291 = vunpack.c.l.b16 %v1287
        %v1292 = vpack.c.b16 %v1291, %v1290
        %v1294 = vsel %vm632, %v1292, 0
        %1296 = vmatprep.subr.bf16.mxu0 %v1283
        %1297 = vmatpush1.bf16.msra.mxu0 %v1282
        %1298 = vmatprep.subr.bf16.mxu0 %v1285
        %1299 = vmatpush1.bf16.msra.mxu0 %v1284
        %1300 = vmatprep.subr.bf16.mxu0 0
        %1301 = vmatpush1.bf16.msra.mxu0 0
        %1302 = vmatprep.subr.bf16.mxu0 0
        %1303 = vmatpush1.bf16.msra.mxu0 0
        %1304 = vmatprep.subr.bf16.mxu0 0
        %1305 = vmatpush1.bf16.msra.mxu0 0
        %1306 = vmatprep.subr.bf16.mxu0 0
        %1307 = vmatpush1.bf16.msra.mxu0 0
        %1308 = vmatprep.subr.bf16.mxu0 0
        %1309 = vmatpush1.bf16.msra.mxu0 0
        %1310 = vmatprep.subr.bf16.mxu0 0
        %1311 = vmatpush1.bf16.msra.mxu0 0
        %1312 = vmatprep.subr.bf16.mxu0 0
        %1313 = vmatpush1.bf16.msra.mxu0 0
        %1314 = vmatprep.subr.bf16.mxu0 0
        %1315 = vmatpush1.bf16.msra.mxu0 0
        %1316 = vmatprep.subr.bf16.mxu0 0
        %1317 = vmatpush1.bf16.msra.mxu0 0
        %1318 = vmatprep.subr.bf16.mxu0 0
        %1319 = vmatpush1.bf16.msra.mxu0 0
        %1320 = vmatprep.subr.bf16.mxu0 0
        %1321 = vmatpush1.bf16.msra.mxu0 0
        %1322 = vmatprep.subr.bf16.mxu0 0
        %1323 = vmatpush1.bf16.msra.mxu0 0
        %1324 = vmatprep.subr.bf16.mxu0 0
        %1325 = vmatpush1.bf16.msra.mxu0 0
        %1326 = vmatprep.subr.bf16.mxu0 0
        %1327 = vmatpush1.bf16.msra.mxu0 0
        %1328 = vmatprep.mubr.bf16.mxu0 0
        %1329 = vmatmul.mubr.bf16.gmra.mrb[0].mxu0 %v1294
        %v1330 = vpop.f32.mrb[0].mxu0
        %v1331 = vadd.f32 0.0, %v1330
        %v1332 = vpop.f32.mrb[0].mxu0
        %v1333 = vadd.f32 0.0, %v1332
        %v1334 = vpop.f32.mrb[0].mxu0
        %v1335 = vadd.f32 0.0, %v1334
        %v1336 = vpop.f32.mrb[0].mxu0
        %v1337 = vadd.f32 0.0, %v1336
        %1338 = vdwg.mxu0
        %v1339 = vpack.c.bf16 %v1335, %v1331
        %v1340 = vpack.c.bf16 %v1337, %v1333
        %v1341 = vld [vmem:[%s5] sm:$0xf]
        %v1342 = vld [vmem:[%s5 + $0x4] sm:$0xf]
        %v1343 = vld [vmem:[%s5 + $0x8] sm:$0xf]
        %v1344 = vld [vmem:[%s5 + $0xc] sm:$0xf]
        %v1345 = vld [vmem:[%s5 + $0x10] sm:$0xf]
        %v1346 = vld [vmem:[%s5 + $0x14] sm:$0xf]
        %v1347 = vld [vmem:[%s5 + $0x18] sm:$0xf]
        %v1348 = vld [vmem:[%s5 + $0x1c] sm:$0xf]
        %v1349 = vld [vmem:[%s5 + $0x20] sm:$0xf]
        %v1350 = vld [vmem:[%s5 + $0x24] sm:$0xf]
        %v1351 = vld [vmem:[%s5 + $0x28] sm:$0xf]
        %v1352 = vld [vmem:[%s5 + $0x2c] sm:$0xf]
        %v1353 = vld [vmem:[%s5 + $0x30] sm:$0xf]
        %v1354 = vld [vmem:[%s5 + $0x34] sm:$0xf]
        %v1355 = vld [vmem:[%s5 + $0x38] sm:$0xf]
        %v1356 = vld [vmem:[%s5 + $0x3c] sm:$0xf]
        %v1357 = vld [vmem:[%s5 + $0x40] sm:$0xf]
        %v1358 = vld [vmem:[%s5 + $0x44] sm:$0xf]
        %v1359 = vld [vmem:[%s5 + $0x48] sm:$0xf]
        %v1360 = vld [vmem:[%s5 + $0x4c] sm:$0xf]
        %v1361 = vld [vmem:[%s5 + $0x50] sm:$0xf]
        %v1362 = vld [vmem:[%s5 + $0x54] sm:$0xf]
        %v1363 = vld [vmem:[%s5 + $0x58] sm:$0xf]
        %v1364 = vld [vmem:[%s5 + $0x5c] sm:$0xf]
        %v1365 = vld [vmem:[%s5 + $0x60] sm:$0xf]
        %v1366 = vld [vmem:[%s5 + $0x64] sm:$0xf]
        %v1367 = vld [vmem:[%s5 + $0x68] sm:$0xf]
        %v1368 = vld [vmem:[%s5 + $0x6c] sm:$0xf]
        %v1369 = vld [vmem:[%s5 + $0x70] sm:$0xf]
        %v1370 = vld [vmem:[%s5 + $0x74] sm:$0xf]
        %v1371 = vld [vmem:[%s5 + $0x78] sm:$0xf]
        %v1372 = vld [vmem:[%s5 + $0x7c] sm:$0xf]
        %s1373 = scalar_lea.vmem %s4, 8
        %v1374 = vld [vmem:[%s1373] sm:$0xf]
        %v1375 = vld [vmem:[%s1373 + $0x4] sm:$0xf]
        %v1378 = vunpack.c.l.b16 %v1374
        %v1379 = vunpack.c.l.b16 %v1375
        %v1380 = vpack.c.b16 %v1379, %v1378
        %v1382 = vsel %vm632, %v1380, 0
        %1384 = vmatprep.subr.bf16.mxu0 %v1283
        %1385 = vmatpush1.bf16.msra.mxu0 %v1282
        %1386 = vmatprep.subr.bf16.mxu0 %v1285
        %1387 = vmatpush1.bf16.msra.mxu0 %v1284
        %1388 = vmatprep.subr.bf16.mxu0 0
        %1389 = vmatpush1.bf16.msra.mxu0 0
        %1390 = vmatprep.subr.bf16.mxu0 0
        %1391 = vmatpush1.bf16.msra.mxu0 0
        %1392 = vmatprep.subr.bf16.mxu0 0
        %1393 = vmatpush1.bf16.msra.mxu0 0
        %1394 = vmatprep.subr.bf16.mxu0 0
        %1395 = vmatpush1.bf16.msra.mxu0 0
        %1396 = vmatprep.subr.bf16.mxu0 0
        %1397 = vmatpush1.bf16.msra.mxu0 0
        %1398 = vmatprep.subr.bf16.mxu0 0
        %1399 = vmatpush1.bf16.msra.mxu0 0
        %1400 = vmatprep.subr.bf16.mxu0 0
        %1401 = vmatpush1.bf16.msra.mxu0 0
        %1402 = vmatprep.subr.bf16.mxu0 0
        %1403 = vmatpush1.bf16.msra.mxu0 0
        %1404 = vmatprep.subr.bf16.mxu0 0
        %1405 = vmatpush1.bf16.msra.mxu0 0
        %1406 = vmatprep.subr.bf16.mxu0 0
        %1407 = vmatpush1.bf16.msra.mxu0 0
        %1408 = vmatprep.subr.bf16.mxu0 0
        %1409 = vmatpush1.bf16.msra.mxu0 0
        %1410 = vmatprep.subr.bf16.mxu0 0
        %1411 = vmatpush1.bf16.msra.mxu0 0
        %1412 = vmatprep.subr.bf16.mxu0 0
        %1413 = vmatpush1.bf16.msra.mxu0 0
        %1414 = vmatprep.subr.bf16.mxu0 0
        %1415 = vmatpush1.bf16.msra.mxu0 0
        %1416 = vmatprep.mubr.bf16.mxu0 0
        %1417 = vmatmul.mubr.bf16.gmra.mrb[0].mxu0 %v1382
        %v1418 = vpop.f32.mrb[0].mxu0
        %v1419 = vadd.f32 0.0, %v1418
        %v1420 = vpop.f32.mrb[0].mxu0
        %v1421 = vadd.f32 0.0, %v1420
        %v1422 = vpop.f32.mrb[0].mxu0
        %v1423 = vadd.f32 0.0, %v1422
        %v1424 = vpop.f32.mrb[0].mxu0
        %v1425 = vadd.f32 0.0, %v1424
        %1426 = vdwg.mxu0
        %v1427 = vpack.c.bf16 %v1423, %v1419
        %v1428 = vpack.c.bf16 %v1425, %v1421
        %s1429 = scalar_lea.vmem %s5, 128
        %v1430 = vld [vmem:[%s1429] sm:$0xf]
        %v1431 = vld [vmem:[%s1429 + $0x4] sm:$0xf]
        %v1432 = vld [vmem:[%s1429 + $0x8] sm:$0xf]
        %v1433 = vld [vmem:[%s1429 + $0xc] sm:$0xf]
        %v1434 = vld [vmem:[%s1429 + $0x10] sm:$0xf]
        %v1435 = vld [vmem:[%s1429 + $0x14] sm:$0xf]
        %v1436 = vld [vmem:[%s1429 + $0x18] sm:$0xf]
        %v1437 = vld [vmem:[%s1429 + $0x1c] sm:$0xf]
        %v1438 = vld [vmem:[%s1429 + $0x20] sm:$0xf]
        %v1439 = vld [vmem:[%s1429 + $0x24] sm:$0xf]
        %v1440 = vld [vmem:[%s1429 + $0x28] sm:$0xf]
        %v1441 = vld [vmem:[%s1429 + $0x2c] sm:$0xf]
        %v1442 = vld [vmem:[%s1429 + $0x30] sm:$0xf]
        %v1443 = vld [vmem:[%s1429 + $0x34] sm:$0xf]
        %v1444 = vld [vmem:[%s1429 + $0x38] sm:$0xf]
        %v1445 = vld [vmem:[%s1429 + $0x3c] sm:$0xf]
        %v1446 = vld [vmem:[%s1429 + $0x40] sm:$0xf]
        %v1447 = vld [vmem:[%s1429 + $0x44] sm:$0xf]
        %v1448 = vld [vmem:[%s1429 + $0x48] sm:$0xf]
        %v1449 = vld [vmem:[%s1429 + $0x4c] sm:$0xf]
        %v1450 = vld [vmem:[%s1429 + $0x50] sm:$0xf]
        %v1451 = vld [vmem:[%s1429 + $0x54] sm:$0xf]
        %v1452 = vld [vmem:[%s1429 + $0x58] sm:$0xf]
        %v1453 = vld [vmem:[%s1429 + $0x5c] sm:$0xf]
        %v1454 = vld [vmem:[%s1429 + $0x60] sm:$0xf]
        %v1455 = vld [vmem:[%s1429 + $0x64] sm:$0xf]
        %v1456 = vld [vmem:[%s1429 + $0x68] sm:$0xf]
        %v1457 = vld [vmem:[%s1429 + $0x6c] sm:$0xf]
        %v1458 = vld [vmem:[%s1429 + $0x70] sm:$0xf]
        %v1459 = vld [vmem:[%s1429 + $0x74] sm:$0xf]
        %v1460 = vld [vmem:[%s1429 + $0x78] sm:$0xf]
        %v1461 = vld [vmem:[%s1429 + $0x7c] sm:$0xf]
        %v1494 = vunpack.c.l.b16 %v1430
        %v1495 = vunpack.c.l.b16 %v1431
        %v1496 = vunpack.c.l.b16 %v1432
        %v1497 = vunpack.c.l.b16 %v1433
        %v1498 = vunpack.c.l.b16 %v1434
        %v1499 = vunpack.c.l.b16 %v1435
        %v1500 = vunpack.c.l.b16 %v1436
        %v1501 = vunpack.c.l.b16 %v1437
        %v1502 = vunpack.c.l.b16 %v1438
        %v1503 = vunpack.c.l.b16 %v1439
        %v1504 = vunpack.c.l.b16 %v1440
        %v1505 = vunpack.c.l.b16 %v1441
        %v1506 = vunpack.c.l.b16 %v1442
        %v1507 = vunpack.c.l.b16 %v1443
        %v1508 = vunpack.c.l.b16 %v1444
        %v1509 = vunpack.c.l.b16 %v1445
        %v1510 = vunpack.c.l.b16 %v1446
        %v1511 = vunpack.c.l.b16 %v1447
        %v1512 = vunpack.c.l.b16 %v1448
        %v1513 = vunpack.c.l.b16 %v1449
        %v1514 = vunpack.c.l.b16 %v1450
        %v1515 = vunpack.c.l.b16 %v1451
        %v1516 = vunpack.c.l.b16 %v1452
        %v1517 = vunpack.c.l.b16 %v1453
        %v1518 = vunpack.c.l.b16 %v1454
        %v1519 = vunpack.c.l.b16 %v1455
        %v1520 = vunpack.c.l.b16 %v1456
        %v1521 = vunpack.c.l.b16 %v1457
        %v1522 = vunpack.c.l.b16 %v1458
        %v1523 = vunpack.c.l.b16 %v1459
        %v1524 = vunpack.c.l.b16 %v1460
        %v1525 = vunpack.c.l.b16 %v1461
        %v1526 = vpack.c.b16 %v1495, %v1494
        %v1527 = vpack.c.b16 %v1497, %v1496
        %v1528 = vpack.c.b16 %v1499, %v1498
        %v1529 = vpack.c.b16 %v1501, %v1500
        %v1530 = vpack.c.b16 %v1503, %v1502
        %v1531 = vpack.c.b16 %v1505, %v1504
        %v1532 = vpack.c.b16 %v1507, %v1506
        %v1533 = vpack.c.b16 %v1509, %v1508
        %v1534 = vpack.c.b16 %v1511, %v1510
        %v1535 = vpack.c.b16 %v1513, %v1512
        %v1536 = vpack.c.b16 %v1515, %v1514
        %v1537 = vpack.c.b16 %v1517, %v1516
        %v1538 = vpack.c.b16 %v1519, %v1518
        %v1539 = vpack.c.b16 %v1521, %v1520
        %v1540 = vpack.c.b16 %v1523, %v1522
        %v1541 = vpack.c.b16 %v1525, %v1524
        %1558 = vmatprep.subr.bf16.mxu0 0
        %1559 = vmatpush1.bf16.msra.mxu0 %v1526
        %1560 = vmatprep.subr.bf16.mxu0 0
        %1561 = vmatpush1.bf16.msra.mxu0 %v1527
        %1562 = vmatprep.subr.bf16.mxu0 0
        %1563 = vmatpush1.bf16.msra.mxu0 %v1528
        %1564 = vmatprep.subr.bf16.mxu0 0
        %1565 = vmatpush1.bf16.msra.mxu0 %v1529
        %1566 = vmatprep.subr.bf16.mxu0 0
        %1567 = vmatpush1.bf16.msra.mxu0 %v1530
        %1568 = vmatprep.subr.bf16.mxu0 0
        %1569 = vmatpush1.bf16.msra.mxu0 %v1531
        %1570 = vmatprep.subr.bf16.mxu0 0
        %1571 = vmatpush1.bf16.msra.mxu0 %v1532
        %1572 = vmatprep.subr.bf16.mxu0 0
        %1573 = vmatpush1.bf16.msra.mxu0 %v1533
        %1574 = vmatprep.subr.bf16.mxu0 0
        %1575 = vmatpush1.bf16.msra.mxu0 %v1534
        %1576 = vmatprep.subr.bf16.mxu0 0
        %1577 = vmatpush1.bf16.msra.mxu0 %v1535
        %1578 = vmatprep.subr.bf16.mxu0 0
        %1579 = vmatpush1.bf16.msra.mxu0 %v1536
        %1580 = vmatprep.subr.bf16.mxu0 0
        %1581 = vmatpush1.bf16.msra.mxu0 %v1537
        %1582 = vmatprep.subr.bf16.mxu0 0
        %1583 = vmatpush1.bf16.msra.mxu0 %v1538
        %1584 = vmatprep.subr.bf16.mxu0 0
        %1585 = vmatpush1.bf16.msra.mxu0 %v1539
        %1586 = vmatprep.subr.bf16.mxu0 0
        %1587 = vmatpush1.bf16.msra.mxu0 %v1540
        %1588 = vmatprep.subr.bf16.mxu0 0
        %1589 = vmatpush1.bf16.msra.mxu0 %v1541
        %1590 = vmatprep.mubr.bf16.mxu0 %v1428
        %1591 = vmatmul.mubr.bf16.gmra.mrb[0].mxu0 %v1427
        %v1592 = vpop.f32.mrb[0].mxu0
        %v1593 = vadd.f32 0.0, %v1592
        %v1594 = vpop.f32.mrb[0].mxu0
        %v1595 = vpop.f32.mrb[0].mxu0
        %v1596 = vadd.f32 0.0, %v1595
        %v1597 = vpop.f32.mrb[0].mxu0
        %1598 = vdwg.mxu0
        %v1631 = vunpack.c.l.b16 %v1341
        %v1632 = vunpack.c.l.b16 %v1342
        %v1633 = vunpack.c.l.b16 %v1343
        %v1634 = vunpack.c.l.b16 %v1344
        %v1635 = vunpack.c.l.b16 %v1345
        %v1636 = vunpack.c.l.b16 %v1346
        %v1637 = vunpack.c.l.b16 %v1347
        %v1638 = vunpack.c.l.b16 %v1348
        %v1639 = vunpack.c.l.b16 %v1349
        %v1640 = vunpack.c.l.b16 %v1350
        %v1641 = vunpack.c.l.b16 %v1351
        %v1642 = vunpack.c.l.b16 %v1352
        %v1643 = vunpack.c.l.b16 %v1353
        %v1644 = vunpack.c.l.b16 %v1354
        %v1645 = vunpack.c.l.b16 %v1355
        %v1646 = vunpack.c.l.b16 %v1356
        %v1647 = vunpack.c.l.b16 %v1357
        %v1648 = vunpack.c.l.b16 %v1358
        %v1649 = vunpack.c.l.b16 %v1359
        %v1650 = vunpack.c.l.b16 %v1360
        %v1651 = vunpack.c.l.b16 %v1361
        %v1652 = vunpack.c.l.b16 %v1362
        %v1653 = vunpack.c.l.b16 %v1363
        %v1654 = vunpack.c.l.b16 %v1364
        %v1655 = vunpack.c.l.b16 %v1365
        %v1656 = vunpack.c.l.b16 %v1366
        %v1657 = vunpack.c.l.b16 %v1367
        %v1658 = vunpack.c.l.b16 %v1368
        %v1659 = vunpack.c.l.b16 %v1369
        %v1660 = vunpack.c.l.b16 %v1370
        %v1661 = vunpack.c.l.b16 %v1371
        %v1662 = vunpack.c.l.b16 %v1372
        %v1663 = vpack.c.b16 %v1632, %v1631
        %v1664 = vpack.c.b16 %v1634, %v1633
        %v1665 = vpack.c.b16 %v1636, %v1635
        %v1666 = vpack.c.b16 %v1638, %v1637
        %v1667 = vpack.c.b16 %v1640, %v1639
        %v1668 = vpack.c.b16 %v1642, %v1641
        %v1669 = vpack.c.b16 %v1644, %v1643
        %v1670 = vpack.c.b16 %v1646, %v1645
        %v1671 = vpack.c.b16 %v1648, %v1647
        %v1672 = vpack.c.b16 %v1650, %v1649
        %v1673 = vpack.c.b16 %v1652, %v1651
        %v1674 = vpack.c.b16 %v1654, %v1653
        %v1675 = vpack.c.b16 %v1656, %v1655
        %v1676 = vpack.c.b16 %v1658, %v1657
        %v1677 = vpack.c.b16 %v1660, %v1659
        %v1678 = vpack.c.b16 %v1662, %v1661
        %1695 = vmatprep.subr.bf16.mxu0 0
        %1696 = vmatpush1.bf16.msra.mxu0 %v1663
        %1697 = vmatprep.subr.bf16.mxu0 0
        %1698 = vmatpush1.bf16.msra.mxu0 %v1664
        %1699 = vmatprep.subr.bf16.mxu0 0
        %1700 = vmatpush1.bf16.msra.mxu0 %v1665
        %1701 = vmatprep.subr.bf16.mxu0 0
        %1702 = vmatpush1.bf16.msra.mxu0 %v1666
        %1703 = vmatprep.subr.bf16.mxu0 0
        %1704 = vmatpush1.bf16.msra.mxu0 %v1667
        %1705 = vmatprep.subr.bf16.mxu0 0
        %1706 = vmatpush1.bf16.msra.mxu0 %v1668
        %1707 = vmatprep.subr.bf16.mxu0 0
        %1708 = vmatpush1.bf16.msra.mxu0 %v1669
        %1709 = vmatprep.subr.bf16.mxu0 0
        %1710 = vmatpush1.bf16.msra.mxu0 %v1670
        %1711 = vmatprep.subr.bf16.mxu0 0
        %1712 = vmatpush1.bf16.msra.mxu0 %v1671
        %1713 = vmatprep.subr.bf16.mxu0 0
        %1714 = vmatpush1.bf16.msra.mxu0 %v1672
        %1715 = vmatprep.subr.bf16.mxu0 0
        %1716 = vmatpush1.bf16.msra.mxu0 %v1673
        %1717 = vmatprep.subr.bf16.mxu0 0
        %1718 = vmatpush1.bf16.msra.mxu0 %v1674
        %1719 = vmatprep.subr.bf16.mxu0 0
        %1720 = vmatpush1.bf16.msra.mxu0 %v1675
        %1721 = vmatprep.subr.bf16.mxu0 0
        %1722 = vmatpush1.bf16.msra.mxu0 %v1676
        %1723 = vmatprep.subr.bf16.mxu0 0
        %1724 = vmatpush1.bf16.msra.mxu0 %v1677
        %1725 = vmatprep.subr.bf16.mxu0 0
        %1726 = vmatpush1.bf16.msra.mxu0 %v1678
        %1727 = vmatprep.mubr.bf16.mxu0 %v1340
        %1728 = vmatmul.mubr.bf16.gmra.mrb[0].mxu0 %v1339
        %v1729 = vpop.f32.mrb[0].mxu0
        %v1730 = vadd.f32 %v1593, %v1729
        %v1731 = vpop.f32.mrb[0].mxu0
        %v1732 = vpop.f32.mrb[0].mxu0
        %v1733 = vadd.f32 %v1596, %v1732
        %v1734 = vpop.f32.mrb[0].mxu0
        %1735 = vdwg.mxu0
        %s1736 = scalar_lea.vmem %s4, 16
        %v1737 = vld [vmem:[%s1736] sm:$0xf]
        %v1738 = vld [vmem:[%s1736 + $0x4] sm:$0xf]
        %v1741 = vunpack.c.l.b16 %v1737
        %v1742 = vunpack.c.l.b16 %v1738
        %v1743 = vpack.c.b16 %v1742, %v1741
        %v1745 = vsel %vm632, %v1743, 0
        %1747 = vmatprep.subr.bf16.mxu0 %v1283
        %1748 = vmatpush1.bf16.msra.mxu0 %v1282
        %1749 = vmatprep.subr.bf16.mxu0 %v1285
        %1750 = vmatpush1.bf16.msra.mxu0 %v1284
        %1751 = vmatprep.subr.bf16.mxu0 0
        %1752 = vmatpush1.bf16.msra.mxu0 0
        %1753 = vmatprep.subr.bf16.mxu0 0
        %1754 = vmatpush1.bf16.msra.mxu0 0
        %1755 = vmatprep.subr.bf16.mxu0 0
        %1756 = vmatpush1.bf16.msra.mxu0 0
        %1757 = vmatprep.subr.bf16.mxu0 0
        %1758 = vmatpush1.bf16.msra.mxu0 0
        %1759 = vmatprep.subr.bf16.mxu0 0
        %1760 = vmatpush1.bf16.msra.mxu0 0
        %1761 = vmatprep.subr.bf16.mxu0 0
        %1762 = vmatpush1.bf16.msra.mxu0 0
        %1763 = vmatprep.subr.bf16.mxu0 0
        %1764 = vmatpush1.bf16.msra.mxu0 0
        %1765 = vmatprep.subr.bf16.mxu0 0
        %1766 = vmatpush1.bf16.msra.mxu0 0
        %1767 = vmatprep.subr.bf16.mxu0 0
        %1768 = vmatpush1.bf16.msra.mxu0 0
        %1769 = vmatprep.subr.bf16.mxu0 0
        %1770 = vmatpush1.bf16.msra.mxu0 0
        %1771 = vmatprep.subr.bf16.mxu0 0
        %1772 = vmatpush1.bf16.msra.mxu0 0
        %1773 = vmatprep.subr.bf16.mxu0 0
        %1774 = vmatpush1.bf16.msra.mxu0 0
        %1775 = vmatprep.subr.bf16.mxu0 0
        %1776 = vmatpush1.bf16.msra.mxu0 0
        %1777 = vmatprep.subr.bf16.mxu0 0
        %1778 = vmatpush1.bf16.msra.mxu0 0
        %1779 = vmatprep.mubr.bf16.mxu0 0
        %1780 = vmatmul.mubr.bf16.gmra.mrb[0].mxu0 %v1745
        %v1781 = vpop.f32.mrb[0].mxu0
        %v1782 = vadd.f32 0.0, %v1781
        %v1783 = vpop.f32.mrb[0].mxu0
        %v1784 = vadd.f32 0.0, %v1783
        %v1785 = vpop.f32.mrb[0].mxu0
        %v1786 = vadd.f32 0.0, %v1785
        %v1787 = vpop.f32.mrb[0].mxu0
        %v1788 = vadd.f32 0.0, %v1787
        %1789 = vdwg.mxu0
        %v1790 = vpack.c.bf16 %v1786, %v1782
        %v1791 = vpack.c.bf16 %v1788, %v1784
        %s1792 = scalar_lea.vmem %s5, 256
        %v1793 = vld [vmem:[%s1792] sm:$0xf]
        %v1794 = vld [vmem:[%s1792 + $0x4] sm:$0xf]
        %v1795 = vld [vmem:[%s1792 + $0x8] sm:$0xf]
        %v1796 = vld [vmem:[%s1792 + $0xc] sm:$0xf]
        %v1797 = vld [vmem:[%s1792 + $0x10] sm:$0xf]
        %v1798 = vld [vmem:[%s1792 + $0x14] sm:$0xf]
        %v1799 = vld [vmem:[%s1792 + $0x18] sm:$0xf]
        %v1800 = vld [vmem:[%s1792 + $0x1c] sm:$0xf]
        %v1801 = vld [vmem:[%s1792 + $0x20] sm:$0xf]
        %v1802 = vld [vmem:[%s1792 + $0x24] sm:$0xf]
        %v1803 = vld [vmem:[%s1792 + $0x28] sm:$0xf]
        %v1804 = vld [vmem:[%s1792 + $0x2c] sm:$0xf]
        %v1805 = vld [vmem:[%s1792 + $0x30] sm:$0xf]
        %v1806 = vld [vmem:[%s1792 + $0x34] sm:$0xf]
        %v1807 = vld [vmem:[%s1792 + $0x38] sm:$0xf]
        %v1808 = vld [vmem:[%s1792 + $0x3c] sm:$0xf]
        %v1809 = vld [vmem:[%s1792 + $0x40] sm:$0xf]
        %v1810 = vld [vmem:[%s1792 + $0x44] sm:$0xf]
        %v1811 = vld [vmem:[%s1792 + $0x48] sm:$0xf]
        %v1812 = vld [vmem:[%s1792 + $0x4c] sm:$0xf]
        %v1813 = vld [vmem:[%s1792 + $0x50] sm:$0xf]
        %v1814 = vld [vmem:[%s1792 + $0x54] sm:$0xf]
        %v1815 = vld [vmem:[%s1792 + $0x58] sm:$0xf]
        %v1816 = vld [vmem:[%s1792 + $0x5c] sm:$0xf]
        %v1817 = vld [vmem:[%s1792 + $0x60] sm:$0xf]
        %v1818 = vld [vmem:[%s1792 + $0x64] sm:$0xf]
        %v1819 = vld [vmem:[%s1792 + $0x68] sm:$0xf]
        %v1820 = vld [vmem:[%s1792 + $0x6c] sm:$0xf]
        %v1821 = vld [vmem:[%s1792 + $0x70] sm:$0xf]
        %v1822 = vld [vmem:[%s1792 + $0x74] sm:$0xf]
        %v1823 = vld [vmem:[%s1792 + $0x78] sm:$0xf]
        %v1824 = vld [vmem:[%s1792 + $0x7c] sm:$0xf]
        %v1857 = vunpack.c.l.b16 %v1793
        %v1858 = vunpack.c.l.b16 %v1794
        %v1859 = vunpack.c.l.b16 %v1795
        %v1860 = vunpack.c.l.b16 %v1796
        %v1861 = vunpack.c.l.b16 %v1797
        %v1862 = vunpack.c.l.b16 %v1798
        %v1863 = vunpack.c.l.b16 %v1799
        %v1864 = vunpack.c.l.b16 %v1800
        %v1865 = vunpack.c.l.b16 %v1801
        %v1866 = vunpack.c.l.b16 %v1802
        %v1867 = vunpack.c.l.b16 %v1803
        %v1868 = vunpack.c.l.b16 %v1804
        %v1869 = vunpack.c.l.b16 %v1805
        %v1870 = vunpack.c.l.b16 %v1806
        %v1871 = vunpack.c.l.b16 %v1807
        %v1872 = vunpack.c.l.b16 %v1808
        %v1873 = vunpack.c.l.b16 %v1809
        %v1874 = vunpack.c.l.b16 %v1810
        %v1875 = vunpack.c.l.b16 %v1811
        %v1876 = vunpack.c.l.b16 %v1812
        %v1877 = vunpack.c.l.b16 %v1813
        %v1878 = vunpack.c.l.b16 %v1814
        %v1879 = vunpack.c.l.b16 %v1815
        %v1880 = vunpack.c.l.b16 %v1816
        %v1881 = vunpack.c.l.b16 %v1817
        %v1882 = vunpack.c.l.b16 %v1818
        %v1883 = vunpack.c.l.b16 %v1819
        %v1884 = vunpack.c.l.b16 %v1820
        %v1885 = vunpack.c.l.b16 %v1821
        %v1886 = vunpack.c.l.b16 %v1822
        %v1887 = vunpack.c.l.b16 %v1823
        %v1888 = vunpack.c.l.b16 %v1824
        %v1889 = vpack.c.b16 %v1858, %v1857
        %v1890 = vpack.c.b16 %v1860, %v1859
        %v1891 = vpack.c.b16 %v1862, %v1861
        %v1892 = vpack.c.b16 %v1864, %v1863
        %v1893 = vpack.c.b16 %v1866, %v1865
        %v1894 = vpack.c.b16 %v1868, %v1867
        %v1895 = vpack.c.b16 %v1870, %v1869
        %v1896 = vpack.c.b16 %v1872, %v1871
        %v1897 = vpack.c.b16 %v1874, %v1873
        %v1898 = vpack.c.b16 %v1876, %v1875
        %v1899 = vpack.c.b16 %v1878, %v1877
        %v1900 = vpack.c.b16 %v1880, %v1879
        %v1901 = vpack.c.b16 %v1882, %v1881
        %v1902 = vpack.c.b16 %v1884, %v1883
        %v1903 = vpack.c.b16 %v1886, %v1885
        %v1904 = vpack.c.b16 %v1888, %v1887
        %1921 = vmatprep.subr.bf16.mxu0 0
        %1922 = vmatpush1.bf16.msra.mxu0 %v1889
        %1923 = vmatprep.subr.bf16.mxu0 0
        %1924 = vmatpush1.bf16.msra.mxu0 %v1890
        %1925 = vmatprep.subr.bf16.mxu0 0
        %1926 = vmatpush1.bf16.msra.mxu0 %v1891
        %1927 = vmatprep.subr.bf16.mxu0 0
        %1928 = vmatpush1.bf16.msra.mxu0 %v1892
        %1929 = vmatprep.subr.bf16.mxu0 0
        %1930 = vmatpush1.bf16.msra.mxu0 %v1893
        %1931 = vmatprep.subr.bf16.mxu0 0
        %1932 = vmatpush1.bf16.msra.mxu0 %v1894
        %1933 = vmatprep.subr.bf16.mxu0 0
        %1934 = vmatpush1.bf16.msra.mxu0 %v1895
        %1935 = vmatprep.subr.bf16.mxu0 0
        %1936 = vmatpush1.bf16.msra.mxu0 %v1896
        %1937 = vmatprep.subr.bf16.mxu0 0
        %1938 = vmatpush1.bf16.msra.mxu0 %v1897
        %1939 = vmatprep.subr.bf16.mxu0 0
        %1940 = vmatpush1.bf16.msra.mxu0 %v1898
        %1941 = vmatprep.subr.bf16.mxu0 0
        %1942 = vmatpush1.bf16.msra.mxu0 %v1899
        %1943 = vmatprep.subr.bf16.mxu0 0
        %1944 = vmatpush1.bf16.msra.mxu0 %v1900
        %1945 = vmatprep.subr.bf16.mxu0 0
        %1946 = vmatpush1.bf16.msra.mxu0 %v1901
        %1947 = vmatprep.subr.bf16.mxu0 0
        %1948 = vmatpush1.bf16.msra.mxu0 %v1902
        %1949 = vmatprep.subr.bf16.mxu0 0
        %1950 = vmatpush1.bf16.msra.mxu0 %v1903
        %1951 = vmatprep.subr.bf16.mxu0 0
        %1952 = vmatpush1.bf16.msra.mxu0 %v1904
        %1953 = vmatprep.mubr.bf16.mxu0 %v1791
        %1954 = vmatmul.mubr.bf16.gmra.mrb[0].mxu0 %v1790
        %v1955 = vpop.f32.mrb[0].mxu0
        %v1956 = vadd.f32 0.0, %v1955
        %v1957 = vpop.f32.mrb[0].mxu0
        %v1958 = vpop.f32.mrb[0].mxu0
        %v1959 = vadd.f32 0.0, %v1958
        %v1960 = vpop.f32.mrb[0].mxu0
        %1961 = vdwg.mxu0
        %v1962 = vadd.f32 %v1730, %v1956
        %v1963 = vadd.f32 %v1733, %v1959
        %v1964 = vld [vmem:[%s6] sm:$0x1]
        %v1966 = vlaneseq
        %v1967 = vshrl.u32 %v1966, 7
        %v1968 = vsub.s32 0, %v1967
        %v1969 = vrot.slane %v1964, %v1968
        %v1971 = vadd.f32 %v1962, %v1969
        %v1972 = vadd.f32 %v1963, %v1969
        %vm1973 = vcmp.ge.f32.partialorder %v1971, 0.0
        %vm1974 = vcmp.ge.f32.partialorder %v1972, 0.0
        %v1975 = vmul.f32 %v1971, 0.2
        %v1976 = vmul.f32 %v1972, 0.2
        %v1977 = vsel %vm1973, %v1971, %v1975
        %v1978 = vsel %vm1974, %v1972, %v1976
        %v1979 = vpack.c.bf16 %v1978, %v1977
        %v1980 = vld [vmem:[%s7] sm:$0xf]
        %vm1981 = vcmask 130048
        %v1983 = vsel %vm1981, %v1980, 0
        %1985 = vmatprep.subr.bf16.mxu0 0
        %1986 = vmatpush1.bf16.msra.mxu0 %v1979
        %1987 = vmatprep.subr.bf16.mxu0 0
        %1988 = vmatpush1.bf16.msra.mxu0 0
        %1989 = vmatprep.subr.bf16.mxu0 0
        %1990 = vmatpush1.bf16.msra.mxu0 0
        %1991 = vmatprep.subr.bf16.mxu0 0
        %1992 = vmatpush1.bf16.msra.mxu0 0
        %1993 = vmatprep.subr.bf16.mxu0 0
        %1994 = vmatpush1.bf16.msra.mxu0 0
        %1995 = vmatprep.subr.bf16.mxu0 0
        %1996 = vmatpush1.bf16.msra.mxu0 0
        %1997 = vmatprep.subr.bf16.mxu0 0
        %1998 = vmatpush1.bf16.msra.mxu0 0
        %1999 = vmatprep.subr.bf16.mxu0 0
        %2000 = vmatpush1.bf16.msra.mxu0 0
        %2001 = vmatprep.subr.bf16.mxu0 0
        %2002 = vmatpush1.bf16.msra.mxu0 0
        %2003 = vmatprep.subr.bf16.mxu0 0
        %2004 = vmatpush1.bf16.msra.mxu0 0
        %2005 = vmatprep.subr.bf16.mxu0 0
        %2006 = vmatpush1.bf16.msra.mxu0 0
        %2007 = vmatprep.subr.bf16.mxu0 0
        %2008 = vmatpush1.bf16.msra.mxu0 0
        %2009 = vmatprep.subr.bf16.mxu0 0
        %2010 = vmatpush1.bf16.msra.mxu0 0
        %2011 = vmatprep.subr.bf16.mxu0 0
        %2012 = vmatpush1.bf16.msra.mxu0 0
        %2013 = vmatprep.subr.bf16.mxu0 0
        %2014 = vmatpush1.bf16.msra.mxu0 0
        %2015 = vmatprep.subr.bf16.mxu0 0
        %2016 = vmatpush1.bf16.msra.mxu0 0
        %2017 = vmatprep.mubr.bf16.mxu0 0
        %2018 = vmatmul.mubr.bf16.gmra.mrb[0].mxu0 %v1983
        %v2019 = vpop.f32.mrb[0].mxu0
        %v2020 = vadd.f32 0.0, %v2019
        %v2021 = vpop.f32.mrb[0].mxu0
        %v2022 = vpop.f32.mrb[0].mxu0
        %v2023 = vpop.f32.mrb[0].mxu0
        %2024 = vdwg.mxu0
        %v2025 = vpack.c.bf16 %v2020, %v2020
        %v2026 = vld [vmem:[%s8] sm:$0xf]
        %v2027 = vld [vmem:[%s8 + $0x4] sm:$0xf]
        %v2028 = vld [vmem:[%s8 + $0x8] sm:$0xf]
        %v2029 = vld [vmem:[%s8 + $0xc] sm:$0xf]
        %v2030 = vld [vmem:[%s8 + $0x10] sm:$0xf]
        %v2031 = vld [vmem:[%s8 + $0x14] sm:$0xf]
        %v2032 = vld [vmem:[%s8 + $0x18] sm:$0xf]
        %v2033 = vld [vmem:[%s8 + $0x1c] sm:$0xf]
        %v2034 = vld [vmem:[%s8 + $0x20] sm:$0xf]
        %v2035 = vld [vmem:[%s8 + $0x24] sm:$0xf]
        %v2036 = vld [vmem:[%s8 + $0x28] sm:$0xf]
        %v2037 = vld [vmem:[%s8 + $0x2c] sm:$0xf]
        %v2038 = vld [vmem:[%s8 + $0x30] sm:$0xf]
        %v2039 = vld [vmem:[%s8 + $0x34] sm:$0xf]
        %v2040 = vld [vmem:[%s8 + $0x38] sm:$0xf]
        %v2041 = vld [vmem:[%s8 + $0x3c] sm:$0xf]
        %s2042 = scalar_lea.vmem %s7, 4
        %v2043 = vld [vmem:[%s2042] sm:$0xf]
        %v2045 = vsel %vm1981, %v2043, 0
        %2047 = vmatprep.subr.bf16.mxu0 0
        %2048 = vmatpush1.bf16.msra.mxu0 %v1979
        %2049 = vmatprep.subr.bf16.mxu0 0
        %2050 = vmatpush1.bf16.msra.mxu0 0
        %2051 = vmatprep.subr.bf16.mxu0 0
        %2052 = vmatpush1.bf16.msra.mxu0 0
        %2053 = vmatprep.subr.bf16.mxu0 0
        %2054 = vmatpush1.bf16.msra.mxu0 0
        %2055 = vmatprep.subr.bf16.mxu0 0
        %2056 = vmatpush1.bf16.msra.mxu0 0
        %2057 = vmatprep.subr.bf16.mxu0 0
        %2058 = vmatpush1.bf16.msra.mxu0 0
        %2059 = vmatprep.subr.bf16.mxu0 0
        %2060 = vmatpush1.bf16.msra.mxu0 0
        %2061 = vmatprep.subr.bf16.mxu0 0
        %2062 = vmatpush1.bf16.msra.mxu0 0
        %2063 = vmatprep.subr.bf16.mxu0 0
        %2064 = vmatpush1.bf16.msra.mxu0 0
        %2065 = vmatprep.subr.bf16.mxu0 0
        %2066 = vmatpush1.bf16.msra.mxu0 0
        %2067 = vmatprep.subr.bf16.mxu0 0
        %2068 = vmatpush1.bf16.msra.mxu0 0
        %2069 = vmatprep.subr.bf16.mxu0 0
        %2070 = vmatpush1.bf16.msra.mxu0 0
        %2071 = vmatprep.subr.bf16.mxu0 0
        %2072 = vmatpush1.bf16.msra.mxu0 0
        %2073 = vmatprep.subr.bf16.mxu0 0
        %2074 = vmatpush1.bf16.msra.mxu0 0
        %2075 = vmatprep.subr.bf16.mxu0 0
        %2076 = vmatpush1.bf16.msra.mxu0 0
        %2077 = vmatprep.subr.bf16.mxu0 0
        %2078 = vmatpush1.bf16.msra.mxu0 0
        %2079 = vmatprep.mubr.bf16.mxu0 0
        %2080 = vmatmul.mubr.bf16.gmra.mrb[0].mxu0 %v2045
        %v2081 = vpop.f32.mrb[0].mxu0
        %v2082 = vadd.f32 0.0, %v2081
        %v2083 = vpop.f32.mrb[0].mxu0
        %v2084 = vpop.f32.mrb[0].mxu0
        %v2085 = vpop.f32.mrb[0].mxu0
        %2086 = vdwg.mxu0
        %v2087 = vpack.c.bf16 %v2082, %v2082
        %s2088 = scalar_lea.vmem %s8, 64
        %v2089 = vld [vmem:[%s2088] sm:$0xf]
        %v2090 = vld [vmem:[%s2088 + $0x4] sm:$0xf]
        %v2091 = vld [vmem:[%s2088 + $0x8] sm:$0xf]
        %v2092 = vld [vmem:[%s2088 + $0xc] sm:$0xf]
        %v2093 = vld [vmem:[%s2088 + $0x10] sm:$0xf]
        %v2094 = vld [vmem:[%s2088 + $0x14] sm:$0xf]
        %v2095 = vld [vmem:[%s2088 + $0x18] sm:$0xf]
        %v2096 = vld [vmem:[%s2088 + $0x1c] sm:$0xf]
        %v2097 = vld [vmem:[%s2088 + $0x20] sm:$0xf]
        %v2098 = vld [vmem:[%s2088 + $0x24] sm:$0xf]
        %v2099 = vld [vmem:[%s2088 + $0x28] sm:$0xf]
        %v2100 = vld [vmem:[%s2088 + $0x2c] sm:$0xf]
        %v2101 = vld [vmem:[%s2088 + $0x30] sm:$0xf]
        %v2102 = vld [vmem:[%s2088 + $0x34] sm:$0xf]
        %v2103 = vld [vmem:[%s2088 + $0x38] sm:$0xf]
        %v2104 = vld [vmem:[%s2088 + $0x3c] sm:$0xf]
        %v2121 = vunpack.c.l.b16 %v2089
        %v2122 = vunpack.c.l.b16 %v2090
        %v2123 = vunpack.c.l.b16 %v2091
        %v2124 = vunpack.c.l.b16 %v2092
        %v2125 = vunpack.c.l.b16 %v2093
        %v2126 = vunpack.c.l.b16 %v2094
        %v2127 = vunpack.c.l.b16 %v2095
        %v2128 = vunpack.c.l.b16 %v2096
        %v2129 = vunpack.c.l.b16 %v2097
        %v2130 = vunpack.c.l.b16 %v2098
        %v2131 = vunpack.c.l.b16 %v2099
        %v2132 = vunpack.c.l.b16 %v2100
        %v2133 = vunpack.c.l.b16 %v2101
        %v2134 = vunpack.c.l.b16 %v2102
        %v2135 = vunpack.c.l.b16 %v2103
        %v2136 = vunpack.c.l.b16 %v2104
        %v2137 = vpack.c.b16 %v2122, %v2121
        %v2138 = vpack.c.b16 %v2124, %v2123
        %v2139 = vpack.c.b16 %v2126, %v2125
        %v2140 = vpack.c.b16 %v2128, %v2127
        %v2141 = vpack.c.b16 %v2130, %v2129
        %v2142 = vpack.c.b16 %v2132, %v2131
        %v2143 = vpack.c.b16 %v2134, %v2133
        %v2144 = vpack.c.b16 %v2136, %v2135
        %2153 = vmatprep.subr.bf16.mxu0 0
        %2154 = vmatpush1.bf16.msra.mxu0 %v2137
        %2155 = vmatprep.subr.bf16.mxu0 0
        %2156 = vmatpush1.bf16.msra.mxu0 %v2138
        %2157 = vmatprep.subr.bf16.mxu0 0
        %2158 = vmatpush1.bf16.msra.mxu0 %v2139
        %2159 = vmatprep.subr.bf16.mxu0 0
        %2160 = vmatpush1.bf16.msra.mxu0 %v2140
        %2161 = vmatprep.subr.bf16.mxu0 0
        %2162 = vmatpush1.bf16.msra.mxu0 %v2141
        %2163 = vmatprep.subr.bf16.mxu0 0
        %2164 = vmatpush1.bf16.msra.mxu0 %v2142
        %2165 = vmatprep.subr.bf16.mxu0 0
        %2166 = vmatpush1.bf16.msra.mxu0 %v2143
        %2167 = vmatprep.subr.bf16.mxu0 0
        %2168 = vmatpush1.bf16.msra.mxu0 %v2144
        %2169 = vmatprep.subr.bf16.mxu0 0
        %2170 = vmatpush1.bf16.msra.mxu0 0
        %2171 = vmatprep.subr.bf16.mxu0 0
        %2172 = vmatpush1.bf16.msra.mxu0 0
        %2173 = vmatprep.subr.bf16.mxu0 0
        %2174 = vmatpush1.bf16.msra.mxu0 0
        %2175 = vmatprep.subr.bf16.mxu0 0
        %2176 = vmatpush1.bf16.msra.mxu0 0
        %2177 = vmatprep.subr.bf16.mxu0 0
        %2178 = vmatpush1.bf16.msra.mxu0 0
        %2179 = vmatprep.subr.bf16.mxu0 0
        %2180 = vmatpush1.bf16.msra.mxu0 0
        %2181 = vmatprep.subr.bf16.mxu0 0
        %2182 = vmatpush1.bf16.msra.mxu0 0
        %2183 = vmatprep.subr.bf16.mxu0 0
        %2184 = vmatpush1.bf16.msra.mxu0 0
        %2185 = vmatprep.mubr.bf16.mxu0 0
        %2186 = vmatmul.mubr.bf16.gmra.mrb[0].mxu0 %v2087
        %v2187 = vpop.f32.mrb[0].mxu0
        %v2188 = vadd.f32 0.0, %v2187
        %v2189 = vpop.f32.mrb[0].mxu0
        %v2190 = vpop.f32.mrb[0].mxu0
        %v2191 = vpop.f32.mrb[0].mxu0
        %2192 = vdwg.mxu0
        %v2209 = vunpack.c.l.b16 %v2026
        %v2210 = vunpack.c.l.b16 %v2027
        %v2211 = vunpack.c.l.b16 %v2028
        %v2212 = vunpack.c.l.b16 %v2029
        %v2213 = vunpack.c.l.b16 %v2030
        %v2214 = vunpack.c.l.b16 %v2031
        %v2215 = vunpack.c.l.b16 %v2032
        %v2216 = vunpack.c.l.b16 %v2033
        %v2217 = vunpack.c.l.b16 %v2034
        %v2218 = vunpack.c.l.b16 %v2035
        %v2219 = vunpack.c.l.b16 %v2036
        %v2220 = vunpack.c.l.b16 %v2037
        %v2221 = vunpack.c.l.b16 %v2038
        %v2222 = vunpack.c.l.b16 %v2039
        %v2223 = vunpack.c.l.b16 %v2040
        %v2224 = vunpack.c.l.b16 %v2041
        %v2225 = vpack.c.b16 %v2210, %v2209
        %v2226 = vpack.c.b16 %v2212, %v2211
        %v2227 = vpack.c.b16 %v2214, %v2213
        %v2228 = vpack.c.b16 %v2216, %v2215
        %v2229 = vpack.c.b16 %v2218, %v2217
        %v2230 = vpack.c.b16 %v2220, %v2219
        %v2231 = vpack.c.b16 %v2222, %v2221
        %v2232 = vpack.c.b16 %v2224, %v2223
        %2241 = vmatprep.subr.bf16.mxu0 0
        %2242 = vmatpush1.bf16.msra.mxu0 %v2225
        %2243 = vmatprep.subr.bf16.mxu0 0
        %2244 = vmatpush1.bf16.msra.mxu0 %v2226
        %2245 = vmatprep.subr.bf16.mxu0 0
        %2246 = vmatpush1.bf16.msra.mxu0 %v2227
        %2247 = vmatprep.subr.bf16.mxu0 0
        %2248 = vmatpush1.bf16.msra.mxu0 %v2228
        %2249 = vmatprep.subr.bf16.mxu0 0
        %2250 = vmatpush1.bf16.msra.mxu0 %v2229
        %2251 = vmatprep.subr.bf16.mxu0 0
        %2252 = vmatpush1.bf16.msra.mxu0 %v2230
        %2253 = vmatprep.subr.bf16.mxu0 0
        %2254 = vmatpush1.bf16.msra.mxu0 %v2231
        %2255 = vmatprep.subr.bf16.mxu0 0
        %2256 = vmatpush1.bf16.msra.mxu0 %v2232
        %2257 = vmatprep.subr.bf16.mxu0 0
        %2258 = vmatpush1.bf16.msra.mxu0 0
        %2259 = vmatprep.subr.bf16.mxu0 0
        %2260 = vmatpush1.bf16.msra.mxu0 0
        %2261 = vmatprep.subr.bf16.mxu0 0
        %2262 = vmatpush1.bf16.msra.mxu0 0
        %2263 = vmatprep.subr.bf16.mxu0 0
        %2264 = vmatpush1.bf16.msra.mxu0 0
        %2265 = vmatprep.subr.bf16.mxu0 0
        %2266 = vmatpush1.bf16.msra.mxu0 0
        %2267 = vmatprep.subr.bf16.mxu0 0
        %2268 = vmatpush1.bf16.msra.mxu0 0
        %2269 = vmatprep.subr.bf16.mxu0 0
        %2270 = vmatpush1.bf16.msra.mxu0 0
        %2271 = vmatprep.subr.bf16.mxu0 0
        %2272 = vmatpush1.bf16.msra.mxu0 0
        %2273 = vmatprep.mubr.bf16.mxu0 0
        %2274 = vmatmul.mubr.bf16.gmra.mrb[0].mxu0 %v2025
        %v2275 = vpop.f32.mrb[0].mxu0
        %v2276 = vadd.f32 %v2188, %v2275
        %v2277 = vpop.f32.mrb[0].mxu0
        %v2278 = vpop.f32.mrb[0].mxu0
        %v2279 = vpop.f32.mrb[0].mxu0
        %2280 = vdwg.mxu0
        %s2281 = scalar_lea.vmem %s7, 8
        %v2282 = vld [vmem:[%s2281] sm:$0xf]
        %v2284 = vsel %vm1981, %v2282, 0
        %2286 = vmatprep.subr.bf16.mxu0 0
        %2287 = vmatpush1.bf16.msra.mxu0 %v1979
        %2288 = vmatprep.subr.bf16.mxu0 0
        %2289 = vmatpush1.bf16.msra.mxu0 0
        %2290 = vmatprep.subr.bf16.mxu0 0
        %2291 = vmatpush1.bf16.msra.mxu0 0
        %2292 = vmatprep.subr.bf16.mxu0 0
        %2293 = vmatpush1.bf16.msra.mxu0 0
        %2294 = vmatprep.subr.bf16.mxu0 0
        %2295 = vmatpush1.bf16.msra.mxu0 0
        %2296 = vmatprep.subr.bf16.mxu0 0
        %2297 = vmatpush1.bf16.msra.mxu0 0
        %2298 = vmatprep.subr.bf16.mxu0 0
        %2299 = vmatpush1.bf16.msra.mxu0 0
        %2300 = vmatprep.subr.bf16.mxu0 0
        %2301 = vmatpush1.bf16.msra.mxu0 0
        %2302 = vmatprep.subr.bf16.mxu0 0
        %2303 = vmatpush1.bf16.msra.mxu0 0
        %2304 = vmatprep.subr.bf16.mxu0 0
        %2305 = vmatpush1.bf16.msra.mxu0 0
        %2306 = vmatprep.subr.bf16.mxu0 0
        %2307 = vmatpush1.bf16.msra.mxu0 0
        %2308 = vmatprep.subr.bf16.mxu0 0
        %2309 = vmatpush1.bf16.msra.mxu0 0
        %2310 = vmatprep.subr.bf16.mxu0 0
        %2311 = vmatpush1.bf16.msra.mxu0 0
        %2312 = vmatprep.subr.bf16.mxu0 0
        %2313 = vmatpush1.bf16.msra.mxu0 0
        %2314 = vmatprep.subr.bf16.mxu0 0
        %2315 = vmatpush1.bf16.msra.mxu0 0
        %2316 = vmatprep.subr.bf16.mxu0 0
        %2317 = vmatpush1.bf16.msra.mxu0 0
        %2318 = vmatprep.mubr.bf16.mxu0 0
        %2319 = vmatmul.mubr.bf16.gmra.mrb[0].mxu0 %v2284
        %v2320 = vpop.f32.mrb[0].mxu0
        %v2321 = vadd.f32 0.0, %v2320
        %v2322 = vpop.f32.mrb[0].mxu0
        %v2323 = vpop.f32.mrb[0].mxu0
        %v2324 = vpop.f32.mrb[0].mxu0
        %2325 = vdwg.mxu0
        %v2326 = vpack.c.bf16 %v2321, %v2321
        %s2327 = scalar_lea.vmem %s8, 128
        %v2328 = vld [vmem:[%s2327] sm:$0xf]
        %v2329 = vld [vmem:[%s2327 + $0x4] sm:$0xf]
        %v2330 = vld [vmem:[%s2327 + $0x8] sm:$0xf]
        %v2331 = vld [vmem:[%s2327 + $0xc] sm:$0xf]
        %v2332 = vld [vmem:[%s2327 + $0x10] sm:$0xf]
        %v2333 = vld [vmem:[%s2327 + $0x14] sm:$0xf]
        %v2334 = vld [vmem:[%s2327 + $0x18] sm:$0xf]
        %v2335 = vld [vmem:[%s2327 + $0x1c] sm:$0xf]
        %v2336 = vld [vmem:[%s2327 + $0x20] sm:$0xf]
        %v2337 = vld [vmem:[%s2327 + $0x24] sm:$0xf]
        %v2338 = vld [vmem:[%s2327 + $0x28] sm:$0xf]
        %v2339 = vld [vmem:[%s2327 + $0x2c] sm:$0xf]
        %v2340 = vld [vmem:[%s2327 + $0x30] sm:$0xf]
        %v2341 = vld [vmem:[%s2327 + $0x34] sm:$0xf]
        %v2342 = vld [vmem:[%s2327 + $0x38] sm:$0xf]
        %v2343 = vld [vmem:[%s2327 + $0x3c] sm:$0xf]
        %v2360 = vunpack.c.l.b16 %v2328
        %v2361 = vunpack.c.l.b16 %v2329
        %v2362 = vunpack.c.l.b16 %v2330
        %v2363 = vunpack.c.l.b16 %v2331
        %v2364 = vunpack.c.l.b16 %v2332
        %v2365 = vunpack.c.l.b16 %v2333
        %v2366 = vunpack.c.l.b16 %v2334
        %v2367 = vunpack.c.l.b16 %v2335
        %v2368 = vunpack.c.l.b16 %v2336
        %v2369 = vunpack.c.l.b16 %v2337
        %v2370 = vunpack.c.l.b16 %v2338
        %v2371 = vunpack.c.l.b16 %v2339
        %v2372 = vunpack.c.l.b16 %v2340
        %v2373 = vunpack.c.l.b16 %v2341
        %v2374 = vunpack.c.l.b16 %v2342
        %v2375 = vunpack.c.l.b16 %v2343
        %v2376 = vpack.c.b16 %v2361, %v2360
        %v2377 = vpack.c.b16 %v2363, %v2362
        %v2378 = vpack.c.b16 %v2365, %v2364
        %v2379 = vpack.c.b16 %v2367, %v2366
        %v2380 = vpack.c.b16 %v2369, %v2368
        %v2381 = vpack.c.b16 %v2371, %v2370
        %v2382 = vpack.c.b16 %v2373, %v2372
        %v2383 = vpack.c.b16 %v2375, %v2374
        %2392 = vmatprep.subr.bf16.mxu0 0
        %2393 = vmatpush1.bf16.msra.mxu0 %v2376
        %2394 = vmatprep.subr.bf16.mxu0 0
        %2395 = vmatpush1.bf16.msra.mxu0 %v2377
        %2396 = vmatprep.subr.bf16.mxu0 0
        %2397 = vmatpush1.bf16.msra.mxu0 %v2378
        %2398 = vmatprep.subr.bf16.mxu0 0
        %2399 = vmatpush1.bf16.msra.mxu0 %v2379
        %2400 = vmatprep.subr.bf16.mxu0 0
        %2401 = vmatpush1.bf16.msra.mxu0 %v2380
        %2402 = vmatprep.subr.bf16.mxu0 0
        %2403 = vmatpush1.bf16.msra.mxu0 %v2381
        %2404 = vmatprep.subr.bf16.mxu0 0
        %2405 = vmatpush1.bf16.msra.mxu0 %v2382
        %2406 = vmatprep.subr.bf16.mxu0 0
        %2407 = vmatpush1.bf16.msra.mxu0 %v2383
        %2408 = vmatprep.subr.bf16.mxu0 0
        %2409 = vmatpush1.bf16.msra.mxu0 0
        %2410 = vmatprep.subr.bf16.mxu0 0
        %2411 = vmatpush1.bf16.msra.mxu0 0
        %2412 = vmatprep.subr.bf16.mxu0 0
        %2413 = vmatpush1.bf16.msra.mxu0 0
        %2414 = vmatprep.subr.bf16.mxu0 0
        %2415 = vmatpush1.bf16.msra.mxu0 0
        %2416 = vmatprep.subr.bf16.mxu0 0
        %2417 = vmatpush1.bf16.msra.mxu0 0
        %2418 = vmatprep.subr.bf16.mxu0 0
        %2419 = vmatpush1.bf16.msra.mxu0 0
        %2420 = vmatprep.subr.bf16.mxu0 0
        %2421 = vmatpush1.bf16.msra.mxu0 0
        %2422 = vmatprep.subr.bf16.mxu0 0
        %2423 = vmatpush1.bf16.msra.mxu0 0
        %2424 = vmatprep.mubr.bf16.mxu0 0
        %2425 = vmatmul.mubr.bf16.gmra.mrb[0].mxu0 %v2326
        %v2426 = vpop.f32.mrb[0].mxu0
        %v2427 = vadd.f32 0.0, %v2426
        %v2428 = vpop.f32.mrb[0].mxu0
        %v2429 = vpop.f32.mrb[0].mxu0
        %v2430 = vpop.f32.mrb[0].mxu0
        %2431 = vdwg.mxu0
        %v2432 = vadd.f32 %v2276, %v2427
        %v2433 = vld [vmem:[%s9] sm:$0x1]
        %v2435 = vlaneseq
        %v2436 = vshrl.u32 %v2435, 7
        %v2437 = vsub.s32 0, %v2436
        %v2438 = vrot.slane %v2433, %v2437
        %v2440 = vadd.f32 %v2432, %v2438
        %vm2441 = vcmp.ge.f32.partialorder %v2440, 0.0
        %v2442 = vmul.f32 %v2440, 0.2
        %v2443 = vsel %vm2441, %v2440, %v2442
        %v2444 = vpack.c.bf16 %v2443, %v2443
        %v2445 = vld [vmem:[%s10] sm:$0x3]
        %vm2446 = vcmask 64512
        %v2448 = vsel %vm2446, %v2445, 0
        %vm2450 = vcmask 1043456
        %v2452 = vsel %vm2450, %v2444, 0
        %2454 = vmatprep.subr.bf16.mxu0 0
        %2455 = vmatpush1.bf16.msra.mxu0 %v2452
        %2456 = vmatprep.subr.bf16.mxu0 0
        %2457 = vmatpush1.bf16.msra.mxu0 0
        %2458 = vmatprep.subr.bf16.mxu0 0
        %2459 = vmatpush1.bf16.msra.mxu0 0
        %2460 = vmatprep.subr.bf16.mxu0 0
        %2461 = vmatpush1.bf16.msra.mxu0 0
        %2462 = vmatprep.subr.bf16.mxu0 0
        %2463 = vmatpush1.bf16.msra.mxu0 0
        %2464 = vmatprep.subr.bf16.mxu0 0
        %2465 = vmatpush1.bf16.msra.mxu0 0
        %2466 = vmatprep.subr.bf16.mxu0 0
        %2467 = vmatpush1.bf16.msra.mxu0 0
        %2468 = vmatprep.subr.bf16.mxu0 0
        %2469 = vmatpush1.bf16.msra.mxu0 0
        %2470 = vmatprep.subr.bf16.mxu0 0
        %2471 = vmatpush1.bf16.msra.mxu0 0
        %2472 = vmatprep.subr.bf16.mxu0 0
        %2473 = vmatpush1.bf16.msra.mxu0 0
        %2474 = vmatprep.subr.bf16.mxu0 0
        %2475 = vmatpush1.bf16.msra.mxu0 0
        %2476 = vmatprep.subr.bf16.mxu0 0
        %2477 = vmatpush1.bf16.msra.mxu0 0
        %2478 = vmatprep.subr.bf16.mxu0 0
        %2479 = vmatpush1.bf16.msra.mxu0 0
        %2480 = vmatprep.subr.bf16.mxu0 0
        %2481 = vmatpush1.bf16.msra.mxu0 0
        %2482 = vmatprep.subr.bf16.mxu0 0
        %2483 = vmatpush1.bf16.msra.mxu0 0
        %2484 = vmatprep.subr.bf16.mxu0 0
        %2485 = vmatpush1.bf16.msra.mxu0 0
        %2486 = vmatprep.mubr.bf16.mxu0 0
        %2487 = vmatmul.mubr.bf16.gmra.mrb[0].mxu0 %v2448
        %v2488 = vpop.f32.mrb[0].mxu0
        %v2489 = vadd.f32 0.0, %v2488
        %v2490 = vpop.f32.mrb[0].mxu0
        %v2491 = vpop.f32.mrb[0].mxu0
        %v2492 = vpop.f32.mrb[0].mxu0
        %2493 = vdwg.mxu0
        %v2494 = vpack.c.bf16 %v2489, %v2489
        %v2495 = vld [vmem:[%s11] sm:$0xf]
        %v2496 = vld [vmem:[%s11 + $0x4] sm:$0xf]
        %v2497 = vld [vmem:[%s11 + $0x8] sm:$0xf]
        %v2498 = vld [vmem:[%s11 + $0xc] sm:$0xf]
        %v2499 = vld [vmem:[%s11 + $0x10] sm:$0xf]
        %v2500 = vld [vmem:[%s11 + $0x14] sm:$0xf]
        %v2501 = vld [vmem:[%s11 + $0x18] sm:$0xf]
        %v2502 = vld [vmem:[%s11 + $0x1c] sm:$0xf]
        %v2503 = vld [vmem:[%s11 + $0x20] sm:$0xf]
        %v2504 = vld [vmem:[%s11 + $0x24] sm:$0xf]
        %v2505 = vld [vmem:[%s11 + $0x28] sm:$0xf]
        %v2506 = vld [vmem:[%s11 + $0x2c] sm:$0xf]
        %v2507 = vld [vmem:[%s11 + $0x30] sm:$0xf]
        %v2508 = vld [vmem:[%s11 + $0x34] sm:$0xf]
        %v2509 = vld [vmem:[%s11 + $0x38] sm:$0xf]
        %v2510 = vld [vmem:[%s11 + $0x3c] sm:$0xf]
        %s2511 = scalar_lea.vmem %s10, 2
        %v2512 = vld [vmem:[%s2511] sm:$0x3]
        %v2514 = vsel %vm2446, %v2512, 0
        %2516 = vmatprep.subr.bf16.mxu0 0
        %2517 = vmatpush1.bf16.msra.mxu0 %v2452
        %2518 = vmatprep.subr.bf16.mxu0 0
        %2519 = vmatpush1.bf16.msra.mxu0 0
        %2520 = vmatprep.subr.bf16.mxu0 0
        %2521 = vmatpush1.bf16.msra.mxu0 0
        %2522 = vmatprep.subr.bf16.mxu0 0
        %2523 = vmatpush1.bf16.msra.mxu0 0
        %2524 = vmatprep.subr.bf16.mxu0 0
        %2525 = vmatpush1.bf16.msra.mxu0 0
        %2526 = vmatprep.subr.bf16.mxu0 0
        %2527 = vmatpush1.bf16.msra.mxu0 0
        %2528 = vmatprep.subr.bf16.mxu0 0
        %2529 = vmatpush1.bf16.msra.mxu0 0
        %2530 = vmatprep.subr.bf16.mxu0 0
        %2531 = vmatpush1.bf16.msra.mxu0 0
        %2532 = vmatprep.subr.bf16.mxu0 0
        %2533 = vmatpush1.bf16.msra.mxu0 0
        %2534 = vmatprep.subr.bf16.mxu0 0
        %2535 = vmatpush1.bf16.msra.mxu0 0
        %2536 = vmatprep.subr.bf16.mxu0 0
        %2537 = vmatpush1.bf16.msra.mxu0 0
        %2538 = vmatprep.subr.bf16.mxu0 0
        %2539 = vmatpush1.bf16.msra.mxu0 0
        %2540 = vmatprep.subr.bf16.mxu0 0
        %2541 = vmatpush1.bf16.msra.mxu0 0
        %2542 = vmatprep.subr.bf16.mxu0 0
        %2543 = vmatpush1.bf16.msra.mxu0 0
        %2544 = vmatprep.subr.bf16.mxu0 0
        %2545 = vmatpush1.bf16.msra.mxu0 0
        %2546 = vmatprep.subr.bf16.mxu0 0
        %2547 = vmatpush1.bf16.msra.mxu0 0
        %2548 = vmatprep.mubr.bf16.mxu0 0
        %2549 = vmatmul.mubr.bf16.gmra.mrb[0].mxu0 %v2514
        %v2550 = vpop.f32.mrb[0].mxu0
        %v2551 = vadd.f32 0.0, %v2550
        %v2552 = vpop.f32.mrb[0].mxu0
        %v2553 = vpop.f32.mrb[0].mxu0
        %v2554 = vpop.f32.mrb[0].mxu0
        %2555 = vdwg.mxu0
        %v2556 = vpack.c.bf16 %v2551, %v2551
        %s2557 = scalar_lea.vmem %s11, 64
        %v2558 = vld [vmem:[%s2557] sm:$0xf]
        %v2559 = vld [vmem:[%s2557 + $0x4] sm:$0xf]
        %v2560 = vld [vmem:[%s2557 + $0x8] sm:$0xf]
        %v2561 = vld [vmem:[%s2557 + $0xc] sm:$0xf]
        %v2562 = vld [vmem:[%s2557 + $0x10] sm:$0xf]
        %v2563 = vld [vmem:[%s2557 + $0x14] sm:$0xf]
        %v2564 = vld [vmem:[%s2557 + $0x18] sm:$0xf]
        %v2565 = vld [vmem:[%s2557 + $0x1c] sm:$0xf]
        %v2566 = vld [vmem:[%s2557 + $0x20] sm:$0xf]
        %v2567 = vld [vmem:[%s2557 + $0x24] sm:$0xf]
        %v2568 = vld [vmem:[%s2557 + $0x28] sm:$0xf]
        %v2569 = vld [vmem:[%s2557 + $0x2c] sm:$0xf]
        %v2570 = vld [vmem:[%s2557 + $0x30] sm:$0xf]
        %v2571 = vld [vmem:[%s2557 + $0x34] sm:$0xf]
        %v2572 = vld [vmem:[%s2557 + $0x38] sm:$0xf]
        %v2573 = vld [vmem:[%s2557 + $0x3c] sm:$0xf]
        %v2590 = vunpack.c.l.b16 %v2558
        %v2591 = vunpack.c.l.b16 %v2559
        %v2592 = vunpack.c.l.b16 %v2560
        %v2593 = vunpack.c.l.b16 %v2561
        %v2594 = vunpack.c.l.b16 %v2562
        %v2595 = vunpack.c.l.b16 %v2563
        %v2596 = vunpack.c.l.b16 %v2564
        %v2597 = vunpack.c.l.b16 %v2565
        %v2598 = vunpack.c.l.b16 %v2566
        %v2599 = vunpack.c.l.b16 %v2567
        %v2600 = vunpack.c.l.b16 %v2568
        %v2601 = vunpack.c.l.b16 %v2569
        %v2602 = vunpack.c.l.b16 %v2570
        %v2603 = vunpack.c.l.b16 %v2571
        %v2604 = vunpack.c.l.b16 %v2572
        %v2605 = vunpack.c.l.b16 %v2573
        %v2606 = vpack.c.b16 %v2591, %v2590
        %v2607 = vpack.c.b16 %v2593, %v2592
        %v2608 = vpack.c.b16 %v2595, %v2594
        %v2609 = vpack.c.b16 %v2597, %v2596
        %v2610 = vpack.c.b16 %v2599, %v2598
        %v2611 = vpack.c.b16 %v2601, %v2600
        %v2612 = vpack.c.b16 %v2603, %v2602
        %v2613 = vpack.c.b16 %v2605, %v2604
        %2622 = vmatprep.subr.bf16.mxu0 0
        %2623 = vmatpush1.bf16.msra.mxu0 %v2606
        %2624 = vmatprep.subr.bf16.mxu0 0
        %2625 = vmatpush1.bf16.msra.mxu0 %v2607
        %2626 = vmatprep.subr.bf16.mxu0 0
        %2627 = vmatpush1.bf16.msra.mxu0 %v2608
        %2628 = vmatprep.subr.bf16.mxu0 0
        %2629 = vmatpush1.bf16.msra.mxu0 %v2609
        %2630 = vmatprep.subr.bf16.mxu0 0
        %2631 = vmatpush1.bf16.msra.mxu0 %v2610
        %2632 = vmatprep.subr.bf16.mxu0 0
        %2633 = vmatpush1.bf16.msra.mxu0 %v2611
        %2634 = vmatprep.subr.bf16.mxu0 0
        %2635 = vmatpush1.bf16.msra.mxu0 %v2612
        %2636 = vmatprep.subr.bf16.mxu0 0
        %2637 = vmatpush1.bf16.msra.mxu0 %v2613
        %2638 = vmatprep.subr.bf16.mxu0 0
        %2639 = vmatpush1.bf16.msra.mxu0 0
        %2640 = vmatprep.subr.bf16.mxu0 0
        %2641 = vmatpush1.bf16.msra.mxu0 0
        %2642 = vmatprep.subr.bf16.mxu0 0
        %2643 = vmatpush1.bf16.msra.mxu0 0
        %2644 = vmatprep.subr.bf16.mxu0 0
        %2645 = vmatpush1.bf16.msra.mxu0 0
        %2646 = vmatprep.subr.bf16.mxu0 0
        %2647 = vmatpush1.bf16.msra.mxu0 0
        %2648 = vmatprep.subr.bf16.mxu0 0
        %2649 = vmatpush1.bf16.msra.mxu0 0
        %2650 = vmatprep.subr.bf16.mxu0 0
        %2651 = vmatpush1.bf16.msra.mxu0 0
        %2652 = vmatprep.subr.bf16.mxu0 0
        %2653 = vmatpush1.bf16.msra.mxu0 0
        %2654 = vmatprep.mubr.bf16.mxu0 0
        %2655 = vmatmul.mubr.bf16.gmra.mrb[0].mxu0 %v2556
        %v2656 = vpop.f32.mrb[0].mxu0
        %v2657 = vadd.f32 0.0, %v2656
        %v2658 = vpop.f32.mrb[0].mxu0
        %v2659 = vpop.f32.mrb[0].mxu0
        %v2660 = vpop.f32.mrb[0].mxu0
        %2661 = vdwg.mxu0
        %v2678 = vunpack.c.l.b16 %v2495
        %v2679 = vunpack.c.l.b16 %v2496
        %v2680 = vunpack.c.l.b16 %v2497
        %v2681 = vunpack.c.l.b16 %v2498
        %v2682 = vunpack.c.l.b16 %v2499
        %v2683 = vunpack.c.l.b16 %v2500
        %v2684 = vunpack.c.l.b16 %v2501
        %v2685 = vunpack.c.l.b16 %v2502
        %v2686 = vunpack.c.l.b16 %v2503
        %v2687 = vunpack.c.l.b16 %v2504
        %v2688 = vunpack.c.l.b16 %v2505
        %v2689 = vunpack.c.l.b16 %v2506
        %v2690 = vunpack.c.l.b16 %v2507
        %v2691 = vunpack.c.l.b16 %v2508
        %v2692 = vunpack.c.l.b16 %v2509
        %v2693 = vunpack.c.l.b16 %v2510
        %v2694 = vpack.c.b16 %v2679, %v2678
        %v2695 = vpack.c.b16 %v2681, %v2680
        %v2696 = vpack.c.b16 %v2683, %v2682
        %v2697 = vpack.c.b16 %v2685, %v2684
        %v2698 = vpack.c.b16 %v2687, %v2686
        %v2699 = vpack.c.b16 %v2689, %v2688
        %v2700 = vpack.c.b16 %v2691, %v2690
        %v2701 = vpack.c.b16 %v2693, %v2692
        %2710 = vmatprep.subr.bf16.mxu0 0
        %2711 = vmatpush1.bf16.msra.mxu0 %v2694
        %2712 = vmatprep.subr.bf16.mxu0 0
        %2713 = vmatpush1.bf16.msra.mxu0 %v2695
        %2714 = vmatprep.subr.bf16.mxu0 0
        %2715 = vmatpush1.bf16.msra.mxu0 %v2696
        %2716 = vmatprep.subr.bf16.mxu0 0
        %2717 = vmatpush1.bf16.msra.mxu0 %v2697
        %2718 = vmatprep.subr.bf16.mxu0 0
        %2719 = vmatpush1.bf16.msra.mxu0 %v2698
        %2720 = vmatprep.subr.bf16.mxu0 0
        %2721 = vmatpush1.bf16.msra.mxu0 %v2699
        %2722 = vmatprep.subr.bf16.mxu0 0
        %2723 = vmatpush1.bf16.msra.mxu0 %v2700
        %2724 = vmatprep.subr.bf16.mxu0 0
        %2725 = vmatpush1.bf16.msra.mxu0 %v2701
        %2726 = vmatprep.subr.bf16.mxu0 0
        %2727 = vmatpush1.bf16.msra.mxu0 0
        %2728 = vmatprep.subr.bf16.mxu0 0
        %2729 = vmatpush1.bf16.msra.mxu0 0
        %2730 = vmatprep.subr.bf16.mxu0 0
        %2731 = vmatpush1.bf16.msra.mxu0 0
        %2732 = vmatprep.subr.bf16.mxu0 0
        %2733 = vmatpush1.bf16.msra.mxu0 0
        %2734 = vmatprep.subr.bf16.mxu0 0
        %2735 = vmatpush1.bf16.msra.mxu0 0
        %2736 = vmatprep.subr.bf16.mxu0 0
        %2737 = vmatpush1.bf16.msra.mxu0 0
        %2738 = vmatprep.subr.bf16.mxu0 0
        %2739 = vmatpush1.bf16.msra.mxu0 0
        %2740 = vmatprep.subr.bf16.mxu0 0
        %2741 = vmatpush1.bf16.msra.mxu0 0
        %2742 = vmatprep.mubr.bf16.mxu0 0
        %2743 = vmatmul.mubr.bf16.gmra.mrb[0].mxu0 %v2494
        %v2744 = vpop.f32.mrb[0].mxu0
        %v2745 = vadd.f32 %v2657, %v2744
        %v2746 = vpop.f32.mrb[0].mxu0
        %v2747 = vpop.f32.mrb[0].mxu0
        %v2748 = vpop.f32.mrb[0].mxu0
        %2749 = vdwg.mxu0
        %s2750 = scalar_lea.vmem %s10, 4
        %v2751 = vld [vmem:[%s2750] sm:$0x3]
        %v2753 = vsel %vm2446, %v2751, 0
        %2755 = vmatprep.subr.bf16.mxu0 0
        %2756 = vmatpush1.bf16.msra.mxu0 %v2452
        %2757 = vmatprep.subr.bf16.mxu0 0
        %2758 = vmatpush1.bf16.msra.mxu0 0
        %2759 = vmatprep.subr.bf16.mxu0 0
        %2760 = vmatpush1.bf16.msra.mxu0 0
        %2761 = vmatprep.subr.bf16.mxu0 0
        %2762 = vmatpush1.bf16.msra.mxu0 0
        %2763 = vmatprep.subr.bf16.mxu0 0
        %2764 = vmatpush1.bf16.msra.mxu0 0
        %2765 = vmatprep.subr.bf16.mxu0 0
        %2766 = vmatpush1.bf16.msra.mxu0 0
        %2767 = vmatprep.subr.bf16.mxu0 0
        %2768 = vmatpush1.bf16.msra.mxu0 0
        %2769 = vmatprep.subr.bf16.mxu0 0
        %2770 = vmatpush1.bf16.msra.mxu0 0
        %2771 = vmatprep.subr.bf16.mxu0 0
        %2772 = vmatpush1.bf16.msra.mxu0 0
        %2773 = vmatprep.subr.bf16.mxu0 0
        %2774 = vmatpush1.bf16.msra.mxu0 0
        %2775 = vmatprep.subr.bf16.mxu0 0
        %2776 = vmatpush1.bf16.msra.mxu0 0
        %2777 = vmatprep.subr.bf16.mxu0 0
        %2778 = vmatpush1.bf16.msra.mxu0 0
        %2779 = vmatprep.subr.bf16.mxu0 0
        %2780 = vmatpush1.bf16.msra.mxu0 0
        %2781 = vmatprep.subr.bf16.mxu0 0
        %2782 = vmatpush1.bf16.msra.mxu0 0
        %2783 = vmatprep.subr.bf16.mxu0 0
        %2784 = vmatpush1.bf16.msra.mxu0 0
        %2785 = vmatprep.subr.bf16.mxu0 0
        %2786 = vmatpush1.bf16.msra.mxu0 0
        %2787 = vmatprep.mubr.bf16.mxu0 0
        %2788 = vmatmul.mubr.bf16.gmra.mrb[0].mxu0 %v2753
        %v2789 = vpop.f32.mrb[0].mxu0
        %v2790 = vadd.f32 0.0, %v2789
        %v2791 = vpop.f32.mrb[0].mxu0
        %v2792 = vpop.f32.mrb[0].mxu0
        %v2793 = vpop.f32.mrb[0].mxu0
        %2794 = vdwg.mxu0
        %v2795 = vpack.c.bf16 %v2790, %v2790
        %s2796 = scalar_lea.vmem %s11, 128
        %v2797 = vld [vmem:[%s2796] sm:$0xf]
        %v2798 = vld [vmem:[%s2796 + $0x4] sm:$0xf]
        %v2799 = vld [vmem:[%s2796 + $0x8] sm:$0xf]
        %v2800 = vld [vmem:[%s2796 + $0xc] sm:$0xf]
        %v2801 = vld [vmem:[%s2796 + $0x10] sm:$0xf]
        %v2802 = vld [vmem:[%s2796 + $0x14] sm:$0xf]
        %v2803 = vld [vmem:[%s2796 + $0x18] sm:$0xf]
        %v2804 = vld [vmem:[%s2796 + $0x1c] sm:$0xf]
        %v2805 = vld [vmem:[%s2796 + $0x20] sm:$0xf]
        %v2806 = vld [vmem:[%s2796 + $0x24] sm:$0xf]
        %v2807 = vld [vmem:[%s2796 + $0x28] sm:$0xf]
        %v2808 = vld [vmem:[%s2796 + $0x2c] sm:$0xf]
        %v2809 = vld [vmem:[%s2796 + $0x30] sm:$0xf]
        %v2810 = vld [vmem:[%s2796 + $0x34] sm:$0xf]
        %v2811 = vld [vmem:[%s2796 + $0x38] sm:$0xf]
        %v2812 = vld [vmem:[%s2796 + $0x3c] sm:$0xf]
        %v2829 = vunpack.c.l.b16 %v2797
        %v2830 = vunpack.c.l.b16 %v2798
        %v2831 = vunpack.c.l.b16 %v2799
        %v2832 = vunpack.c.l.b16 %v2800
        %v2833 = vunpack.c.l.b16 %v2801
        %v2834 = vunpack.c.l.b16 %v2802
        %v2835 = vunpack.c.l.b16 %v2803
        %v2836 = vunpack.c.l.b16 %v2804
        %v2837 = vunpack.c.l.b16 %v2805
        %v2838 = vunpack.c.l.b16 %v2806
        %v2839 = vunpack.c.l.b16 %v2807
        %v2840 = vunpack.c.l.b16 %v2808
        %v2841 = vunpack.c.l.b16 %v2809
        %v2842 = vunpack.c.l.b16 %v2810
        %v2843 = vunpack.c.l.b16 %v2811
        %v2844 = vunpack.c.l.b16 %v2812
        %v2845 = vpack.c.b16 %v2830, %v2829
        %v2846 = vpack.c.b16 %v2832, %v2831
        %v2847 = vpack.c.b16 %v2834, %v2833
        %v2848 = vpack.c.b16 %v2836, %v2835
        %v2849 = vpack.c.b16 %v2838, %v2837
        %v2850 = vpack.c.b16 %v2840, %v2839
        %v2851 = vpack.c.b16 %v2842, %v2841
        %v2852 = vpack.c.b16 %v2844, %v2843
        %2861 = vmatprep.subr.bf16.mxu0 0
        %2862 = vmatpush1.bf16.msra.mxu0 %v2845
        %2863 = vmatprep.subr.bf16.mxu0 0
        %2864 = vmatpush1.bf16.msra.mxu0 %v2846
        %2865 = vmatprep.subr.bf16.mxu0 0
        %2866 = vmatpush1.bf16.msra.mxu0 %v2847
        %2867 = vmatprep.subr.bf16.mxu0 0
        %2868 = vmatpush1.bf16.msra.mxu0 %v2848
        %2869 = vmatprep.subr.bf16.mxu0 0
        %2870 = vmatpush1.bf16.msra.mxu0 %v2849
        %2871 = vmatprep.subr.bf16.mxu0 0
        %2872 = vmatpush1.bf16.msra.mxu0 %v2850
        %2873 = vmatprep.subr.bf16.mxu0 0
        %2874 = vmatpush1.bf16.msra.mxu0 %v2851
        %2875 = vmatprep.subr.bf16.mxu0 0
        %2876 = vmatpush1.bf16.msra.mxu0 %v2852
        %2877 = vmatprep.subr.bf16.mxu0 0
        %2878 = vmatpush1.bf16.msra.mxu0 0
        %2879 = vmatprep.subr.bf16.mxu0 0
        %2880 = vmatpush1.bf16.msra.mxu0 0
        %2881 = vmatprep.subr.bf16.mxu0 0
        %2882 = vmatpush1.bf16.msra.mxu0 0
        %2883 = vmatprep.subr.bf16.mxu0 0
        %2884 = vmatpush1.bf16.msra.mxu0 0
        %2885 = vmatprep.subr.bf16.mxu0 0
        %2886 = vmatpush1.bf16.msra.mxu0 0
        %2887 = vmatprep.subr.bf16.mxu0 0
        %2888 = vmatpush1.bf16.msra.mxu0 0
        %2889 = vmatprep.subr.bf16.mxu0 0
        %2890 = vmatpush1.bf16.msra.mxu0 0
        %2891 = vmatprep.subr.bf16.mxu0 0
        %2892 = vmatpush1.bf16.msra.mxu0 0
        %2893 = vmatprep.mubr.bf16.mxu0 0
        %2894 = vmatmul.mubr.bf16.gmra.mrb[0].mxu0 %v2795
        %v2895 = vpop.f32.mrb[0].mxu0
        %v2896 = vadd.f32 0.0, %v2895
        %v2897 = vpop.f32.mrb[0].mxu0
        %v2898 = vpop.f32.mrb[0].mxu0
        %v2899 = vpop.f32.mrb[0].mxu0
        %2900 = vdwg.mxu0
        %v2901 = vadd.f32 %v2745, %v2896
        %v2902 = vld [vmem:[%s12] sm:$0x1]
        %v2904 = vlaneseq
        %v2905 = vshrl.u32 %v2904, 7
        %v2906 = vsub.s32 0, %v2905
        %v2907 = vrot.slane %v2902, %v2906
        %v2909 = vadd.f32 %v2901, %v2907
        %vm2910 = vcmp.ge.f32.partialorder %v2909, 0.0
        %v2911 = vmul.f32 %v2909, 0.2
        %v2912 = vsel %vm2910, %v2909, %v2911
        %v2913 = vpack.c.bf16 %v2912, %v2912
        %v2914 = vld [vmem:[%s13] sm:$0x3]
        %vm2915 = vcmask 31744
        %v2917 = vsel %vm2915, %v2914, 0
        %vm2919 = vcmask 1041408
        %v2921 = vsel %vm2919, %v2913, 0
        %2923 = vmatprep.subr.bf16.mxu0 0
        %2924 = vmatpush1.bf16.msra.mxu0 %v2921
        %2925 = vmatprep.subr.bf16.mxu0 0
        %2926 = vmatpush1.bf16.msra.mxu0 0
        %2927 = vmatprep.subr.bf16.mxu0 0
        %2928 = vmatpush1.bf16.msra.mxu0 0
        %2929 = vmatprep.subr.bf16.mxu0 0
        %2930 = vmatpush1.bf16.msra.mxu0 0
        %2931 = vmatprep.subr.bf16.mxu0 0
        %2932 = vmatpush1.bf16.msra.mxu0 0
        %2933 = vmatprep.subr.bf16.mxu0 0
        %2934 = vmatpush1.bf16.msra.mxu0 0
        %2935 = vmatprep.subr.bf16.mxu0 0
        %2936 = vmatpush1.bf16.msra.mxu0 0
        %2937 = vmatprep.subr.bf16.mxu0 0
        %2938 = vmatpush1.bf16.msra.mxu0 0
        %2939 = vmatprep.subr.bf16.mxu0 0
        %2940 = vmatpush1.bf16.msra.mxu0 0
        %2941 = vmatprep.subr.bf16.mxu0 0
        %2942 = vmatpush1.bf16.msra.mxu0 0
        %2943 = vmatprep.subr.bf16.mxu0 0
        %2944 = vmatpush1.bf16.msra.mxu0 0
        %2945 = vmatprep.subr.bf16.mxu0 0
        %2946 = vmatpush1.bf16.msra.mxu0 0
        %2947 = vmatprep.subr.bf16.mxu0 0
        %2948 = vmatpush1.bf16.msra.mxu0 0
        %2949 = vmatprep.subr.bf16.mxu0 0
        %2950 = vmatpush1.bf16.msra.mxu0 0
        %2951 = vmatprep.subr.bf16.mxu0 0
        %2952 = vmatpush1.bf16.msra.mxu0 0
        %2953 = vmatprep.subr.bf16.mxu0 0
        %2954 = vmatpush1.bf16.msra.mxu0 0
        %2955 = vmatprep.mubr.bf16.mxu0 0
        %2956 = vmatmul.mubr.bf16.gmra.mrb[0].mxu0 %v2917
        %v2957 = vpop.f32.mrb[0].mxu0
        %v2958 = vadd.f32 0.0, %v2957
        %v2959 = vpop.f32.mrb[0].mxu0
        %v2960 = vpop.f32.mrb[0].mxu0
        %v2961 = vpop.f32.mrb[0].mxu0
        %2962 = vdwg.mxu0
        %v2963 = vpack.c.bf16 %v2958, %v2958
        %v2964 = vld [vmem:[%s14] sm:$0xff]
        %v2965 = vld [vmem:[%s14 + $0x8] sm:$0xff]
        %v2966 = vld [vmem:[%s14 + $0x10] sm:$0xff]
        %v2967 = vld [vmem:[%s14 + $0x18] sm:$0xff]
        %v2968 = vld [vmem:[%s14 + $0x20] sm:$0xff]
        %v2969 = vld [vmem:[%s14 + $0x28] sm:$0xff]
        %v2970 = vld [vmem:[%s14 + $0x30] sm:$0xff]
        %v2971 = vld [vmem:[%s14 + $0x38] sm:$0xff]
        %v2972 = vld [vmem:[%s14 + $0x40] sm:$0xff]
        %v2973 = vld [vmem:[%s14 + $0x48] sm:$0xff]
        %v2974 = vld [vmem:[%s14 + $0x50] sm:$0xff]
        %v2975 = vld [vmem:[%s14 + $0x58] sm:$0xff]
        %v2976 = vld [vmem:[%s14 + $0x60] sm:$0xff]
        %v2977 = vld [vmem:[%s14 + $0x68] sm:$0xff]
        %v2978 = vld [vmem:[%s14 + $0x70] sm:$0xff]
        %v2979 = vld [vmem:[%s14 + $0x78] sm:$0xff]
        %s2980 = scalar_lea.vmem %s13, 2
        %v2981 = vld [vmem:[%s2980] sm:$0x3]
        %v2983 = vsel %vm2915, %v2981, 0
        %2985 = vmatprep.subr.bf16.mxu0 0
        %2986 = vmatpush1.bf16.msra.mxu0 %v2921
        %2987 = vmatprep.subr.bf16.mxu0 0
        %2988 = vmatpush1.bf16.msra.mxu0 0
        %2989 = vmatprep.subr.bf16.mxu0 0
        %2990 = vmatpush1.bf16.msra.mxu0 0
        %2991 = vmatprep.subr.bf16.mxu0 0
        %2992 = vmatpush1.bf16.msra.mxu0 0
        %2993 = vmatprep.subr.bf16.mxu0 0
        %2994 = vmatpush1.bf16.msra.mxu0 0
        %2995 = vmatprep.subr.bf16.mxu0 0
        %2996 = vmatpush1.bf16.msra.mxu0 0
        %2997 = vmatprep.subr.bf16.mxu0 0
        %2998 = vmatpush1.bf16.msra.mxu0 0
        %2999 = vmatprep.subr.bf16.mxu0 0
        %3000 = vmatpush1.bf16.msra.mxu0 0
        %3001 = vmatprep.subr.bf16.mxu0 0
        %3002 = vmatpush1.bf16.msra.mxu0 0
        %3003 = vmatprep.subr.bf16.mxu0 0
        %3004 = vmatpush1.bf16.msra.mxu0 0
        %3005 = vmatprep.subr.bf16.mxu0 0
        %3006 = vmatpush1.bf16.msra.mxu0 0
        %3007 = vmatprep.subr.bf16.mxu0 0
        %3008 = vmatpush1.bf16.msra.mxu0 0
        %3009 = vmatprep.subr.bf16.mxu0 0
        %3010 = vmatpush1.bf16.msra.mxu0 0
        %3011 = vmatprep.subr.bf16.mxu0 0
        %3012 = vmatpush1.bf16.msra.mxu0 0
        %3013 = vmatprep.subr.bf16.mxu0 0
        %3014 = vmatpush1.bf16.msra.mxu0 0
        %3015 = vmatprep.subr.bf16.mxu0 0
        %3016 = vmatpush1.bf16.msra.mxu0 0
        %3017 = vmatprep.mubr.bf16.mxu0 0
        %3018 = vmatmul.mubr.bf16.gmra.mrb[0].mxu0 %v2983
        %v3019 = vpop.f32.mrb[0].mxu0
        %v3020 = vadd.f32 0.0, %v3019
        %v3021 = vpop.f32.mrb[0].mxu0
        %v3022 = vpop.f32.mrb[0].mxu0
        %v3023 = vpop.f32.mrb[0].mxu0
        %3024 = vdwg.mxu0
        %v3025 = vpack.c.bf16 %v3020, %v3020
        %s3026 = scalar_lea.vmem %s14, 128
        %v3027 = vld [vmem:[%s3026] sm:$0xff]
        %v3028 = vld [vmem:[%s3026 + $0x8] sm:$0xff]
        %v3029 = vld [vmem:[%s3026 + $0x10] sm:$0xff]
        %v3030 = vld [vmem:[%s3026 + $0x18] sm:$0xff]
        %v3031 = vld [vmem:[%s3026 + $0x20] sm:$0xff]
        %v3032 = vld [vmem:[%s3026 + $0x28] sm:$0xff]
        %v3033 = vld [vmem:[%s3026 + $0x30] sm:$0xff]
        %v3034 = vld [vmem:[%s3026 + $0x38] sm:$0xff]
        %v3035 = vld [vmem:[%s3026 + $0x40] sm:$0xff]
        %v3036 = vld [vmem:[%s3026 + $0x48] sm:$0xff]
        %v3037 = vld [vmem:[%s3026 + $0x50] sm:$0xff]
        %v3038 = vld [vmem:[%s3026 + $0x58] sm:$0xff]
        %v3039 = vld [vmem:[%s3026 + $0x60] sm:$0xff]
        %v3040 = vld [vmem:[%s3026 + $0x68] sm:$0xff]
        %v3041 = vld [vmem:[%s3026 + $0x70] sm:$0xff]
        %v3042 = vld [vmem:[%s3026 + $0x78] sm:$0xff]
        %v3059 = vunpack.c.l.b16 %v3027
        %v3060 = vunpack.c.h.b16 %v3027
        %v3061 = vunpack.c.l.b16 %v3028
        %v3062 = vunpack.c.h.b16 %v3028
        %v3063 = vunpack.c.l.b16 %v3029
        %v3064 = vunpack.c.h.b16 %v3029
        %v3065 = vunpack.c.l.b16 %v3030
        %v3066 = vunpack.c.h.b16 %v3030
        %v3067 = vunpack.c.l.b16 %v3031
        %v3068 = vunpack.c.h.b16 %v3031
        %v3069 = vunpack.c.l.b16 %v3032
        %v3070 = vunpack.c.h.b16 %v3032
        %v3071 = vunpack.c.l.b16 %v3033
        %v3072 = vunpack.c.h.b16 %v3033
        %v3073 = vunpack.c.l.b16 %v3034
        %v3074 = vunpack.c.h.b16 %v3034
        %v3075 = vunpack.c.l.b16 %v3035
        %v3076 = vunpack.c.h.b16 %v3035
        %v3077 = vunpack.c.l.b16 %v3036
        %v3078 = vunpack.c.h.b16 %v3036
        %v3079 = vunpack.c.l.b16 %v3037
        %v3080 = vunpack.c.h.b16 %v3037
        %v3081 = vunpack.c.l.b16 %v3038
        %v3082 = vunpack.c.h.b16 %v3038
        %v3083 = vunpack.c.l.b16 %v3039
        %v3084 = vunpack.c.h.b16 %v3039
        %v3085 = vunpack.c.l.b16 %v3040
        %v3086 = vunpack.c.h.b16 %v3040
        %v3087 = vunpack.c.l.b16 %v3041
        %v3088 = vunpack.c.h.b16 %v3041
        %v3089 = vunpack.c.l.b16 %v3042
        %v3090 = vunpack.c.h.b16 %v3042
        %v3091 = vpack.c.b16 %v3061, %v3059
        %v3092 = vpack.c.b16 %v3062, %v3060
        %v3093 = vpack.c.b16 %v3065, %v3063
        %v3094 = vpack.c.b16 %v3066, %v3064
        %v3095 = vpack.c.b16 %v3069, %v3067
        %v3096 = vpack.c.b16 %v3070, %v3068
        %v3097 = vpack.c.b16 %v3073, %v3071
        %v3098 = vpack.c.b16 %v3074, %v3072
        %v3099 = vpack.c.b16 %v3077, %v3075
        %v3100 = vpack.c.b16 %v3078, %v3076
        %v3101 = vpack.c.b16 %v3081, %v3079
        %v3102 = vpack.c.b16 %v3082, %v3080
        %v3103 = vpack.c.b16 %v3085, %v3083
        %v3104 = vpack.c.b16 %v3086, %v3084
        %v3105 = vpack.c.b16 %v3089, %v3087
        %v3106 = vpack.c.b16 %v3090, %v3088
        %3123 = vmatprep.subr.bf16.mxu0 %v3092
        %3124 = vmatpush1.bf16.msra.mxu0 %v3091
        %3125 = vmatprep.subr.bf16.mxu0 %v3094
        %3126 = vmatpush1.bf16.msra.mxu0 %v3093
        %3127 = vmatprep.subr.bf16.mxu0 %v3096
        %3128 = vmatpush1.bf16.msra.mxu0 %v3095
        %3129 = vmatprep.subr.bf16.mxu0 %v3098
        %3130 = vmatpush1.bf16.msra.mxu0 %v3097
        %3131 = vmatprep.subr.bf16.mxu0 %v3100
        %3132 = vmatpush1.bf16.msra.mxu0 %v3099
        %3133 = vmatprep.subr.bf16.mxu0 %v3102
        %3134 = vmatpush1.bf16.msra.mxu0 %v3101
        %3135 = vmatprep.subr.bf16.mxu0 %v3104
        %3136 = vmatpush1.bf16.msra.mxu0 %v3103
        %3137 = vmatprep.subr.bf16.mxu0 %v3106
        %3138 = vmatpush1.bf16.msra.mxu0 %v3105
        %3139 = vmatprep.subr.bf16.mxu0 0
        %3140 = vmatpush1.bf16.msra.mxu0 0
        %3141 = vmatprep.subr.bf16.mxu0 0
        %3142 = vmatpush1.bf16.msra.mxu0 0
        %3143 = vmatprep.subr.bf16.mxu0 0
        %3144 = vmatpush1.bf16.msra.mxu0 0
        %3145 = vmatprep.subr.bf16.mxu0 0
        %3146 = vmatpush1.bf16.msra.mxu0 0
        %3147 = vmatprep.subr.bf16.mxu0 0
        %3148 = vmatpush1.bf16.msra.mxu0 0
        %3149 = vmatprep.subr.bf16.mxu0 0
        %3150 = vmatpush1.bf16.msra.mxu0 0
        %3151 = vmatprep.subr.bf16.mxu0 0
        %3152 = vmatpush1.bf16.msra.mxu0 0
        %3153 = vmatprep.subr.bf16.mxu0 0
        %3154 = vmatpush1.bf16.msra.mxu0 0
        %3155 = vmatprep.mubr.bf16.mxu0 0
        %3156 = vmatmul.mubr.bf16.gmra.mrb[0].mxu0 %v3025
        %v3157 = vpop.f32.mrb[0].mxu0
        %v3158 = vadd.f32 0.0, %v3157
        %v3159 = vpop.f32.mrb[0].mxu0
        %v3160 = vadd.f32 0.0, %v3159
        %v3161 = vpop.f32.mrb[0].mxu0
        %v3162 = vpop.f32.mrb[0].mxu0
        %3163 = vdwg.mxu0
        %v3180 = vunpack.c.l.b16 %v2964
        %v3181 = vunpack.c.h.b16 %v2964
        %v3182 = vunpack.c.l.b16 %v2965
        %v3183 = vunpack.c.h.b16 %v2965
        %v3184 = vunpack.c.l.b16 %v2966
        %v3185 = vunpack.c.h.b16 %v2966
        %v3186 = vunpack.c.l.b16 %v2967
        %v3187 = vunpack.c.h.b16 %v2967
        %v3188 = vunpack.c.l.b16 %v2968
        %v3189 = vunpack.c.h.b16 %v2968
        %v3190 = vunpack.c.l.b16 %v2969
        %v3191 = vunpack.c.h.b16 %v2969
        %v3192 = vunpack.c.l.b16 %v2970
        %v3193 = vunpack.c.h.b16 %v2970
        %v3194 = vunpack.c.l.b16 %v2971
        %v3195 = vunpack.c.h.b16 %v2971
        %v3196 = vunpack.c.l.b16 %v2972
        %v3197 = vunpack.c.h.b16 %v2972
        %v3198 = vunpack.c.l.b16 %v2973
        %v3199 = vunpack.c.h.b16 %v2973
        %v3200 = vunpack.c.l.b16 %v2974
        %v3201 = vunpack.c.h.b16 %v2974
        %v3202 = vunpack.c.l.b16 %v2975
        %v3203 = vunpack.c.h.b16 %v2975
        %v3204 = vunpack.c.l.b16 %v2976
        %v3205 = vunpack.c.h.b16 %v2976
        %v3206 = vunpack.c.l.b16 %v2977
        %v3207 = vunpack.c.h.b16 %v2977
        %v3208 = vunpack.c.l.b16 %v2978
        %v3209 = vunpack.c.h.b16 %v2978
        %v3210 = vunpack.c.l.b16 %v2979
        %v3211 = vunpack.c.h.b16 %v2979
        %v3212 = vpack.c.b16 %v3182, %v3180
        %v3213 = vpack.c.b16 %v3183, %v3181
        %v3214 = vpack.c.b16 %v3186, %v3184
        %v3215 = vpack.c.b16 %v3187, %v3185
        %v3216 = vpack.c.b16 %v3190, %v3188
        %v3217 = vpack.c.b16 %v3191, %v3189
        %v3218 = vpack.c.b16 %v3194, %v3192
        %v3219 = vpack.c.b16 %v3195, %v3193
        %v3220 = vpack.c.b16 %v3198, %v3196
        %v3221 = vpack.c.b16 %v3199, %v3197
        %v3222 = vpack.c.b16 %v3202, %v3200
        %v3223 = vpack.c.b16 %v3203, %v3201
        %v3224 = vpack.c.b16 %v3206, %v3204
        %v3225 = vpack.c.b16 %v3207, %v3205
        %v3226 = vpack.c.b16 %v3210, %v3208
        %v3227 = vpack.c.b16 %v3211, %v3209
        %3244 = vmatprep.subr.bf16.mxu0 %v3213
        %3245 = vmatpush1.bf16.msra.mxu0 %v3212
        %3246 = vmatprep.subr.bf16.mxu0 %v3215
        %3247 = vmatpush1.bf16.msra.mxu0 %v3214
        %3248 = vmatprep.subr.bf16.mxu0 %v3217
        %3249 = vmatpush1.bf16.msra.mxu0 %v3216
        %3250 = vmatprep.subr.bf16.mxu0 %v3219
        %3251 = vmatpush1.bf16.msra.mxu0 %v3218
        %3252 = vmatprep.subr.bf16.mxu0 %v3221
        %3253 = vmatpush1.bf16.msra.mxu0 %v3220
        %3254 = vmatprep.subr.bf16.mxu0 %v3223
        %3255 = vmatpush1.bf16.msra.mxu0 %v3222
        %3256 = vmatprep.subr.bf16.mxu0 %v3225
        %3257 = vmatpush1.bf16.msra.mxu0 %v3224
        %3258 = vmatprep.subr.bf16.mxu0 %v3227
        %3259 = vmatpush1.bf16.msra.mxu0 %v3226
        %3260 = vmatprep.subr.bf16.mxu0 0
        %3261 = vmatpush1.bf16.msra.mxu0 0
        %3262 = vmatprep.subr.bf16.mxu0 0
        %3263 = vmatpush1.bf16.msra.mxu0 0
        %3264 = vmatprep.subr.bf16.mxu0 0
        %3265 = vmatpush1.bf16.msra.mxu0 0
        %3266 = vmatprep.subr.bf16.mxu0 0
        %3267 = vmatpush1.bf16.msra.mxu0 0
        %3268 = vmatprep.subr.bf16.mxu0 0
        %3269 = vmatpush1.bf16.msra.mxu0 0
        %3270 = vmatprep.subr.bf16.mxu0 0
        %3271 = vmatpush1.bf16.msra.mxu0 0
        %3272 = vmatprep.subr.bf16.mxu0 0
        %3273 = vmatpush1.bf16.msra.mxu0 0
        %3274 = vmatprep.subr.bf16.mxu0 0
        %3275 = vmatpush1.bf16.msra.mxu0 0
        %3276 = vmatprep.mubr.bf16.mxu0 0
        %3277 = vmatmul.mubr.bf16.gmra.mrb[0].mxu0 %v2963
        %v3278 = vpop.f32.mrb[0].mxu0
        %v3279 = vadd.f32 %v3158, %v3278
        %v3280 = vpop.f32.mrb[0].mxu0
        %v3281 = vadd.f32 %v3160, %v3280
        %v3282 = vpop.f32.mrb[0].mxu0
        %v3283 = vpop.f32.mrb[0].mxu0
        %3284 = vdwg.mxu0
        %s3285 = scalar_lea.vmem %s13, 4
        %v3286 = vld [vmem:[%s3285] sm:$0x3]
        %v3288 = vsel %vm2915, %v3286, 0
        %3290 = vmatprep.subr.bf16.mxu0 0
        %3291 = vmatpush1.bf16.msra.mxu0 %v2921
        %3292 = vmatprep.subr.bf16.mxu0 0
        %3293 = vmatpush1.bf16.msra.mxu0 0
        %3294 = vmatprep.subr.bf16.mxu0 0
        %3295 = vmatpush1.bf16.msra.mxu0 0
        %3296 = vmatprep.subr.bf16.mxu0 0
        %3297 = vmatpush1.bf16.msra.mxu0 0
        %3298 = vmatprep.subr.bf16.mxu0 0
        %3299 = vmatpush1.bf16.msra.mxu0 0
        %3300 = vmatprep.subr.bf16.mxu0 0
        %3301 = vmatpush1.bf16.msra.mxu0 0
        %3302 = vmatprep.subr.bf16.mxu0 0
        %3303 = vmatpush1.bf16.msra.mxu0 0
        %3304 = vmatprep.subr.bf16.mxu0 0
        %3305 = vmatpush1.bf16.msra.mxu0 0
        %3306 = vmatprep.subr.bf16.mxu0 0
        %3307 = vmatpush1.bf16.msra.mxu0 0
        %3308 = vmatprep.subr.bf16.mxu0 0
        %3309 = vmatpush1.bf16.msra.mxu0 0
        %3310 = vmatprep.subr.bf16.mxu0 0
        %3311 = vmatpush1.bf16.msra.mxu0 0
        %3312 = vmatprep.subr.bf16.mxu0 0
        %3313 = vmatpush1.bf16.msra.mxu0 0
        %3314 = vmatprep.subr.bf16.mxu0 0
        %3315 = vmatpush1.bf16.msra.mxu0 0
        %3316 = vmatprep.subr.bf16.mxu0 0
        %3317 = vmatpush1.bf16.msra.mxu0 0
        %3318 = vmatprep.subr.bf16.mxu0 0
        %3319 = vmatpush1.bf16.msra.mxu0 0
        %3320 = vmatprep.subr.bf16.mxu0 0
        %3321 = vmatpush1.bf16.msra.mxu0 0
        %3322 = vmatprep.mubr.bf16.mxu0 0
        %3323 = vmatmul.mubr.bf16.gmra.mrb[0].mxu0 %v3288
        %v3324 = vpop.f32.mrb[0].mxu0
        %v3325 = vadd.f32 0.0, %v3324
        %v3326 = vpop.f32.mrb[0].mxu0
        %v3327 = vpop.f32.mrb[0].mxu0
        %v3328 = vpop.f32.mrb[0].mxu0
        %3329 = vdwg.mxu0
        %v3330 = vpack.c.bf16 %v3325, %v3325
        %s3331 = scalar_lea.vmem %s14, 256
        %v3332 = vld [vmem:[%s3331] sm:$0xff]
        %v3333 = vld [vmem:[%s3331 + $0x8] sm:$0xff]
        %v3334 = vld [vmem:[%s3331 + $0x10] sm:$0xff]
        %v3335 = vld [vmem:[%s3331 + $0x18] sm:$0xff]
        %v3336 = vld [vmem:[%s3331 + $0x20] sm:$0xff]
        %v3337 = vld [vmem:[%s3331 + $0x28] sm:$0xff]
        %v3338 = vld [vmem:[%s3331 + $0x30] sm:$0xff]
        %v3339 = vld [vmem:[%s3331 + $0x38] sm:$0xff]
        %v3340 = vld [vmem:[%s3331 + $0x40] sm:$0xff]
        %v3341 = vld [vmem:[%s3331 + $0x48] sm:$0xff]
        %v3342 = vld [vmem:[%s3331 + $0x50] sm:$0xff]
        %v3343 = vld [vmem:[%s3331 + $0x58] sm:$0xff]
        %v3344 = vld [vmem:[%s3331 + $0x60] sm:$0xff]
        %v3345 = vld [vmem:[%s3331 + $0x68] sm:$0xff]
        %v3346 = vld [vmem:[%s3331 + $0x70] sm:$0xff]
        %v3347 = vld [vmem:[%s3331 + $0x78] sm:$0xff]
        %v3364 = vunpack.c.l.b16 %v3332
        %v3365 = vunpack.c.h.b16 %v3332
        %v3366 = vunpack.c.l.b16 %v3333
        %v3367 = vunpack.c.h.b16 %v3333
        %v3368 = vunpack.c.l.b16 %v3334
        %v3369 = vunpack.c.h.b16 %v3334
        %v3370 = vunpack.c.l.b16 %v3335
        %v3371 = vunpack.c.h.b16 %v3335
        %v3372 = vunpack.c.l.b16 %v3336
        %v3373 = vunpack.c.h.b16 %v3336
        %v3374 = vunpack.c.l.b16 %v3337
        %v3375 = vunpack.c.h.b16 %v3337
        %v3376 = vunpack.c.l.b16 %v3338
        %v3377 = vunpack.c.h.b16 %v3338
        %v3378 = vunpack.c.l.b16 %v3339
        %v3379 = vunpack.c.h.b16 %v3339
        %v3380 = vunpack.c.l.b16 %v3340
        %v3381 = vunpack.c.h.b16 %v3340
        %v3382 = vunpack.c.l.b16 %v3341
        %v3383 = vunpack.c.h.b16 %v3341
        %v3384 = vunpack.c.l.b16 %v3342
        %v3385 = vunpack.c.h.b16 %v3342
        %v3386 = vunpack.c.l.b16 %v3343
        %v3387 = vunpack.c.h.b16 %v3343
        %v3388 = vunpack.c.l.b16 %v3344
        %v3389 = vunpack.c.h.b16 %v3344
        %v3390 = vunpack.c.l.b16 %v3345
        %v3391 = vunpack.c.h.b16 %v3345
        %v3392 = vunpack.c.l.b16 %v3346
        %v3393 = vunpack.c.h.b16 %v3346
        %v3394 = vunpack.c.l.b16 %v3347
        %v3395 = vunpack.c.h.b16 %v3347
        %v3396 = vpack.c.b16 %v3366, %v3364
        %v3397 = vpack.c.b16 %v3367, %v3365
        %v3398 = vpack.c.b16 %v3370, %v3368
        %v3399 = vpack.c.b16 %v3371, %v3369
        %v3400 = vpack.c.b16 %v3374, %v3372
        %v3401 = vpack.c.b16 %v3375, %v3373
        %v3402 = vpack.c.b16 %v3378, %v3376
        %v3403 = vpack.c.b16 %v3379, %v3377
        %v3404 = vpack.c.b16 %v3382, %v3380
        %v3405 = vpack.c.b16 %v3383, %v3381
        %v3406 = vpack.c.b16 %v3386, %v3384
        %v3407 = vpack.c.b16 %v3387, %v3385
        %v3408 = vpack.c.b16 %v3390, %v3388
        %v3409 = vpack.c.b16 %v3391, %v3389
        %v3410 = vpack.c.b16 %v3394, %v3392
        %v3411 = vpack.c.b16 %v3395, %v3393
        %3428 = vmatprep.subr.bf16.mxu0 %v3397
        %3429 = vmatpush1.bf16.msra.mxu0 %v3396
        %3430 = vmatprep.subr.bf16.mxu0 %v3399
        %3431 = vmatpush1.bf16.msra.mxu0 %v3398
        %3432 = vmatprep.subr.bf16.mxu0 %v3401
        %3433 = vmatpush1.bf16.msra.mxu0 %v3400
        %3434 = vmatprep.subr.bf16.mxu0 %v3403
        %3435 = vmatpush1.bf16.msra.mxu0 %v3402
        %3436 = vmatprep.subr.bf16.mxu0 %v3405
        %3437 = vmatpush1.bf16.msra.mxu0 %v3404
        %3438 = vmatprep.subr.bf16.mxu0 %v3407
        %3439 = vmatpush1.bf16.msra.mxu0 %v3406
        %3440 = vmatprep.subr.bf16.mxu0 %v3409
        %3441 = vmatpush1.bf16.msra.mxu0 %v3408
        %3442 = vmatprep.subr.bf16.mxu0 %v3411
        %3443 = vmatpush1.bf16.msra.mxu0 %v3410
        %3444 = vmatprep.subr.bf16.mxu0 0
        %3445 = vmatpush1.bf16.msra.mxu0 0
        %3446 = vmatprep.subr.bf16.mxu0 0
        %3447 = vmatpush1.bf16.msra.mxu0 0
        %3448 = vmatprep.subr.bf16.mxu0 0
        %3449 = vmatpush1.bf16.msra.mxu0 0
        %3450 = vmatprep.subr.bf16.mxu0 0
        %3451 = vmatpush1.bf16.msra.mxu0 0
        %3452 = vmatprep.subr.bf16.mxu0 0
        %3453 = vmatpush1.bf16.msra.mxu0 0
        %3454 = vmatprep.subr.bf16.mxu0 0
        %3455 = vmatpush1.bf16.msra.mxu0 0
        %3456 = vmatprep.subr.bf16.mxu0 0
        %3457 = vmatpush1.bf16.msra.mxu0 0
        %3458 = vmatprep.subr.bf16.mxu0 0
        %3459 = vmatpush1.bf16.msra.mxu0 0
        %3460 = vmatprep.mubr.bf16.mxu0 0
        %3461 = vmatmul.mubr.bf16.gmra.mrb[0].mxu0 %v3330
        %v3462 = vpop.f32.mrb[0].mxu0
        %v3463 = vadd.f32 0.0, %v3462
        %v3464 = vpop.f32.mrb[0].mxu0
        %v3465 = vadd.f32 0.0, %v3464
        %v3466 = vpop.f32.mrb[0].mxu0
        %v3467 = vpop.f32.mrb[0].mxu0
        %3468 = vdwg.mxu0
        %v3469 = vadd.f32 %v3279, %v3463
        %v3470 = vadd.f32 %v3281, %v3465
        %s3471 = scalar_lea.vmem %s13, 6
        %v3472 = vld [vmem:[%s3471] sm:$0x3]
        %v3474 = vsel %vm2915, %v3472, 0
        %3476 = vmatprep.subr.bf16.mxu0 0
        %3477 = vmatpush1.bf16.msra.mxu0 %v2921
        %3478 = vmatprep.subr.bf16.mxu0 0
        %3479 = vmatpush1.bf16.msra.mxu0 0
        %3480 = vmatprep.subr.bf16.mxu0 0
        %3481 = vmatpush1.bf16.msra.mxu0 0
        %3482 = vmatprep.subr.bf16.mxu0 0
        %3483 = vmatpush1.bf16.msra.mxu0 0
        %3484 = vmatprep.subr.bf16.mxu0 0
        %3485 = vmatpush1.bf16.msra.mxu0 0
        %3486 = vmatprep.subr.bf16.mxu0 0
        %3487 = vmatpush1.bf16.msra.mxu0 0
        %3488 = vmatprep.subr.bf16.mxu0 0
        %3489 = vmatpush1.bf16.msra.mxu0 0
        %3490 = vmatprep.subr.bf16.mxu0 0
        %3491 = vmatpush1.bf16.msra.mxu0 0
        %3492 = vmatprep.subr.bf16.mxu0 0
        %3493 = vmatpush1.bf16.msra.mxu0 0
        %3494 = vmatprep.subr.bf16.mxu0 0
        %3495 = vmatpush1.bf16.msra.mxu0 0
        %3496 = vmatprep.subr.bf16.mxu0 0
        %3497 = vmatpush1.bf16.msra.mxu0 0
        %3498 = vmatprep.subr.bf16.mxu0 0
        %3499 = vmatpush1.bf16.msra.mxu0 0
        %3500 = vmatprep.subr.bf16.mxu0 0
        %3501 = vmatpush1.bf16.msra.mxu0 0
        %3502 = vmatprep.subr.bf16.mxu0 0
        %3503 = vmatpush1.bf16.msra.mxu0 0
        %3504 = vmatprep.subr.bf16.mxu0 0
        %3505 = vmatpush1.bf16.msra.mxu0 0
        %3506 = vmatprep.subr.bf16.mxu0 0
        %3507 = vmatpush1.bf16.msra.mxu0 0
        %3508 = vmatprep.mubr.bf16.mxu0 0
        %3509 = vmatmul.mubr.bf16.gmra.mrb[0].mxu0 %v3474
        %v3510 = vpop.f32.mrb[0].mxu0
        %v3511 = vadd.f32 0.0, %v3510
        %v3512 = vpop.f32.mrb[0].mxu0
        %v3513 = vpop.f32.mrb[0].mxu0
        %v3514 = vpop.f32.mrb[0].mxu0
        %3515 = vdwg.mxu0
        %v3516 = vpack.c.bf16 %v3511, %v3511
        %s3517 = scalar_lea.vmem %s14, 384
        %v3518 = vld [vmem:[%s3517] sm:$0xff]
        %v3519 = vld [vmem:[%s3517 + $0x8] sm:$0xff]
        %v3520 = vld [vmem:[%s3517 + $0x10] sm:$0xff]
        %v3521 = vld [vmem:[%s3517 + $0x18] sm:$0xff]
        %v3522 = vld [vmem:[%s3517 + $0x20] sm:$0xff]
        %v3523 = vld [vmem:[%s3517 + $0x28] sm:$0xff]
        %v3524 = vld [vmem:[%s3517 + $0x30] sm:$0xff]
        %v3525 = vld [vmem:[%s3517 + $0x38] sm:$0xff]
        %v3526 = vld [vmem:[%s3517 + $0x40] sm:$0xff]
        %v3527 = vld [vmem:[%s3517 + $0x48] sm:$0xff]
        %v3528 = vld [vmem:[%s3517 + $0x50] sm:$0xff]
        %v3529 = vld [vmem:[%s3517 + $0x58] sm:$0xff]
        %v3530 = vld [vmem:[%s3517 + $0x60] sm:$0xff]
        %v3531 = vld [vmem:[%s3517 + $0x68] sm:$0xff]
        %v3532 = vld [vmem:[%s3517 + $0x70] sm:$0xff]
        %v3533 = vld [vmem:[%s3517 + $0x78] sm:$0xff]
        %v3550 = vunpack.c.l.b16 %v3518
        %v3551 = vunpack.c.h.b16 %v3518
        %v3552 = vunpack.c.l.b16 %v3519
        %v3553 = vunpack.c.h.b16 %v3519
        %v3554 = vunpack.c.l.b16 %v3520
        %v3555 = vunpack.c.h.b16 %v3520
        %v3556 = vunpack.c.l.b16 %v3521
        %v3557 = vunpack.c.h.b16 %v3521
        %v3558 = vunpack.c.l.b16 %v3522
        %v3559 = vunpack.c.h.b16 %v3522
        %v3560 = vunpack.c.l.b16 %v3523
        %v3561 = vunpack.c.h.b16 %v3523
        %v3562 = vunpack.c.l.b16 %v3524
        %v3563 = vunpack.c.h.b16 %v3524
        %v3564 = vunpack.c.l.b16 %v3525
        %v3565 = vunpack.c.h.b16 %v3525
        %v3566 = vunpack.c.l.b16 %v3526
        %v3567 = vunpack.c.h.b16 %v3526
        %v3568 = vunpack.c.l.b16 %v3527
        %v3569 = vunpack.c.h.b16 %v3527
        %v3570 = vunpack.c.l.b16 %v3528
        %v3571 = vunpack.c.h.b16 %v3528
        %v3572 = vunpack.c.l.b16 %v3529
        %v3573 = vunpack.c.h.b16 %v3529
        %v3574 = vunpack.c.l.b16 %v3530
        %v3575 = vunpack.c.h.b16 %v3530
        %v3576 = vunpack.c.l.b16 %v3531
        %v3577 = vunpack.c.h.b16 %v3531
        %v3578 = vunpack.c.l.b16 %v3532
        %v3579 = vunpack.c.h.b16 %v3532
        %v3580 = vunpack.c.l.b16 %v3533
        %v3581 = vunpack.c.h.b16 %v3533
        %v3582 = vpack.c.b16 %v3552, %v3550
        %v3583 = vpack.c.b16 %v3553, %v3551
        %v3584 = vpack.c.b16 %v3556, %v3554
        %v3585 = vpack.c.b16 %v3557, %v3555
        %v3586 = vpack.c.b16 %v3560, %v3558
        %v3587 = vpack.c.b16 %v3561, %v3559
        %v3588 = vpack.c.b16 %v3564, %v3562
        %v3589 = vpack.c.b16 %v3565, %v3563
        %v3590 = vpack.c.b16 %v3568, %v3566
        %v3591 = vpack.c.b16 %v3569, %v3567
        %v3592 = vpack.c.b16 %v3572, %v3570
        %v3593 = vpack.c.b16 %v3573, %v3571
        %v3594 = vpack.c.b16 %v3576, %v3574
        %v3595 = vpack.c.b16 %v3577, %v3575
        %v3596 = vpack.c.b16 %v3580, %v3578
        %v3597 = vpack.c.b16 %v3581, %v3579
        %3614 = vmatprep.subr.bf16.mxu0 %v3583
        %3615 = vmatpush1.bf16.msra.mxu0 %v3582
        %3616 = vmatprep.subr.bf16.mxu0 %v3585
        %3617 = vmatpush1.bf16.msra.mxu0 %v3584
        %3618 = vmatprep.subr.bf16.mxu0 %v3587
        %3619 = vmatpush1.bf16.msra.mxu0 %v3586
        %3620 = vmatprep.subr.bf16.mxu0 %v3589
        %3621 = vmatpush1.bf16.msra.mxu0 %v3588
        %3622 = vmatprep.subr.bf16.mxu0 %v3591
        %3623 = vmatpush1.bf16.msra.mxu0 %v3590
        %3624 = vmatprep.subr.bf16.mxu0 %v3593
        %3625 = vmatpush1.bf16.msra.mxu0 %v3592
        %3626 = vmatprep.subr.bf16.mxu0 %v3595
        %3627 = vmatpush1.bf16.msra.mxu0 %v3594
        %3628 = vmatprep.subr.bf16.mxu0 %v3597
        %3629 = vmatpush1.bf16.msra.mxu0 %v3596
        %3630 = vmatprep.subr.bf16.mxu0 0
        %3631 = vmatpush1.bf16.msra.mxu0 0
        %3632 = vmatprep.subr.bf16.mxu0 0
        %3633 = vmatpush1.bf16.msra.mxu0 0
        %3634 = vmatprep.subr.bf16.mxu0 0
        %3635 = vmatpush1.bf16.msra.mxu0 0
        %3636 = vmatprep.subr.bf16.mxu0 0
        %3637 = vmatpush1.bf16.msra.mxu0 0
        %3638 = vmatprep.subr.bf16.mxu0 0
        %3639 = vmatpush1.bf16.msra.mxu0 0
        %3640 = vmatprep.subr.bf16.mxu0 0
        %3641 = vmatpush1.bf16.msra.mxu0 0
        %3642 = vmatprep.subr.bf16.mxu0 0
        %3643 = vmatpush1.bf16.msra.mxu0 0
        %3644 = vmatprep.subr.bf16.mxu0 0
        %3645 = vmatpush1.bf16.msra.mxu0 0
        %3646 = vmatprep.mubr.bf16.mxu0 0
        %3647 = vmatmul.mubr.bf16.gmra.mrb[0].mxu0 %v3516
        %v3648 = vpop.f32.mrb[0].mxu0
        %v3649 = vadd.f32 0.0, %v3648
        %v3650 = vpop.f32.mrb[0].mxu0
        %v3651 = vadd.f32 0.0, %v3650
        %v3652 = vpop.f32.mrb[0].mxu0
        %v3653 = vpop.f32.mrb[0].mxu0
        %3654 = vdwg.mxu0
        %v3655 = vadd.f32 %v3469, %v3649
        %v3656 = vadd.f32 %v3470, %v3651
        %v3657 = vld [vmem:[%s15] sm:$0x3]
        %v3659 = vlaneseq
        %v3660 = vshrl.u32 %v3659, 7
        %v3661 = vsub.s32 0, %v3660
        %v3662 = vrot.slane %v3657, %v3661
        %v3663 = vlaneseq
        %v3664 = vshrl.u32 %v3663, 7
        %v3665 = vsub.s32 1, %v3664
        %v3666 = vrot.slane %v3657, %v3665
        %v3669 = vadd.f32 %v3655, %v3662
        %v3670 = vadd.f32 %v3656, %v3666
        %vm3671 = vcmp.ge.f32.partialorder %v3669, 0.0
        %vm3672 = vcmp.ge.f32.partialorder %v3670, 0.0
        %v3673 = vmul.f32 %v3669, 0.2
        %v3674 = vmul.f32 %v3670, 0.2
        %v3675 = vsel %vm3671, %v3669, %v3673
        %v3676 = vsel %vm3672, %v3670, %v3674
        %v3677 = vpack.c.bf16 %v3675, %v3675
        %v3678 = vpack.c.bf16 %v3676, %v3676
        %v3679 = vld [vmem:[%s16] sm:$0x1]
        %vm3680 = vcmask 23552
        %v3682 = vsel %vm3680, %v3679, 0
        %vm3684 = vcmask 1040384
        %v3685 = vsel %vm3684, 4294967295, 65535
        %v3686 = vsel %vm2919, %v3685, 0
        %v3688 = vand.u32 %v3677, %v3686
        %v3691 = vand.u32 %v3678, %v3686
        %3693 = vmatprep.subr.bf16.mxu0 %v3691
        %3694 = vmatpush1.bf16.msra.mxu0 %v3688
        %3695 = vmatprep.subr.bf16.mxu0 0
        %3696 = vmatpush1.bf16.msra.mxu0 0
        %3697 = vmatprep.subr.bf16.mxu0 0
        %3698 = vmatpush1.bf16.msra.mxu0 0
        %3699 = vmatprep.subr.bf16.mxu0 0
        %3700 = vmatpush1.bf16.msra.mxu0 0
        %3701 = vmatprep.subr.bf16.mxu0 0
        %3702 = vmatpush1.bf16.msra.mxu0 0
        %3703 = vmatprep.subr.bf16.mxu0 0
        %3704 = vmatpush1.bf16.msra.mxu0 0
        %3705 = vmatprep.subr.bf16.mxu0 0
        %3706 = vmatpush1.bf16.msra.mxu0 0
        %3707 = vmatprep.subr.bf16.mxu0 0
        %3708 = vmatpush1.bf16.msra.mxu0 0
        %3709 = vmatprep.subr.bf16.mxu0 0
        %3710 = vmatpush1.bf16.msra.mxu0 0
        %3711 = vmatprep.subr.bf16.mxu0 0
        %3712 = vmatpush1.bf16.msra.mxu0 0
        %3713 = vmatprep.subr.bf16.mxu0 0
        %3714 = vmatpush1.bf16.msra.mxu0 0
        %3715 = vmatprep.subr.bf16.mxu0 0
        %3716 = vmatpush1.bf16.msra.mxu0 0
        %3717 = vmatprep.subr.bf16.mxu0 0
        %3718 = vmatpush1.bf16.msra.mxu0 0
        %3719 = vmatprep.subr.bf16.mxu0 0
        %3720 = vmatpush1.bf16.msra.mxu0 0
        %3721 = vmatprep.subr.bf16.mxu0 0
        %3722 = vmatpush1.bf16.msra.mxu0 0
        %3723 = vmatprep.subr.bf16.mxu0 0
        %3724 = vmatpush1.bf16.msra.mxu0 0
        %3725 = vmatprep.mubr.bf16.mxu0 0
        %3726 = vmatmul.mubr.bf16.gmra.mrb[0].mxu0 %v3682
        %v3727 = vpop.f32.mrb[0].mxu0
        %v3728 = vadd.f32 0.0, %v3727
        %v3729 = vpop.f32.mrb[0].mxu0
        %v3730 = vadd.f32 0.0, %v3729
        %v3731 = vpop.f32.mrb[0].mxu0
        %v3732 = vpop.f32.mrb[0].mxu0
        %3733 = vdwg.mxu0
        %v3734 = vpack.c.bf16 %v3728, %v3728
        %v3735 = vpack.c.bf16 %v3730, %v3730
        %v3736 = vld [vmem:[%s17] sm:$0xf]
        %v3737 = vld [vmem:[%s17 + $0x4] sm:$0xf]
        %v3738 = vld [vmem:[%s17 + $0x8] sm:$0xf]
        %v3739 = vld [vmem:[%s17 + $0xc] sm:$0xf]
        %v3740 = vld [vmem:[%s17 + $0x10] sm:$0xf]
        %v3741 = vld [vmem:[%s17 + $0x14] sm:$0xf]
        %v3742 = vld [vmem:[%s17 + $0x18] sm:$0xf]
        %v3743 = vld [vmem:[%s17 + $0x1c] sm:$0xf]
        %v3744 = vld [vmem:[%s17 + $0x20] sm:$0xf]
        %v3745 = vld [vmem:[%s17 + $0x24] sm:$0xf]
        %v3746 = vld [vmem:[%s17 + $0x28] sm:$0xf]
        %v3747 = vld [vmem:[%s17 + $0x2c] sm:$0xf]
        %v3748 = vld [vmem:[%s17 + $0x30] sm:$0xf]
        %v3749 = vld [vmem:[%s17 + $0x34] sm:$0xf]
        %v3750 = vld [vmem:[%s17 + $0x38] sm:$0xf]
        %v3751 = vld [vmem:[%s17 + $0x3c] sm:$0xf]
        %v3752 = vld [vmem:[%s17 + $0x40] sm:$0xf]
        %v3753 = vld [vmem:[%s17 + $0x44] sm:$0xf]
        %v3754 = vld [vmem:[%s17 + $0x48] sm:$0xf]
        %v3755 = vld [vmem:[%s17 + $0x4c] sm:$0xf]
        %v3756 = vld [vmem:[%s17 + $0x50] sm:$0xf]
        %v3757 = vld [vmem:[%s17 + $0x54] sm:$0xf]
        %v3758 = vld [vmem:[%s17 + $0x58] sm:$0xf]
        %v3759 = vld [vmem:[%s17 + $0x5c] sm:$0xf]
        %s3760 = scalar_lea.vmem %s16, 1
        %v3761 = vld [vmem:[%s3760] sm:$0x1]
        %v3763 = vsel %vm3680, %v3761, 0
        %3765 = vmatprep.subr.bf16.mxu0 %v3691
        %3766 = vmatpush1.bf16.msra.mxu0 %v3688
        %3767 = vmatprep.subr.bf16.mxu0 0
        %3768 = vmatpush1.bf16.msra.mxu0 0
        %3769 = vmatprep.subr.bf16.mxu0 0
        %3770 = vmatpush1.bf16.msra.mxu0 0
        %3771 = vmatprep.subr.bf16.mxu0 0
        %3772 = vmatpush1.bf16.msra.mxu0 0
        %3773 = vmatprep.subr.bf16.mxu0 0
        %3774 = vmatpush1.bf16.msra.mxu0 0
        %3775 = vmatprep.subr.bf16.mxu0 0
        %3776 = vmatpush1.bf16.msra.mxu0 0
        %3777 = vmatprep.subr.bf16.mxu0 0
        %3778 = vmatpush1.bf16.msra.mxu0 0
        %3779 = vmatprep.subr.bf16.mxu0 0
        %3780 = vmatpush1.bf16.msra.mxu0 0
        %3781 = vmatprep.subr.bf16.mxu0 0
        %3782 = vmatpush1.bf16.msra.mxu0 0
        %3783 = vmatprep.subr.bf16.mxu0 0
        %3784 = vmatpush1.bf16.msra.mxu0 0
        %3785 = vmatprep.subr.bf16.mxu0 0
        %3786 = vmatpush1.bf16.msra.mxu0 0
        %3787 = vmatprep.subr.bf16.mxu0 0
        %3788 = vmatpush1.bf16.msra.mxu0 0
        %3789 = vmatprep.subr.bf16.mxu0 0
        %3790 = vmatpush1.bf16.msra.mxu0 0
        %3791 = vmatprep.subr.bf16.mxu0 0
        %3792 = vmatpush1.bf16.msra.mxu0 0
        %3793 = vmatprep.subr.bf16.mxu0 0
        %3794 = vmatpush1.bf16.msra.mxu0 0
        %3795 = vmatprep.subr.bf16.mxu0 0
        %3796 = vmatpush1.bf16.msra.mxu0 0
        %3797 = vmatprep.mubr.bf16.mxu0 0
        %3798 = vmatmul.mubr.bf16.gmra.mrb[0].mxu0 %v3763
        %v3799 = vpop.f32.mrb[0].mxu0
        %v3800 = vadd.f32 0.0, %v3799
        %v3801 = vpop.f32.mrb[0].mxu0
        %v3802 = vadd.f32 0.0, %v3801
        %v3803 = vpop.f32.mrb[0].mxu0
        %v3804 = vpop.f32.mrb[0].mxu0
        %3805 = vdwg.mxu0
        %v3806 = vpack.c.bf16 %v3800, %v3800
        %v3807 = vpack.c.bf16 %v3802, %v3802
        %s3808 = scalar_lea.vmem %s17, 96
        %v3809 = vld [vmem:[%s3808] sm:$0xf]
        %v3810 = vld [vmem:[%s3808 + $0x4] sm:$0xf]
        %v3811 = vld [vmem:[%s3808 + $0x8] sm:$0xf]
        %v3812 = vld [vmem:[%s3808 + $0xc] sm:$0xf]
        %v3813 = vld [vmem:[%s3808 + $0x10] sm:$0xf]
        %v3814 = vld [vmem:[%s3808 + $0x14] sm:$0xf]
        %v3815 = vld [vmem:[%s3808 + $0x18] sm:$0xf]
        %v3816 = vld [vmem:[%s3808 + $0x1c] sm:$0xf]
        %v3817 = vld [vmem:[%s3808 + $0x20] sm:$0xf]
        %v3818 = vld [vmem:[%s3808 + $0x24] sm:$0xf]
        %v3819 = vld [vmem:[%s3808 + $0x28] sm:$0xf]
        %v3820 = vld [vmem:[%s3808 + $0x2c] sm:$0xf]
        %v3821 = vld [vmem:[%s3808 + $0x30] sm:$0xf]
        %v3822 = vld [vmem:[%s3808 + $0x34] sm:$0xf]
        %v3823 = vld [vmem:[%s3808 + $0x38] sm:$0xf]
        %v3824 = vld [vmem:[%s3808 + $0x3c] sm:$0xf]
        %v3825 = vld [vmem:[%s3808 + $0x40] sm:$0xf]
        %v3826 = vld [vmem:[%s3808 + $0x44] sm:$0xf]
        %v3827 = vld [vmem:[%s3808 + $0x48] sm:$0xf]
        %v3828 = vld [vmem:[%s3808 + $0x4c] sm:$0xf]
        %v3829 = vld [vmem:[%s3808 + $0x50] sm:$0xf]
        %v3830 = vld [vmem:[%s3808 + $0x54] sm:$0xf]
        %v3831 = vld [vmem:[%s3808 + $0x58] sm:$0xf]
        %v3832 = vld [vmem:[%s3808 + $0x5c] sm:$0xf]
        %v3857 = vunpack.c.l.b16 %v3809
        %v3858 = vunpack.c.l.b16 %v3810
        %v3859 = vunpack.c.l.b16 %v3811
        %v3860 = vunpack.c.l.b16 %v3812
        %v3861 = vunpack.c.l.b16 %v3813
        %v3862 = vunpack.c.l.b16 %v3814
        %v3863 = vunpack.c.l.b16 %v3815
        %v3864 = vunpack.c.l.b16 %v3816
        %v3865 = vunpack.c.l.b16 %v3817
        %v3866 = vunpack.c.l.b16 %v3818
        %v3867 = vunpack.c.l.b16 %v3819
        %v3868 = vunpack.c.l.b16 %v3820
        %v3869 = vunpack.c.l.b16 %v3821
        %v3870 = vunpack.c.l.b16 %v3822
        %v3871 = vunpack.c.l.b16 %v3823
        %v3872 = vunpack.c.l.b16 %v3824
        %v3873 = vunpack.c.l.b16 %v3825
        %v3874 = vunpack.c.l.b16 %v3826
        %v3875 = vunpack.c.l.b16 %v3827
        %v3876 = vunpack.c.l.b16 %v3828
        %v3877 = vunpack.c.l.b16 %v3829
        %v3878 = vunpack.c.l.b16 %v3830
        %v3879 = vunpack.c.l.b16 %v3831
        %v3880 = vunpack.c.l.b16 %v3832
        %v3881 = vpack.c.b16 %v3858, %v3857
        %v3882 = vpack.c.b16 %v3860, %v3859
        %v3883 = vpack.c.b16 %v3862, %v3861
        %v3884 = vpack.c.b16 %v3864, %v3863
        %v3885 = vpack.c.b16 %v3866, %v3865
        %v3886 = vpack.c.b16 %v3868, %v3867
        %v3887 = vpack.c.b16 %v3870, %v3869
        %v3888 = vpack.c.b16 %v3872, %v3871
        %v3889 = vpack.c.b16 %v3874, %v3873
        %v3890 = vpack.c.b16 %v3876, %v3875
        %v3891 = vpack.c.b16 %v3878, %v3877
        %v3892 = vpack.c.b16 %v3880, %v3879
        %vm3905 = vcmask 523264
        %v3907 = vsel %vm3905, %v3807, 0
        %3909 = vmatprep.subr.bf16.mxu0 0
        %3910 = vmatpush1.bf16.msra.mxu0 %v3881
        %3911 = vmatprep.subr.bf16.mxu0 0
        %3912 = vmatpush1.bf16.msra.mxu0 %v3882
        %3913 = vmatprep.subr.bf16.mxu0 0
        %3914 = vmatpush1.bf16.msra.mxu0 %v3883
        %3915 = vmatprep.subr.bf16.mxu0 0
        %3916 = vmatpush1.bf16.msra.mxu0 %v3884
        %3917 = vmatprep.subr.bf16.mxu0 0
        %3918 = vmatpush1.bf16.msra.mxu0 %v3885
        %3919 = vmatprep.subr.bf16.mxu0 0
        %3920 = vmatpush1.bf16.msra.mxu0 %v3886
        %3921 = vmatprep.subr.bf16.mxu0 0
        %3922 = vmatpush1.bf16.msra.mxu0 %v3887
        %3923 = vmatprep.subr.bf16.mxu0 0
        %3924 = vmatpush1.bf16.msra.mxu0 %v3888
        %3925 = vmatprep.subr.bf16.mxu0 0
        %3926 = vmatpush1.bf16.msra.mxu0 %v3889
        %3927 = vmatprep.subr.bf16.mxu0 0
        %3928 = vmatpush1.bf16.msra.mxu0 %v3890
        %3929 = vmatprep.subr.bf16.mxu0 0
        %3930 = vmatpush1.bf16.msra.mxu0 %v3891
        %3931 = vmatprep.subr.bf16.mxu0 0
        %3932 = vmatpush1.bf16.msra.mxu0 %v3892
        %3933 = vmatprep.subr.bf16.mxu0 0
        %3934 = vmatpush1.bf16.msra.mxu0 0
        %3935 = vmatprep.subr.bf16.mxu0 0
        %3936 = vmatpush1.bf16.msra.mxu0 0
        %3937 = vmatprep.subr.bf16.mxu0 0
        %3938 = vmatpush1.bf16.msra.mxu0 0
        %3939 = vmatprep.subr.bf16.mxu0 0
        %3940 = vmatpush1.bf16.msra.mxu0 0
        %3941 = vmatprep.mubr.bf16.mxu0 %v3907
        %3942 = vmatmul.mubr.bf16.gmra.mrb[0].mxu0 %v3806
        %v3943 = vpop.f32.mrb[0].mxu0
        %v3944 = vadd.f32 0.0, %v3943
        %v3945 = vpop.f32.mrb[0].mxu0
        %v3946 = vpop.f32.mrb[0].mxu0
        %v3947 = vpop.f32.mrb[0].mxu0
        %3948 = vdwg.mxu0
        %v3973 = vunpack.c.l.b16 %v3736
        %v3974 = vunpack.c.l.b16 %v3737
        %v3975 = vunpack.c.l.b16 %v3738
        %v3976 = vunpack.c.l.b16 %v3739
        %v3977 = vunpack.c.l.b16 %v3740
        %v3978 = vunpack.c.l.b16 %v3741
        %v3979 = vunpack.c.l.b16 %v3742
        %v3980 = vunpack.c.l.b16 %v3743
        %v3981 = vunpack.c.l.b16 %v3744
        %v3982 = vunpack.c.l.b16 %v3745
        %v3983 = vunpack.c.l.b16 %v3746
        %v3984 = vunpack.c.l.b16 %v3747
        %v3985 = vunpack.c.l.b16 %v3748
        %v3986 = vunpack.c.l.b16 %v3749
        %v3987 = vunpack.c.l.b16 %v3750
        %v3988 = vunpack.c.l.b16 %v3751
        %v3989 = vunpack.c.l.b16 %v3752
        %v3990 = vunpack.c.l.b16 %v3753
        %v3991 = vunpack.c.l.b16 %v3754
        %v3992 = vunpack.c.l.b16 %v3755
        %v3993 = vunpack.c.l.b16 %v3756
        %v3994 = vunpack.c.l.b16 %v3757
        %v3995 = vunpack.c.l.b16 %v3758
        %v3996 = vunpack.c.l.b16 %v3759
        %v3997 = vpack.c.b16 %v3974, %v3973
        %v3998 = vpack.c.b16 %v3976, %v3975
        %v3999 = vpack.c.b16 %v3978, %v3977
        %v4000 = vpack.c.b16 %v3980, %v3979
        %v4001 = vpack.c.b16 %v3982, %v3981
        %v4002 = vpack.c.b16 %v3984, %v3983
        %v4003 = vpack.c.b16 %v3986, %v3985
        %v4004 = vpack.c.b16 %v3988, %v3987
        %v4005 = vpack.c.b16 %v3990, %v3989
        %v4006 = vpack.c.b16 %v3992, %v3991
        %v4007 = vpack.c.b16 %v3994, %v3993
        %v4008 = vpack.c.b16 %v3996, %v3995
        %v4022 = vsel %vm3905, %v3735, 0
        %4024 = vmatprep.subr.bf16.mxu0 0
        %4025 = vmatpush1.bf16.msra.mxu0 %v3997
        %4026 = vmatprep.subr.bf16.mxu0 0
        %4027 = vmatpush1.bf16.msra.mxu0 %v3998
        %4028 = vmatprep.subr.bf16.mxu0 0
        %4029 = vmatpush1.bf16.msra.mxu0 %v3999
        %4030 = vmatprep.subr.bf16.mxu0 0
        %4031 = vmatpush1.bf16.msra.mxu0 %v4000
        %4032 = vmatprep.subr.bf16.mxu0 0
        %4033 = vmatpush1.bf16.msra.mxu0 %v4001
        %4034 = vmatprep.subr.bf16.mxu0 0
        %4035 = vmatpush1.bf16.msra.mxu0 %v4002
        %4036 = vmatprep.subr.bf16.mxu0 0
        %4037 = vmatpush1.bf16.msra.mxu0 %v4003
        %4038 = vmatprep.subr.bf16.mxu0 0
        %4039 = vmatpush1.bf16.msra.mxu0 %v4004
        %4040 = vmatprep.subr.bf16.mxu0 0
        %4041 = vmatpush1.bf16.msra.mxu0 %v4005
        %4042 = vmatprep.subr.bf16.mxu0 0
        %4043 = vmatpush1.bf16.msra.mxu0 %v4006
        %4044 = vmatprep.subr.bf16.mxu0 0
        %4045 = vmatpush1.bf16.msra.mxu0 %v4007
        %4046 = vmatprep.subr.bf16.mxu0 0
        %4047 = vmatpush1.bf16.msra.mxu0 %v4008
        %4048 = vmatprep.subr.bf16.mxu0 0
        %4049 = vmatpush1.bf16.msra.mxu0 0
        %4050 = vmatprep.subr.bf16.mxu0 0
        %4051 = vmatpush1.bf16.msra.mxu0 0
        %4052 = vmatprep.subr.bf16.mxu0 0
        %4053 = vmatpush1.bf16.msra.mxu0 0
        %4054 = vmatprep.subr.bf16.mxu0 0
        %4055 = vmatpush1.bf16.msra.mxu0 0
        %4056 = vmatprep.mubr.bf16.mxu0 %v4022
        %4057 = vmatmul.mubr.bf16.gmra.mrb[0].mxu0 %v3734
        %v4058 = vpop.f32.mrb[0].mxu0
        %v4059 = vadd.f32 %v3944, %v4058
        %v4060 = vpop.f32.mrb[0].mxu0
        %v4061 = vpop.f32.mrb[0].mxu0
        %v4062 = vpop.f32.mrb[0].mxu0
        %4063 = vdwg.mxu0
        %s4064 = scalar_lea.vmem %s16, 2
        %v4065 = vld [vmem:[%s4064] sm:$0x1]
        %v4067 = vsel %vm3680, %v4065, 0
        %4069 = vmatprep.subr.bf16.mxu0 %v3691
        %4070 = vmatpush1.bf16.msra.mxu0 %v3688
        %4071 = vmatprep.subr.bf16.mxu0 0
        %4072 = vmatpush1.bf16.msra.mxu0 0
        %4073 = vmatprep.subr.bf16.mxu0 0
        %4074 = vmatpush1.bf16.msra.mxu0 0
        %4075 = vmatprep.subr.bf16.mxu0 0
        %4076 = vmatpush1.bf16.msra.mxu0 0
        %4077 = vmatprep.subr.bf16.mxu0 0
        %4078 = vmatpush1.bf16.msra.mxu0 0
        %4079 = vmatprep.subr.bf16.mxu0 0
        %4080 = vmatpush1.bf16.msra.mxu0 0
        %4081 = vmatprep.subr.bf16.mxu0 0
        %4082 = vmatpush1.bf16.msra.mxu0 0
        %4083 = vmatprep.subr.bf16.mxu0 0
        %4084 = vmatpush1.bf16.msra.mxu0 0
        %4085 = vmatprep.subr.bf16.mxu0 0
        %4086 = vmatpush1.bf16.msra.mxu0 0
        %4087 = vmatprep.subr.bf16.mxu0 0
        %4088 = vmatpush1.bf16.msra.mxu0 0
        %4089 = vmatprep.subr.bf16.mxu0 0
        %4090 = vmatpush1.bf16.msra.mxu0 0
        %4091 = vmatprep.subr.bf16.mxu0 0
        %4092 = vmatpush1.bf16.msra.mxu0 0
        %4093 = vmatprep.subr.bf16.mxu0 0
        %4094 = vmatpush1.bf16.msra.mxu0 0
        %4095 = vmatprep.subr.bf16.mxu0 0
        %4096 = vmatpush1.bf16.msra.mxu0 0
        %4097 = vmatprep.subr.bf16.mxu0 0
        %4098 = vmatpush1.bf16.msra.mxu0 0
        %4099 = vmatprep.subr.bf16.mxu0 0
        %4100 = vmatpush1.bf16.msra.mxu0 0
        %4101 = vmatprep.mubr.bf16.mxu0 0
        %4102 = vmatmul.mubr.bf16.gmra.mrb[0].mxu0 %v4067
        %v4103 = vpop.f32.mrb[0].mxu0
        %v4104 = vadd.f32 0.0, %v4103
        %v4105 = vpop.f32.mrb[0].mxu0
        %v4106 = vadd.f32 0.0, %v4105
        %v4107 = vpop.f32.mrb[0].mxu0
        %v4108 = vpop.f32.mrb[0].mxu0
        %4109 = vdwg.mxu0
        %v4110 = vpack.c.bf16 %v4104, %v4104
        %v4111 = vpack.c.bf16 %v4106, %v4106
        %s4112 = scalar_lea.vmem %s17, 192
        %v4113 = vld [vmem:[%s4112] sm:$0xf]
        %v4114 = vld [vmem:[%s4112 + $0x4] sm:$0xf]
        %v4115 = vld [vmem:[%s4112 + $0x8] sm:$0xf]
        %v4116 = vld [vmem:[%s4112 + $0xc] sm:$0xf]
        %v4117 = vld [vmem:[%s4112 + $0x10] sm:$0xf]
        %v4118 = vld [vmem:[%s4112 + $0x14] sm:$0xf]
        %v4119 = vld [vmem:[%s4112 + $0x18] sm:$0xf]
        %v4120 = vld [vmem:[%s4112 + $0x1c] sm:$0xf]
        %v4121 = vld [vmem:[%s4112 + $0x20] sm:$0xf]
        %v4122 = vld [vmem:[%s4112 + $0x24] sm:$0xf]
        %v4123 = vld [vmem:[%s4112 + $0x28] sm:$0xf]
        %v4124 = vld [vmem:[%s4112 + $0x2c] sm:$0xf]
        %v4125 = vld [vmem:[%s4112 + $0x30] sm:$0xf]
        %v4126 = vld [vmem:[%s4112 + $0x34] sm:$0xf]
        %v4127 = vld [vmem:[%s4112 + $0x38] sm:$0xf]
        %v4128 = vld [vmem:[%s4112 + $0x3c] sm:$0xf]
        %v4129 = vld [vmem:[%s4112 + $0x40] sm:$0xf]
        %v4130 = vld [vmem:[%s4112 + $0x44] sm:$0xf]
        %v4131 = vld [vmem:[%s4112 + $0x48] sm:$0xf]
        %v4132 = vld [vmem:[%s4112 + $0x4c] sm:$0xf]
        %v4133 = vld [vmem:[%s4112 + $0x50] sm:$0xf]
        %v4134 = vld [vmem:[%s4112 + $0x54] sm:$0xf]
        %v4135 = vld [vmem:[%s4112 + $0x58] sm:$0xf]
        %v4136 = vld [vmem:[%s4112 + $0x5c] sm:$0xf]
        %v4161 = vunpack.c.l.b16 %v4113
        %v4162 = vunpack.c.l.b16 %v4114
        %v4163 = vunpack.c.l.b16 %v4115
        %v4164 = vunpack.c.l.b16 %v4116
        %v4165 = vunpack.c.l.b16 %v4117
        %v4166 = vunpack.c.l.b16 %v4118
        %v4167 = vunpack.c.l.b16 %v4119
        %v4168 = vunpack.c.l.b16 %v4120
        %v4169 = vunpack.c.l.b16 %v4121
        %v4170 = vunpack.c.l.b16 %v4122
        %v4171 = vunpack.c.l.b16 %v4123
        %v4172 = vunpack.c.l.b16 %v4124
        %v4173 = vunpack.c.l.b16 %v4125
        %v4174 = vunpack.c.l.b16 %v4126
        %v4175 = vunpack.c.l.b16 %v4127
        %v4176 = vunpack.c.l.b16 %v4128
        %v4177 = vunpack.c.l.b16 %v4129
        %v4178 = vunpack.c.l.b16 %v4130
        %v4179 = vunpack.c.l.b16 %v4131
        %v4180 = vunpack.c.l.b16 %v4132
        %v4181 = vunpack.c.l.b16 %v4133
        %v4182 = vunpack.c.l.b16 %v4134
        %v4183 = vunpack.c.l.b16 %v4135
        %v4184 = vunpack.c.l.b16 %v4136
        %v4185 = vpack.c.b16 %v4162, %v4161
        %v4186 = vpack.c.b16 %v4164, %v4163
        %v4187 = vpack.c.b16 %v4166, %v4165
        %v4188 = vpack.c.b16 %v4168, %v4167
        %v4189 = vpack.c.b16 %v4170, %v4169
        %v4190 = vpack.c.b16 %v4172, %v4171
        %v4191 = vpack.c.b16 %v4174, %v4173
        %v4192 = vpack.c.b16 %v4176, %v4175
        %v4193 = vpack.c.b16 %v4178, %v4177
        %v4194 = vpack.c.b16 %v4180, %v4179
        %v4195 = vpack.c.b16 %v4182, %v4181
        %v4196 = vpack.c.b16 %v4184, %v4183
        %v4210 = vsel %vm3905, %v4111, 0
        %4212 = vmatprep.subr.bf16.mxu0 0
        %4213 = vmatpush1.bf16.msra.mxu0 %v4185
        %4214 = vmatprep.subr.bf16.mxu0 0
        %4215 = vmatpush1.bf16.msra.mxu0 %v4186
        %4216 = vmatprep.subr.bf16.mxu0 0
        %4217 = vmatpush1.bf16.msra.mxu0 %v4187
        %4218 = vmatprep.subr.bf16.mxu0 0
        %4219 = vmatpush1.bf16.msra.mxu0 %v4188
        %4220 = vmatprep.subr.bf16.mxu0 0
        %4221 = vmatpush1.bf16.msra.mxu0 %v4189
        %4222 = vmatprep.subr.bf16.mxu0 0
        %4223 = vmatpush1.bf16.msra.mxu0 %v4190
        %4224 = vmatprep.subr.bf16.mxu0 0
        %4225 = vmatpush1.bf16.msra.mxu0 %v4191
        %4226 = vmatprep.subr.bf16.mxu0 0
        %4227 = vmatpush1.bf16.msra.mxu0 %v4192
        %4228 = vmatprep.subr.bf16.mxu0 0
        %4229 = vmatpush1.bf16.msra.mxu0 %v4193
        %4230 = vmatprep.subr.bf16.mxu0 0
        %4231 = vmatpush1.bf16.msra.mxu0 %v4194
        %4232 = vmatprep.subr.bf16.mxu0 0
        %4233 = vmatpush1.bf16.msra.mxu0 %v4195
        %4234 = vmatprep.subr.bf16.mxu0 0
        %4235 = vmatpush1.bf16.msra.mxu0 %v4196
        %4236 = vmatprep.subr.bf16.mxu0 0
        %4237 = vmatpush1.bf16.msra.mxu0 0
        %4238 = vmatprep.subr.bf16.mxu0 0
        %4239 = vmatpush1.bf16.msra.mxu0 0
        %4240 = vmatprep.subr.bf16.mxu0 0
        %4241 = vmatpush1.bf16.msra.mxu0 0
        %4242 = vmatprep.subr.bf16.mxu0 0
        %4243 = vmatpush1.bf16.msra.mxu0 0
        %4244 = vmatprep.mubr.bf16.mxu0 %v4210
        %4245 = vmatmul.mubr.bf16.gmra.mrb[0].mxu0 %v4110
        %v4246 = vpop.f32.mrb[0].mxu0
        %v4247 = vadd.f32 0.0, %v4246
        %v4248 = vpop.f32.mrb[0].mxu0
        %v4249 = vpop.f32.mrb[0].mxu0
        %v4250 = vpop.f32.mrb[0].mxu0
        %4251 = vdwg.mxu0
        %v4252 = vadd.f32 %v4059, %v4247
        %s4253 = scalar_lea.vmem %s16, 3
        %v4254 = vld [vmem:[%s4253] sm:$0x1]
        %v4256 = vsel %vm3680, %v4254, 0
        %4258 = vmatprep.subr.bf16.mxu0 %v3691
        %4259 = vmatpush1.bf16.msra.mxu0 %v3688
        %4260 = vmatprep.subr.bf16.mxu0 0
        %4261 = vmatpush1.bf16.msra.mxu0 0
        %4262 = vmatprep.subr.bf16.mxu0 0
        %4263 = vmatpush1.bf16.msra.mxu0 0
        %4264 = vmatprep.subr.bf16.mxu0 0
        %4265 = vmatpush1.bf16.msra.mxu0 0
        %4266 = vmatprep.subr.bf16.mxu0 0
        %4267 = vmatpush1.bf16.msra.mxu0 0
        %4268 = vmatprep.subr.bf16.mxu0 0
        %4269 = vmatpush1.bf16.msra.mxu0 0
        %4270 = vmatprep.subr.bf16.mxu0 0
        %4271 = vmatpush1.bf16.msra.mxu0 0
        %4272 = vmatprep.subr.bf16.mxu0 0
        %4273 = vmatpush1.bf16.msra.mxu0 0
        %4274 = vmatprep.subr.bf16.mxu0 0
        %4275 = vmatpush1.bf16.msra.mxu0 0
        %4276 = vmatprep.subr.bf16.mxu0 0
        %4277 = vmatpush1.bf16.msra.mxu0 0
        %4278 = vmatprep.subr.bf16.mxu0 0
        %4279 = vmatpush1.bf16.msra.mxu0 0
        %4280 = vmatprep.subr.bf16.mxu0 0
        %4281 = vmatpush1.bf16.msra.mxu0 0
        %4282 = vmatprep.subr.bf16.mxu0 0
        %4283 = vmatpush1.bf16.msra.mxu0 0
        %4284 = vmatprep.subr.bf16.mxu0 0
        %4285 = vmatpush1.bf16.msra.mxu0 0
        %4286 = vmatprep.subr.bf16.mxu0 0
        %4287 = vmatpush1.bf16.msra.mxu0 0
        %4288 = vmatprep.subr.bf16.mxu0 0
        %4289 = vmatpush1.bf16.msra.mxu0 0
        %4290 = vmatprep.mubr.bf16.mxu0 0
        %4291 = vmatmul.mubr.bf16.gmra.mrb[0].mxu0 %v4256
        %v4292 = vpop.f32.mrb[0].mxu0
        %v4293 = vadd.f32 0.0, %v4292
        %v4294 = vpop.f32.mrb[0].mxu0
        %v4295 = vadd.f32 0.0, %v4294
        %v4296 = vpop.f32.mrb[0].mxu0
        %v4297 = vpop.f32.mrb[0].mxu0
        %4298 = vdwg.mxu0
        %v4299 = vpack.c.bf16 %v4293, %v4293
        %v4300 = vpack.c.bf16 %v4295, %v4295
        %s4301 = scalar_lea.vmem %s17, 288
        %v4302 = vld [vmem:[%s4301] sm:$0xf]
        %v4303 = vld [vmem:[%s4301 + $0x4] sm:$0xf]
        %v4304 = vld [vmem:[%s4301 + $0x8] sm:$0xf]
        %v4305 = vld [vmem:[%s4301 + $0xc] sm:$0xf]
        %v4306 = vld [vmem:[%s4301 + $0x10] sm:$0xf]
        %v4307 = vld [vmem:[%s4301 + $0x14] sm:$0xf]
        %v4308 = vld [vmem:[%s4301 + $0x18] sm:$0xf]
        %v4309 = vld [vmem:[%s4301 + $0x1c] sm:$0xf]
        %v4310 = vld [vmem:[%s4301 + $0x20] sm:$0xf]
        %v4311 = vld [vmem:[%s4301 + $0x24] sm:$0xf]
        %v4312 = vld [vmem:[%s4301 + $0x28] sm:$0xf]
        %v4313 = vld [vmem:[%s4301 + $0x2c] sm:$0xf]
        %v4314 = vld [vmem:[%s4301 + $0x30] sm:$0xf]
        %v4315 = vld [vmem:[%s4301 + $0x34] sm:$0xf]
        %v4316 = vld [vmem:[%s4301 + $0x38] sm:$0xf]
        %v4317 = vld [vmem:[%s4301 + $0x3c] sm:$0xf]
        %v4318 = vld [vmem:[%s4301 + $0x40] sm:$0xf]
        %v4319 = vld [vmem:[%s4301 + $0x44] sm:$0xf]
        %v4320 = vld [vmem:[%s4301 + $0x48] sm:$0xf]
        %v4321 = vld [vmem:[%s4301 + $0x4c] sm:$0xf]
        %v4322 = vld [vmem:[%s4301 + $0x50] sm:$0xf]
        %v4323 = vld [vmem:[%s4301 + $0x54] sm:$0xf]
        %v4324 = vld [vmem:[%s4301 + $0x58] sm:$0xf]
        %v4325 = vld [vmem:[%s4301 + $0x5c] sm:$0xf]
        %v4350 = vunpack.c.l.b16 %v4302
        %v4351 = vunpack.c.l.b16 %v4303
        %v4352 = vunpack.c.l.b16 %v4304
        %v4353 = vunpack.c.l.b16 %v4305
        %v4354 = vunpack.c.l.b16 %v4306
        %v4355 = vunpack.c.l.b16 %v4307
        %v4356 = vunpack.c.l.b16 %v4308
        %v4357 = vunpack.c.l.b16 %v4309
        %v4358 = vunpack.c.l.b16 %v4310
        %v4359 = vunpack.c.l.b16 %v4311
        %v4360 = vunpack.c.l.b16 %v4312
        %v4361 = vunpack.c.l.b16 %v4313
        %v4362 = vunpack.c.l.b16 %v4314
        %v4363 = vunpack.c.l.b16 %v4315
        %v4364 = vunpack.c.l.b16 %v4316
        %v4365 = vunpack.c.l.b16 %v4317
        %v4366 = vunpack.c.l.b16 %v4318
        %v4367 = vunpack.c.l.b16 %v4319
        %v4368 = vunpack.c.l.b16 %v4320
        %v4369 = vunpack.c.l.b16 %v4321
        %v4370 = vunpack.c.l.b16 %v4322
        %v4371 = vunpack.c.l.b16 %v4323
        %v4372 = vunpack.c.l.b16 %v4324
        %v4373 = vunpack.c.l.b16 %v4325
        %v4374 = vpack.c.b16 %v4351, %v4350
        %v4375 = vpack.c.b16 %v4353, %v4352
        %v4376 = vpack.c.b16 %v4355, %v4354
        %v4377 = vpack.c.b16 %v4357, %v4356
        %v4378 = vpack.c.b16 %v4359, %v4358
        %v4379 = vpack.c.b16 %v4361, %v4360
        %v4380 = vpack.c.b16 %v4363, %v4362
        %v4381 = vpack.c.b16 %v4365, %v4364
        %v4382 = vpack.c.b16 %v4367, %v4366
        %v4383 = vpack.c.b16 %v4369, %v4368
        %v4384 = vpack.c.b16 %v4371, %v4370
        %v4385 = vpack.c.b16 %v4373, %v4372
        %v4399 = vsel %vm3905, %v4300, 0
        %4401 = vmatprep.subr.bf16.mxu0 0
        %4402 = vmatpush1.bf16.msra.mxu0 %v4374
        %4403 = vmatprep.subr.bf16.mxu0 0
        %4404 = vmatpush1.bf16.msra.mxu0 %v4375
        %4405 = vmatprep.subr.bf16.mxu0 0
        %4406 = vmatpush1.bf16.msra.mxu0 %v4376
        %4407 = vmatprep.subr.bf16.mxu0 0
        %4408 = vmatpush1.bf16.msra.mxu0 %v4377
        %4409 = vmatprep.subr.bf16.mxu0 0
        %4410 = vmatpush1.bf16.msra.mxu0 %v4378
        %4411 = vmatprep.subr.bf16.mxu0 0
        %4412 = vmatpush1.bf16.msra.mxu0 %v4379
        %4413 = vmatprep.subr.bf16.mxu0 0
        %4414 = vmatpush1.bf16.msra.mxu0 %v4380
        %4415 = vmatprep.subr.bf16.mxu0 0
        %4416 = vmatpush1.bf16.msra.mxu0 %v4381
        %4417 = vmatprep.subr.bf16.mxu0 0
        %4418 = vmatpush1.bf16.msra.mxu0 %v4382
        %4419 = vmatprep.subr.bf16.mxu0 0
        %4420 = vmatpush1.bf16.msra.mxu0 %v4383
        %4421 = vmatprep.subr.bf16.mxu0 0
        %4422 = vmatpush1.bf16.msra.mxu0 %v4384
        %4423 = vmatprep.subr.bf16.mxu0 0
        %4424 = vmatpush1.bf16.msra.mxu0 %v4385
        %4425 = vmatprep.subr.bf16.mxu0 0
        %4426 = vmatpush1.bf16.msra.mxu0 0
        %4427 = vmatprep.subr.bf16.mxu0 0
        %4428 = vmatpush1.bf16.msra.mxu0 0
        %4429 = vmatprep.subr.bf16.mxu0 0
        %4430 = vmatpush1.bf16.msra.mxu0 0
        %4431 = vmatprep.subr.bf16.mxu0 0
        %4432 = vmatpush1.bf16.msra.mxu0 0
        %4433 = vmatprep.mubr.bf16.mxu0 %v4399
        %4434 = vmatmul.mubr.bf16.gmra.mrb[0].mxu0 %v4299
        %v4435 = vpop.f32.mrb[0].mxu0
        %v4436 = vadd.f32 0.0, %v4435
        %v4437 = vpop.f32.mrb[0].mxu0
        %v4438 = vpop.f32.mrb[0].mxu0
        %v4439 = vpop.f32.mrb[0].mxu0
        %4440 = vdwg.mxu0
        %v4441 = vadd.f32 %v4252, %v4436
        %v4442 = vld [vmem:[%s18] sm:$0x1]
        %v4444 = vlaneseq
        %v4445 = vshrl.u32 %v4444, 7
        %v4446 = vsub.s32 0, %v4445
        %v4447 = vrot.slane %v4442, %v4446
        %v4449 = vadd.f32 %v4441, %v4447
        %vm4450 = vcmask 9216
        %4451 = vst.msk [vmem:[%s595] sm:$0x3] %vm4450, %v4449
        %s4452 = sand.u32 %s445, 1
        %s4453 = scalar_lea.sflag [#allocation3], %s4452
        %s4454 = sand.u32 %s445, 1
        %s4455 = smul.addr %s4454, 2
        %s4456 = scalar_lea.vmem [#allocation2], %s4455
        // Predicated region
        $region97: #{forward.1} parent=95 // pred_check
          %p4457 = pneg %p455
        $region98: #{forward.1} parent=95 // pred_check_branch
          %4459 = sbr.rel (%p4457) target = $region100
        $region99: #{forward.1} parent=95 // pred_region
          %s4461 = ssub.s32 32, 32
          %4462 = vsyncadd %s4453, %s4461
          %s4463 = smul.addr %s33, 32
          %s4464 = scalar_lea.hbm %s19, %s4463
          %s4466 = sshll.u32 %s4456, 4
          %s4467 = int_to_ptr.vmem [resolvable:$true] %s4466
          %4469 = dma.vmem_to_hbm [thread:$0]  %s4467, 32, %s4464, %s4453
        $region100: #{forward.1} parent=95 // pred_fallthru
          _
      $region96: #{forward.1} parent=5 // pred_fallthru
        _
      %p4470 = scmp.le.s32.totalorder 2, %s28
      // Predicated region
      $region101: #{forward.1} parent=5 // pred_check
        %p4471 = pneg %p4470
      $region102: #{forward.1} parent=5 // pred_check_branch
        %4473 = sbr.rel (%p4471) target = $region104
      $region103: #{forward.1} parent=5 // pred_region
        %s4474 = ssub.s32 %s28, 2
        // Predicated region
        $region105: #{forward.1} parent=103 // pred_check
          %p4475 = pneg %p461
        $region106: #{forward.1} parent=103 // pred_check_branch
          %4477 = sbr.rel (%p4475) target = $region108
        $region107: #{forward.1} parent=103 // pred_region
          %s4478 = sand.u32 %s446, 1
          %s4479 = scalar_lea.sflag [#allocation3], %s4478
          %s4480 = sand.u32 %s446, 1
          %s4481 = smul.addr %s4480, 2
          %s4482 = scalar_lea.vmem [#allocation2], %s4481
          %4483 = dma.done %s4479, 32
        $region108: #{forward.1} parent=103 // pred_fallthru
          _
      $region104: #{forward.1} parent=5 // pred_fallthru
        _
    $region6: #{forward.1} parent=1 // loop_footer
      %s32 = sadd.s32 1, %s28
    $region7: #{forward.1} parent=1 // loop_footer_branch
      %27 = sbr.rel target = $region3
    $region8: #{forward.1} parent=1 // loop_exit
      _
    %4484 = vsyncpa [#allocation3], 1
    %s4485 = scalar_lea.sflag [#allocation3], 1
    %4486 = vsyncpa %s4485, 1

</llo_original>
